<compile_context>
chip_gen: v5e
topology: v5e:2x2
jax: 0.10.0
libtpu: 0.0.40
codegen_flags: <defaults>
</compile_context>

<pallas_src>
import functools

import jax
import jax.numpy as jnp
from jax.experimental import pallas as pl
from jax.experimental.pallas import tpu as pltpu


def gru_kernel(x_ref, h0_ref, wih_ref, whh_ref, bc_ref, bhn_ref,
               out_ref, h_scratch, gi_scratch, *,
               hidden_size, time_block, batch_block):
    """One grid step == one (batch_block, time_block) tile of the recurrence."""
    H, TT, BB = hidden_size, time_block, batch_block

    # Re-initialize the carried hidden state at the start of every batch block.
    @pl.when(pl.program_id(1) == 0)
    def _():
        h_scratch[...] = h0_ref[0].astype(jnp.float32)

    # Hoisted input projection: one (TT*BB, I) @ (I, 3H) bf16 MXU matmul per
    # block (f32 accumulate), bias (r/z hidden biases pre-folded in the
    # wrapper) added once. Result is staged in VMEM so the unrolled time loop
    # below never holds the whole gi slab live in vregs.
    x2d = x_ref[...].reshape(TT * BB, -1).astype(jnp.bfloat16)
    gi_scratch[...] = (jnp.dot(x2d, wih_ref[...],
                               preferred_element_type=jnp.float32)
                       + bc_ref[...])                       # (TT*BB, 3H) f32

    b_hn = jnp.broadcast_to(bhn_ref[...], (BB, H))          # hoisted out of loop

    h = h_scratch[...]                                      # (BB, H) f32 carry
    # Fully unrolled at trace time (TT is small & static); all slice / store
    # indices stay static and sublane/lane aligned (BB % 8 == 0, H % 128 == 0).
    for t in range(TT):
        gi_t = gi_scratch[t * BB:(t + 1) * BB, :]           # (BB, 3H) per-step load
        h_bf = h.astype(jnp.bfloat16)
        # Split the recurrent matmul so the fused r/z sigmoid (EUP) can overlap
        # the n-column matmul (MXU). Operands stream straight from VMEM refs.
        gh_rz = jnp.dot(h_bf, whh_ref[:, 0:2 * H],
                        preferred_element_type=jnp.float32)
        gh_n = jnp.dot(h_bf, whh_ref[:, 2 * H:3 * H],
                       preferred_element_type=jnp.float32)
        rz = jax.nn.sigmoid(gi_t[:, 0:2 * H] + gh_rz)       # one EUP call for r,z
        r, z = rz[:, 0:H], rz[:, H:2 * H]
        n = jnp.tanh(gi_t[:, 2 * H:3 * H] + r * (gh_n + b_hn))
        h = (1.0 - z) * n + z * h
        out_ref[t] = h.astype(out_ref.dtype)                # lane-dense (BB,H) store
        # TODO(synk): optionally pin W_hh in the MXU weight registers across the
        # TT steps via pltpu.matmul_push_rhs/acc_lhs/pop to avoid re-pushing the
        # loop-invariant RHS each step (latency win at tiny B).

    h_scratch[...] = h


def _pick_time_block(T, time_block):
    """Largest TT <= time_block, preferring one that divides T (no padded tail)."""
    tt_cap = max(1, min(time_block, T))
    best_div = 1
    for tt in range(1, tt_cap + 1):
        if T % tt == 0:
            best_div = tt
    # Only fall back to padding when every divisor of T is much smaller than
    # the cap (e.g. prime T), where tiny TT would re-expose per-step overhead.
    if best_div >= max(1, tt_cap // 2):
        return best_div
    return tt_cap


def _pick_batch_block(b_pad):
    """Multiple of 8 dividing b_pad; >= 2 blocks when possible (v7x megacore)."""
    m = b_pad // 8
    if m <= 1:
        return b_pad
    for k in range(m // 2, 0, -1):
        if m % k == 0:
            return 8 * k
    return b_pad


def gru_forward(inp, h0, w_ih, w_hh, b_ih, b_hh, *, time_block=32):
    """Pallas GRU: inp (T,B,I), h0 (1,B,H) -> (output (T,B,H), h_n (1,B,H))."""
    T, B, I = inp.shape
    H = h0.shape[-1]

    TT = _pick_time_block(T, time_block)
    T_pad = pl.cdiv(T, TT) * TT
    B_pad = pl.cdiv(B, 8) * 8          # pad batch to the f32 sublane granularity
    BBLK = _pick_batch_block(B_pad)    # >= 2 batch blocks when B_pad >= 16

    x = inp
    h0p = h0
    if T_pad != T or B_pad != B:
        # Padded copy is unavoidable here; build it directly in bf16 so the
        # kernel-side x DMA is halved at no extra cost.
        x = jnp.zeros((T_pad, B_pad, I), jnp.bfloat16).at[:T, :B].set(
            inp.astype(jnp.bfloat16))
    if B_pad != B:
        h0p = jnp.zeros((1, B_pad, H), h0.dtype).at[:, :B].set(h0)

    # PyTorch gate order (r, z, n). Pre-transpose weights (bf16 MXU operands)
    # so the kernel does (M, I) @ (I, 3H) and (B, H) @ (H, 3H). Fold the r/z
    # hidden biases into the input bias (always summed); b_hn stays separate
    # (it lives inside the r * (...) term). Biases stay f32.
    wih_t = w_ih.T.astype(jnp.bfloat16)                              # (I, 3H)
    whh_t = w_hh.T.astype(jnp.bfloat16)                              # (H, 3H)
    b_comb = jnp.concatenate(
        [b_ih[:2 * H] + b_hh[:2 * H], b_ih[2 * H:]]).reshape(1, 3 * H)
    b_hn = b_hh[2 * H:].reshape(1, H)

    # VMEM budgeting: single-buffer constant-index weights and raise the scoped
    # VMEM limit only when the footprint is large enough to matter (v7x: 64 MiB
    # physical, 32 MiB default scoped limit).
    weight_bytes = (I * 3 * H + H * 3 * H) * 2                       # bf16
    single_buffer_weights = 2 * weight_bytes > (8 << 20)
    block_bytes = TT * BBLK * I * 2 + TT * BBLK * H * inp.dtype.itemsize
    scratch_bytes = (BBLK * H + TT * BBLK * 3 * H) * 4
    est_bytes = (2 * block_bytes + scratch_bytes
                 + (1 if single_buffer_weights else 2) * weight_bytes
                 + 2 * (3 * H + H) * 4)
    vmem_limit = None
    if est_bytes > (24 << 20):
        vmem_limit = min(int(est_bytes * 1.5), 60 << 20)

    w_spec_kwargs = {}
    if single_buffer_weights:
        w_spec_kwargs = dict(pipeline_mode=pl.Buffered(1))

    kernel = functools.partial(gru_kernel, hidden_size=H,
                               time_block=TT, batch_block=BBLK)

    # TODO(synk): downstream consumers could take a bf16 output slab (halves
    # the dominant HBM write for long T); kept in the input dtype here to match
    # the PyTorch module's output dtype exactly.
    out = pl.pallas_call(
        kernel,
        out_shape=jax.ShapeDtypeStruct((T_pad, B_pad, H), inp.dtype),
        grid_spec=pltpu.PrefetchScalarGridSpec(
            num_scalar_prefetch=0,
            grid=(B_pad // BBLK, T_pad // TT),
            in_specs=[
                pl.BlockSpec((TT, BBLK, I), lambda b, t: (t, b, 0)),   # x block
                pl.BlockSpec((1, BBLK, H), lambda b, t: (0, b, 0)),    # h0
                pl.BlockSpec((I, 3 * H), lambda b, t: (0, 0),          # W_ih^T
                             **w_spec_kwargs),
                pl.BlockSpec((H, 3 * H), lambda b, t: (0, 0),          # W_hh^T
                             **w_spec_kwargs),
                pl.BlockSpec((1, 3 * H), lambda b, t: (0, 0)),         # fused bias
                pl.BlockSpec((1, H), lambda b, t: (0, 0)),             # b_hn
            ],
            out_specs=pl.BlockSpec((TT, BBLK, H), lambda b, t: (t, b, 0)),
            scratch_shapes=[
                pltpu.VMEM((BBLK, H), jnp.float32),              # carried h_t
                pltpu.VMEM((TT * BBLK, 3 * H), jnp.float32),     # staged gi
            ],
        ),
        compiler_params=pltpu.CompilerParams(
            dimension_semantics=("parallel", "arbitrary"),       # (batch, time)
            vmem_limit_bytes=vmem_limit),
    )(x, h0p, wih_t, whh_t, b_comb, b_hn)

    out = out[:T, :B]
    hn = out[T - 1:T]          # final hidden state == last output step
    return out, hn


class Encoder:
    """JAX/Pallas equivalent of models/Seq2Seq.py::Encoder (num_layers=1, unidirectional)."""

    def __init__(self, input_size=128, hidden_size=128, num_layers=1,
                 bidirectional=False, key=jax.random.PRNGKey(0)):
        assert num_layers == 1 and not bidirectional, \
            "kernel implements the default single-layer unidirectional GRU"
        self.input_size = input_size
        self.hidden_size = hidden_size
        self.num_layers = num_layers
        self.bidirectional = bidirectional
        bound = 1.0 / (hidden_size ** 0.5)
        k1, k2, k3, k4 = jax.random.split(key, 4)
        # PyTorch nn.GRU parameter shapes, uniform(-1/sqrt(H), 1/sqrt(H)) init.
        self.w_ih = jax.random.uniform(k1, (3 * hidden_size, input_size),
                                       jnp.float32, -bound, bound)
        self.w_hh = jax.random.uniform(k2, (3 * hidden_size, hidden_size),
                                       jnp.float32, -bound, bound)
        self.b_ih = jax.random.uniform(k3, (3 * hidden_size,),
                                       jnp.float32, -bound, bound)
        self.b_hh = jax.random.uniform(k4, (3 * hidden_size,),
                                       jnp.float32, -bound, bound)

    def init_hidden(self, batch=1):
        return jnp.zeros((self.num_layers, batch, self.hidden_size), jnp.float32)

    def forward(self, inp, hidden):
        return gru_forward(inp, hidden, self.w_ih, self.w_hh, self.b_ih, self.b_hh)


def gru_reference(inp, h0, w_ih, w_hh, b_ih, b_hh):
    """Pure-JAX reference (lax.scan) replicating PyTorch GRU semantics."""
    H = h0.shape[-1]
    prec = jax.lax.Precision.HIGHEST

    def step(h, x_t):
        gi = jnp.dot(x_t, w_ih.T, precision=prec) + b_ih
        gh = jnp.dot(h, w_hh.T, precision=prec) + b_hh
        r = jax.nn.sigmoid(gi[:, 0:H] + gh[:, 0:H])
        z = jax.nn.sigmoid(gi[:, H:2 * H] + gh[:, H:2 * H])
        n = jnp.tanh(gi[:, 2 * H:3 * H] + r * gh[:, 2 * H:3 * H])
        h_new = (1.0 - z) * n + z * h
        return h_new, h_new

    h_final, outs = jax.lax.scan(step, h0[0], inp)
    return outs, h_final[None]


if __name__ == "__main__":
    T, B, I, H = 16, 2, 128, 128          # module-default feature sizes, small T/B
    enc = Encoder(input_size=I, hidden_size=H, key=jax.random.PRNGKey(0))

    key = jax.random.PRNGKey(0)
    inp = jax.random.normal(key, (T, B, I), jnp.float32)
    hidden = enc.init_hidden(batch=B)

    out, hn = enc.forward(inp, hidden)
    out, hn = jax.block_until_ready((out, hn))

    out_ref, hn_ref = gru_reference(inp, hidden, enc.w_ih, enc.w_hh,
                                    enc.b_ih, enc.b_hh)
    assert out.shape == (T, B, H) and hn.shape == (1, B, H)
    # Tolerance loosened vs the f32-matmul version: kernel matmuls use bf16
    # operands (f32 accumulate), reference uses Precision.HIGHEST f32.
    assert jnp.allclose(out, out_ref, atol=5e-2, rtol=5e-2)
    assert jnp.allclose(hn, hn_ref, atol=5e-2, rtol=5e-2)
    print("KERNEL_OK")
</pallas_src>

<mosaic_0001>
module attributes {stable_mosaic.version = 11 : i64} {
  func.func @gru_kernel(%arg0: i32, %arg1: i32, %arg2: memref<16x8x128xbf16, #tpu.memory_space<vmem>>, %arg3: memref<1x8x128xf32, #tpu.memory_space<vmem>>, %arg4: memref<128x384xbf16, #tpu.memory_space<vmem>>, %arg5: memref<128x384xbf16, #tpu.memory_space<vmem>>, %arg6: memref<1x384xf32, #tpu.memory_space<vmem>>, %arg7: memref<1x128xf32, #tpu.memory_space<vmem>>, %arg8: memref<16x8x128xf32, #tpu.memory_space<vmem>>, %arg9: memref<8x128xf32, #tpu.memory_space<vmem>>, %arg10: memref<128x384xf32, #tpu.memory_space<vmem>>) attributes {dimension_semantics = [#tpu.dimension_semantics<parallel>, #tpu.dimension_semantics<arbitrary>], iteration_bounds = array<i64: 1, 1>, scalar_prefetch = 0 : i64, scratch_operands = 2 : i64, tpu.core_type = #tpu.core_type<tc>, window_params = [{transform_indices = @transform_0, window_bounds = array<i64: 16, 8, 128>}, {transform_indices = @transform_1, window_bounds = array<i64: 1, 8, 128>}, {pipeline_mode = #tpu.pipeline_mode<synchronous>, transform_indices = @transform_2, window_bounds = array<i64: 128, 384>}, {pipeline_mode = #tpu.pipeline_mode<synchronous>, transform_indices = @transform_3, window_bounds = array<i64: 128, 384>}, {pipeline_mode = #tpu.pipeline_mode<synchronous>, transform_indices = @transform_4, window_bounds = array<i64: 1, 384>}, {pipeline_mode = #tpu.pipeline_mode<synchronous>, transform_indices = @transform_5, window_bounds = array<i64: 1, 128>}, {transform_indices = @transform_6, window_bounds = array<i64: 16, 8, 128>}]} {
    %c0_i32 = arith.constant 0 : i32
    %0 = arith.cmpi eq, %arg1, %c0_i32 : i32
    %1 = arith.extui %0 : i1 to i32
    %c0_i32_0 = arith.constant 0 : i32
    %2 = arith.cmpi ne, %1, %c0_i32_0 : i32
    scf.if %2 {
      %c0_193 = arith.constant 0 : index
      %c0_194 = arith.constant 0 : index
      %c0_195 = arith.constant 0 : index
      %464 = vector.load %arg3[%c0_193, %c0_194, %c0_195] : memref<1x8x128xf32, #tpu.memory_space<vmem>>, vector<1x8x128xf32>
      %465 = vector.shape_cast %464 : vector<1x8x128xf32> to vector<8x128xf32>
      %c0_196 = arith.constant 0 : index
      %c0_197 = arith.constant 0 : index
      %466 = vector.load %arg9[%c0_196, %c0_197] : memref<8x128xf32, #tpu.memory_space<vmem>>, vector<8x128xf32>
      tpu.vector_store %arg9[%c0_196, %c0_197], %465 {strides = array<i32>} : memref<8x128xf32, #tpu.memory_space<vmem>>, vector<8x128xf32>,
    } else {
    }
    %c0 = arith.constant 0 : index
    %c0_1 = arith.constant 0 : index
    %c0_2 = arith.constant 0 : index
    %3 = vector.load %arg2[%c0, %c0_1, %c0_2] : memref<16x8x128xbf16, #tpu.memory_space<vmem>>, vector<16x8x128xbf16>
    %4 = vector.shape_cast %3 : vector<16x8x128xbf16> to vector<128x128xbf16>
    %c0_3 = arith.constant 0 : index
    %c0_4 = arith.constant 0 : index
    %5 = vector.load %arg4[%c0_3, %c0_4] : memref<128x384xbf16, #tpu.memory_space<vmem>>, vector<128x384xbf16>
    %cst = arith.constant dense<0.000000e+00> : vector<128x384xf32>
    %6 = tpu.matmul %4, %5, %cst {dimension_numbers = #tpu.dot_dimension_numbers<[1], [0], [0], [1], [0, 0, 1, 1], [], []>} : vector<128x128xbf16>, vector<128x384xbf16>, vector<128x384xf32> -> vector<128x384xf32>
    %c0_5 = arith.constant 0 : index
    %c0_6 = arith.constant 0 : index
    %7 = vector.load %arg6[%c0_5, %c0_6] : memref<1x384xf32, #tpu.memory_space<vmem>>, vector<1x384xf32>
    %8 = vector.broadcast %7 : vector<1x384xf32> to vector<128x384xf32>
    %9 = arith.addf %6, %8 : vector<128x384xf32>
    %c0_7 = arith.constant 0 : index
    %c0_8 = arith.constant 0 : index
    %10 = vector.load %arg10[%c0_7, %c0_8] : memref<128x384xf32, #tpu.memory_space<vmem>>, vector<128x384xf32>
    tpu.vector_store %arg10[%c0_7, %c0_8], %9 {strides = array<i32>} : memref<128x384xf32, #tpu.memory_space<vmem>>, vector<128x384xf32>,
    %c0_9 = arith.constant 0 : index
    %c0_10 = arith.constant 0 : index
    %11 = vector.load %arg7[%c0_9, %c0_10] : memref<1x128xf32, #tpu.memory_space<vmem>>, vector<1x128xf32>
    %12 = vector.shape_cast %11 : vector<1x128xf32> to vector<1x128xf32>
    %13 = vector.broadcast %12 : vector<1x128xf32> to vector<8x128xf32>
    %c0_11 = arith.constant 0 : index
    %c0_12 = arith.constant 0 : index
    %14 = vector.load %arg9[%c0_11, %c0_12] : memref<8x128xf32, #tpu.memory_space<vmem>>, vector<8x128xf32>
    %c0_13 = arith.constant 0 : index
    %c0_14 = arith.constant 0 : index
    %15 = vector.load %arg10[%c0_13, %c0_14] : memref<128x384xf32, #tpu.memory_space<vmem>>, vector<8x384xf32>
    %16 = arith.truncf %14 : vector<8x128xf32> to vector<8x128xbf16>
    %c0_15 = arith.constant 0 : index
    %c0_16 = arith.constant 0 : index
    %17 = vector.load %arg5[%c0_15, %c0_16] : memref<128x384xbf16, #tpu.memory_space<vmem>>, vector<128x256xbf16>
    %cst_17 = arith.constant dense<0.000000e+00> : vector<8x256xf32>
    %18 = tpu.matmul %16, %17, %cst_17 {dimension_numbers = #tpu.dot_dimension_numbers<[1], [0], [0], [1], [0, 0, 1, 1], [], []>} : vector<8x128xbf16>, vector<128x256xbf16>, vector<8x256xf32> -> vector<8x256xf32>
    %c0_18 = arith.constant 0 : index
    %c256 = arith.constant 256 : index
    %19 = vector.load %arg5[%c0_18, %c256] : memref<128x384xbf16, #tpu.memory_space<vmem>>, vector<128x128xbf16>
    %cst_19 = arith.constant dense<0.000000e+00> : vector<8x128xf32>
    %20 = tpu.matmul %16, %19, %cst_19 {dimension_numbers = #tpu.dot_dimension_numbers<[1], [0], [0], [1], [0, 0, 1, 1], [], []>} : vector<8x128xbf16>, vector<128x128xbf16>, vector<8x128xf32> -> vector<8x128xf32>
    %21 = vector.extract_strided_slice %15 {offsets = [0, 0], sizes = [8, 256], strides = [1, 1]} : vector<8x384xf32> to vector<8x256xf32>
    %22 = arith.addf %21, %18 : vector<8x256xf32>
    %23 = arith.negf %22 : vector<8x256xf32>
    %24 = math.exp %23 : vector<8x256xf32>
    %cst_20 = arith.constant 1.000000e+00 : f32
    %25 = vector.broadcast %cst_20 : f32 to vector<8x256xf32>
    %26 = arith.addf %25, %24 : vector<8x256xf32>
    %27 = arith.divf %25, %26 : vector<8x256xf32>
    %28 = vector.extract_strided_slice %27 {offsets = [0, 0], sizes = [8, 128], strides = [1, 1]} : vector<8x256xf32> to vector<8x128xf32>
    %29 = vector.extract_strided_slice %27 {offsets = [0, 128], sizes = [8, 128], strides = [1, 1]} : vector<8x256xf32> to vector<8x128xf32>
    %30 = vector.extract_strided_slice %15 {offsets = [0, 256], sizes = [8, 128], strides = [1, 1]} : vector<8x384xf32> to vector<8x128xf32>
    %31 = arith.addf %20, %13 : vector<8x128xf32>
    %32 = arith.mulf %28, %31 : vector<8x128xf32>
    %33 = arith.addf %30, %32 : vector<8x128xf32>
    %34 = math.tanh %33 : vector<8x128xf32>
    %cst_21 = arith.constant 1.000000e+00 : f32
    %35 = vector.broadcast %cst_21 : f32 to vector<8x128xf32>
    %36 = arith.subf %35, %29 : vector<8x128xf32>
    %37 = arith.mulf %36, %34 : vector<8x128xf32>
    %38 = arith.mulf %29, %14 : vector<8x128xf32>
    %39 = arith.addf %37, %38 : vector<8x128xf32>
    %c0_22 = arith.constant 0 : index
    %c0_23 = arith.constant 0 : index
    %c0_24 = arith.constant 0 : index
    %40 = vector.load %arg8[%c0_22, %c0_23, %c0_24] : memref<16x8x128xf32, #tpu.memory_space<vmem>>, vector<1x8x128xf32>
    %41 = vector.shape_cast %40 : vector<1x8x128xf32> to vector<8x128xf32>
    %42 = vector.shape_cast %39 : vector<8x128xf32> to vector<1x8x128xf32>
    tpu.vector_store %arg8[%c0_22, %c0_23, %c0_24], %42 {strides = array<i32>} : memref<16x8x128xf32, #tpu.memory_space<vmem>>, vector<1x8x128xf32>,
    %c8 = arith.constant 8 : index
    %c0_25 = arith.constant 0 : index
    %43 = vector.load %arg10[%c8, %c0_25] : memref<128x384xf32, #tpu.memory_space<vmem>>, vector<8x384xf32>
    %44 = arith.truncf %39 : vector<8x128xf32> to vector<8x128xbf16>
    %c0_26 = arith.constant 0 : index
    %c0_27 = arith.constant 0 : index
    %45 = vector.load %arg5[%c0_26, %c0_27] : memref<128x384xbf16, #tpu.memory_space<vmem>>, vector<128x256xbf16>
    %cst_28 = arith.constant dense<0.000000e+00> : vector<8x256xf32>
    %46 = tpu.matmul %44, %45, %cst_28 {dimension_numbers = #tpu.dot_dimension_numbers<[1], [0], [0], [1], [0, 0, 1, 1], [], []>} : vector<8x128xbf16>, vector<128x256xbf16>, vector<8x256xf32> -> vector<8x256xf32>
    %c0_29 = arith.constant 0 : index
    %c256_30 = arith.constant 256 : index
    %47 = vector.load %arg5[%c0_29, %c256_30] : memref<128x384xbf16, #tpu.memory_space<vmem>>, vector<128x128xbf16>
    %cst_31 = arith.constant dense<0.000000e+00> : vector<8x128xf32>
    %48 = tpu.matmul %44, %47, %cst_31 {dimension_numbers = #tpu.dot_dimension_numbers<[1], [0], [0], [1], [0, 0, 1, 1], [], []>} : vector<8x128xbf16>, vector<128x128xbf16>, vector<8x128xf32> -> vector<8x128xf32>
    %49 = vector.extract_strided_slice %43 {offsets = [0, 0], sizes = [8, 256], strides = [1, 1]} : vector<8x384xf32> to vector<8x256xf32>
    %50 = arith.addf %49, %46 : vector<8x256xf32>
    %51 = arith.negf %50 : vector<8x256xf32>
    %52 = math.exp %51 : vector<8x256xf32>
    %cst_32 = arith.constant 1.000000e+00 : f32
    %53 = vector.broadcast %cst_32 : f32 to vector<8x256xf32>
    %54 = arith.addf %53, %52 : vector<8x256xf32>
    %55 = arith.divf %53, %54 : vector<8x256xf32>
    %56 = vector.extract_strided_slice %55 {offsets = [0, 0], sizes = [8, 128], strides = [1, 1]} : vector<8x256xf32> to vector<8x128xf32>
    %57 = vector.extract_strided_slice %55 {offsets = [0, 128], sizes = [8, 128], strides = [1, 1]} : vector<8x256xf32> to vector<8x128xf32>
    %58 = vector.extract_strided_slice %43 {offsets = [0, 256], sizes = [8, 128], strides = [1, 1]} : vector<8x384xf32> to vector<8x128xf32>
    %59 = arith.addf %48, %13 : vector<8x128xf32>
    %60 = arith.mulf %56, %59 : vector<8x128xf32>
    %61 = arith.addf %58, %60 : vector<8x128xf32>
    %62 = math.tanh %61 : vector<8x128xf32>
    %cst_33 = arith.constant 1.000000e+00 : f32
    %63 = vector.broadcast %cst_33 : f32 to vector<8x128xf32>
    %64 = arith.subf %63, %57 : vector<8x128xf32>
    %65 = arith.mulf %64, %62 : vector<8x128xf32>
    %66 = arith.mulf %57, %39 : vector<8x128xf32>
    %67 = arith.addf %65, %66 : vector<8x128xf32>
    %c1 = arith.constant 1 : index
    %c0_34 = arith.constant 0 : index
    %c0_35 = arith.constant 0 : index
    %68 = vector.load %arg8[%c1, %c0_34, %c0_35] : memref<16x8x128xf32, #tpu.memory_space<vmem>>, vector<1x8x128xf32>
    %69 = vector.shape_cast %68 : vector<1x8x128xf32> to vector<8x128xf32>
    %70 = vector.shape_cast %67 : vector<8x128xf32> to vector<1x8x128xf32>
    tpu.vector_store %arg8[%c1, %c0_34, %c0_35], %70 {strides = array<i32>} : memref<16x8x128xf32, #tpu.memory_space<vmem>>, vector<1x8x128xf32>,
    %c16 = arith.constant 16 : index
    %c0_36 = arith.constant 0 : index
    %71 = vector.load %arg10[%c16, %c0_36] : memref<128x384xf32, #tpu.memory_space<vmem>>, vector<8x384xf32>
    %72 = arith.truncf %67 : vector<8x128xf32> to vector<8x128xbf16>
    %c0_37 = arith.constant 0 : index
    %c0_38 = arith.constant 0 : index
    %73 = vector.load %arg5[%c0_37, %c0_38] : memref<128x384xbf16, #tpu.memory_space<vmem>>, vector<128x256xbf16>
    %cst_39 = arith.constant dense<0.000000e+00> : vector<8x256xf32>
    %74 = tpu.matmul %72, %73, %cst_39 {dimension_numbers = #tpu.dot_dimension_numbers<[1], [0], [0], [1], [0, 0, 1, 1], [], []>} : vector<8x128xbf16>, vector<128x256xbf16>, vector<8x256xf32> -> vector<8x256xf32>
    %c0_40 = arith.constant 0 : index
    %c256_41 = arith.constant 256 : index
    %75 = vector.load %arg5[%c0_40, %c256_41] : memref<128x384xbf16, #tpu.memory_space<vmem>>, vector<128x128xbf16>
    %cst_42 = arith.constant dense<0.000000e+00> : vector<8x128xf32>
    %76 = tpu.matmul %72, %75, %cst_42 {dimension_numbers = #tpu.dot_dimension_numbers<[1], [0], [0], [1], [0, 0, 1, 1], [], []>} : vector<8x128xbf16>, vector<128x128xbf16>, vector<8x128xf32> -> vector<8x128xf32>
    %77 = vector.extract_strided_slice %71 {offsets = [0, 0], sizes = [8, 256], strides = [1, 1]} : vector<8x384xf32> to vector<8x256xf32>
    %78 = arith.addf %77, %74 : vector<8x256xf32>
    %79 = arith.negf %78 : vector<8x256xf32>
    %80 = math.exp %79 : vector<8x256xf32>
    %cst_43 = arith.constant 1.000000e+00 : f32
    %81 = vector.broadcast %cst_43 : f32 to vector<8x256xf32>
    %82 = arith.addf %81, %80 : vector<8x256xf32>
    %83 = arith.divf %81, %82 : vector<8x256xf32>
    %84 = vector.extract_strided_slice %83 {offsets = [0, 0], sizes = [8, 128], strides = [1, 1]} : vector<8x256xf32> to vector<8x128xf32>
    %85 = vector.extract_strided_slice %83 {offsets = [0, 128], sizes = [8, 128], strides = [1, 1]} : vector<8x256xf32> to vector<8x128xf32>
    %86 = vector.extract_strided_slice %71 {offsets = [0, 256], sizes = [8, 128], strides = [1, 1]} : vector<8x384xf32> to vector<8x128xf32>
    %87 = arith.addf %76, %13 : vector<8x128xf32>
    %88 = arith.mulf %84, %87 : vector<8x128xf32>
    %89 = arith.addf %86, %88 : vector<8x128xf32>
    %90 = math.tanh %89 : vector<8x128xf32>
    %cst_44 = arith.constant 1.000000e+00 : f32
    %91 = vector.broadcast %cst_44 : f32 to vector<8x128xf32>
    %92 = arith.subf %91, %85 : vector<8x128xf32>
    %93 = arith.mulf %92, %90 : vector<8x128xf32>
    %94 = arith.mulf %85, %67 : vector<8x128xf32>
    %95 = arith.addf %93, %94 : vector<8x128xf32>
    %c2 = arith.constant 2 : index
    %c0_45 = arith.constant 0 : index
    %c0_46 = arith.constant 0 : index
    %96 = vector.load %arg8[%c2, %c0_45, %c0_46] : memref<16x8x128xf32, #tpu.memory_space<vmem>>, vector<1x8x128xf32>
    %97 = vector.shape_cast %96 : vector<1x8x128xf32> to vector<8x128xf32>
    %98 = vector.shape_cast %95 : vector<8x128xf32> to vector<1x8x128xf32>
    tpu.vector_store %arg8[%c2, %c0_45, %c0_46], %98 {strides = array<i32>} : memref<16x8x128xf32, #tpu.memory_space<vmem>>, vector<1x8x128xf32>,
    %c24 = arith.constant 24 : index
    %c0_47 = arith.constant 0 : index
    %99 = vector.load %arg10[%c24, %c0_47] : memref<128x384xf32, #tpu.memory_space<vmem>>, vector<8x384xf32>
    %100 = arith.truncf %95 : vector<8x128xf32> to vector<8x128xbf16>
    %c0_48 = arith.constant 0 : index
    %c0_49 = arith.constant 0 : index
    %101 = vector.load %arg5[%c0_48, %c0_49] : memref<128x384xbf16, #tpu.memory_space<vmem>>, vector<128x256xbf16>
    %cst_50 = arith.constant dense<0.000000e+00> : vector<8x256xf32>
    %102 = tpu.matmul %100, %101, %cst_50 {dimension_numbers = #tpu.dot_dimension_numbers<[1], [0], [0], [1], [0, 0, 1, 1], [], []>} : vector<8x128xbf16>, vector<128x256xbf16>, vector<8x256xf32> -> vector<8x256xf32>
    %c0_51 = arith.constant 0 : index
    %c256_52 = arith.constant 256 : index
    %103 = vector.load %arg5[%c0_51, %c256_52] : memref<128x384xbf16, #tpu.memory_space<vmem>>, vector<128x128xbf16>
    %cst_53 = arith.constant dense<0.000000e+00> : vector<8x128xf32>
    %104 = tpu.matmul %100, %103, %cst_53 {dimension_numbers = #tpu.dot_dimension_numbers<[1], [0], [0], [1], [0, 0, 1, 1], [], []>} : vector<8x128xbf16>, vector<128x128xbf16>, vector<8x128xf32> -> vector<8x128xf32>
    %105 = vector.extract_strided_slice %99 {offsets = [0, 0], sizes = [8, 256], strides = [1, 1]} : vector<8x384xf32> to vector<8x256xf32>
    %106 = arith.addf %105, %102 : vector<8x256xf32>
    %107 = arith.negf %106 : vector<8x256xf32>
    %108 = math.exp %107 : vector<8x256xf32>
    %cst_54 = arith.constant 1.000000e+00 : f32
    %109 = vector.broadcast %cst_54 : f32 to vector<8x256xf32>
    %110 = arith.addf %109, %108 : vector<8x256xf32>
    %111 = arith.divf %109, %110 : vector<8x256xf32>
    %112 = vector.extract_strided_slice %111 {offsets = [0, 0], sizes = [8, 128], strides = [1, 1]} : vector<8x256xf32> to vector<8x128xf32>
    %113 = vector.extract_strided_slice %111 {offsets = [0, 128], sizes = [8, 128], strides = [1, 1]} : vector<8x256xf32> to vector<8x128xf32>
    %114 = vector.extract_strided_slice %99 {offsets = [0, 256], sizes = [8, 128], strides = [1, 1]} : vector<8x384xf32> to vector<8x128xf32>
    %115 = arith.addf %104, %13 : vector<8x128xf32>
    %116 = arith.mulf %112, %115 : vector<8x128xf32>
    %117 = arith.addf %114, %116 : vector<8x128xf32>
    %118 = math.tanh %117 : vector<8x128xf32>
    %cst_55 = arith.constant 1.000000e+00 : f32
    %119 = vector.broadcast %cst_55 : f32 to vector<8x128xf32>
    %120 = arith.subf %119, %113 : vector<8x128xf32>
    %121 = arith.mulf %120, %118 : vector<8x128xf32>
    %122 = arith.mulf %113, %95 : vector<8x128xf32>
    %123 = arith.addf %121, %122 : vector<8x128xf32>
    %c3 = arith.constant 3 : index
    %c0_56 = arith.constant 0 : index
    %c0_57 = arith.constant 0 : index
    %124 = vector.load %arg8[%c3, %c0_56, %c0_57] : memref<16x8x128xf32, #tpu.memory_space<vmem>>, vector<1x8x128xf32>
    %125 = vector.shape_cast %124 : vector<1x8x128xf32> to vector<8x128xf32>
    %126 = vector.shape_cast %123 : vector<8x128xf32> to vector<1x8x128xf32>
    tpu.vector_store %arg8[%c3, %c0_56, %c0_57], %126 {strides = array<i32>} : memref<16x8x128xf32, #tpu.memory_space<vmem>>, vector<1x8x128xf32>,
    %c32 = arith.constant 32 : index
    %c0_58 = arith.constant 0 : index
    %127 = vector.load %arg10[%c32, %c0_58] : memref<128x384xf32, #tpu.memory_space<vmem>>, vector<8x384xf32>
    %128 = arith.truncf %123 : vector<8x128xf32> to vector<8x128xbf16>
    %c0_59 = arith.constant 0 : index
    %c0_60 = arith.constant 0 : index
    %129 = vector.load %arg5[%c0_59, %c0_60] : memref<128x384xbf16, #tpu.memory_space<vmem>>, vector<128x256xbf16>
    %cst_61 = arith.constant dense<0.000000e+00> : vector<8x256xf32>
    %130 = tpu.matmul %128, %129, %cst_61 {dimension_numbers = #tpu.dot_dimension_numbers<[1], [0], [0], [1], [0, 0, 1, 1], [], []>} : vector<8x128xbf16>, vector<128x256xbf16>, vector<8x256xf32> -> vector<8x256xf32>
    %c0_62 = arith.constant 0 : index
    %c256_63 = arith.constant 256 : index
    %131 = vector.load %arg5[%c0_62, %c256_63] : memref<128x384xbf16, #tpu.memory_space<vmem>>, vector<128x128xbf16>
    %cst_64 = arith.constant dense<0.000000e+00> : vector<8x128xf32>
    %132 = tpu.matmul %128, %131, %cst_64 {dimension_numbers = #tpu.dot_dimension_numbers<[1], [0], [0], [1], [0, 0, 1, 1], [], []>} : vector<8x128xbf16>, vector<128x128xbf16>, vector<8x128xf32> -> vector<8x128xf32>
    %133 = vector.extract_strided_slice %127 {offsets = [0, 0], sizes = [8, 256], strides = [1, 1]} : vector<8x384xf32> to vector<8x256xf32>
    %134 = arith.addf %133, %130 : vector<8x256xf32>
    %135 = arith.negf %134 : vector<8x256xf32>
    %136 = math.exp %135 : vector<8x256xf32>
    %cst_65 = arith.constant 1.000000e+00 : f32
    %137 = vector.broadcast %cst_65 : f32 to vector<8x256xf32>
    %138 = arith.addf %137, %136 : vector<8x256xf32>
    %139 = arith.divf %137, %138 : vector<8x256xf32>
    %140 = vector.extract_strided_slice %139 {offsets = [0, 0], sizes = [8, 128], strides = [1, 1]} : vector<8x256xf32> to vector<8x128xf32>
    %141 = vector.extract_strided_slice %139 {offsets = [0, 128], sizes = [8, 128], strides = [1, 1]} : vector<8x256xf32> to vector<8x128xf32>
    %142 = vector.extract_strided_slice %127 {offsets = [0, 256], sizes = [8, 128], strides = [1, 1]} : vector<8x384xf32> to vector<8x128xf32>
    %143 = arith.addf %132, %13 : vector<8x128xf32>
    %144 = arith.mulf %140, %143 : vector<8x128xf32>
    %145 = arith.addf %142, %144 : vector<8x128xf32>
    %146 = math.tanh %145 : vector<8x128xf32>
    %cst_66 = arith.constant 1.000000e+00 : f32
    %147 = vector.broadcast %cst_66 : f32 to vector<8x128xf32>
    %148 = arith.subf %147, %141 : vector<8x128xf32>
    %149 = arith.mulf %148, %146 : vector<8x128xf32>
    %150 = arith.mulf %141, %123 : vector<8x128xf32>
    %151 = arith.addf %149, %150 : vector<8x128xf32>
    %c4 = arith.constant 4 : index
    %c0_67 = arith.constant 0 : index
    %c0_68 = arith.constant 0 : index
    %152 = vector.load %arg8[%c4, %c0_67, %c0_68] : memref<16x8x128xf32, #tpu.memory_space<vmem>>, vector<1x8x128xf32>
    %153 = vector.shape_cast %152 : vector<1x8x128xf32> to vector<8x128xf32>
    %154 = vector.shape_cast %151 : vector<8x128xf32> to vector<1x8x128xf32>
    tpu.vector_store %arg8[%c4, %c0_67, %c0_68], %154 {strides = array<i32>} : memref<16x8x128xf32, #tpu.memory_space<vmem>>, vector<1x8x128xf32>,
    %c40 = arith.constant 40 : index
    %c0_69 = arith.constant 0 : index
    %155 = vector.load %arg10[%c40, %c0_69] : memref<128x384xf32, #tpu.memory_space<vmem>>, vector<8x384xf32>
    %156 = arith.truncf %151 : vector<8x128xf32> to vector<8x128xbf16>
    %c0_70 = arith.constant 0 : index
    %c0_71 = arith.constant 0 : index
    %157 = vector.load %arg5[%c0_70, %c0_71] : memref<128x384xbf16, #tpu.memory_space<vmem>>, vector<128x256xbf16>
    %cst_72 = arith.constant dense<0.000000e+00> : vector<8x256xf32>
    %158 = tpu.matmul %156, %157, %cst_72 {dimension_numbers = #tpu.dot_dimension_numbers<[1], [0], [0], [1], [0, 0, 1, 1], [], []>} : vector<8x128xbf16>, vector<128x256xbf16>, vector<8x256xf32> -> vector<8x256xf32>
    %c0_73 = arith.constant 0 : index
    %c256_74 = arith.constant 256 : index
    %159 = vector.load %arg5[%c0_73, %c256_74] : memref<128x384xbf16, #tpu.memory_space<vmem>>, vector<128x128xbf16>
    %cst_75 = arith.constant dense<0.000000e+00> : vector<8x128xf32>
    %160 = tpu.matmul %156, %159, %cst_75 {dimension_numbers = #tpu.dot_dimension_numbers<[1], [0], [0], [1], [0, 0, 1, 1], [], []>} : vector<8x128xbf16>, vector<128x128xbf16>, vector<8x128xf32> -> vector<8x128xf32>
    %161 = vector.extract_strided_slice %155 {offsets = [0, 0], sizes = [8, 256], strides = [1, 1]} : vector<8x384xf32> to vector<8x256xf32>
    %162 = arith.addf %161, %158 : vector<8x256xf32>
    %163 = arith.negf %162 : vector<8x256xf32>
    %164 = math.exp %163 : vector<8x256xf32>
    %cst_76 = arith.constant 1.000000e+00 : f32
    %165 = vector.broadcast %cst_76 : f32 to vector<8x256xf32>
    %166 = arith.addf %165, %164 : vector<8x256xf32>
    %167 = arith.divf %165, %166 : vector<8x256xf32>
    %168 = vector.extract_strided_slice %167 {offsets = [0, 0], sizes = [8, 128], strides = [1, 1]} : vector<8x256xf32> to vector<8x128xf32>
    %169 = vector.extract_strided_slice %167 {offsets = [0, 128], sizes = [8, 128], strides = [1, 1]} : vector<8x256xf32> to vector<8x128xf32>
    %170 = vector.extract_strided_slice %155 {offsets = [0, 256], sizes = [8, 128], strides = [1, 1]} : vector<8x384xf32> to vector<8x128xf32>
    %171 = arith.addf %160, %13 : vector<8x128xf32>
    %172 = arith.mulf %168, %171 : vector<8x128xf32>
    %173 = arith.addf %170, %172 : vector<8x128xf32>
    %174 = math.tanh %173 : vector<8x128xf32>
    %cst_77 = arith.constant 1.000000e+00 : f32
    %175 = vector.broadcast %cst_77 : f32 to vector<8x128xf32>
    %176 = arith.subf %175, %169 : vector<8x128xf32>
    %177 = arith.mulf %176, %174 : vector<8x128xf32>
    %178 = arith.mulf %169, %151 : vector<8x128xf32>
    %179 = arith.addf %177, %178 : vector<8x128xf32>
    %c5 = arith.constant 5 : index
    %c0_78 = arith.constant 0 : index
    %c0_79 = arith.constant 0 : index
    %180 = vector.load %arg8[%c5, %c0_78, %c0_79] : memref<16x8x128xf32, #tpu.memory_space<vmem>>, vector<1x8x128xf32>
    %181 = vector.shape_cast %180 : vector<1x8x128xf32> to vector<8x128xf32>
    %182 = vector.shape_cast %179 : vector<8x128xf32> to vector<1x8x128xf32>
    tpu.vector_store %arg8[%c5, %c0_78, %c0_79], %182 {strides = array<i32>} : memref<16x8x128xf32, #tpu.memory_space<vmem>>, vector<1x8x128xf32>,
    %c48 = arith.constant 48 : index
    %c0_80 = arith.constant 0 : index
    %183 = vector.load %arg10[%c48, %c0_80] : memref<128x384xf32, #tpu.memory_space<vmem>>, vector<8x384xf32>
    %184 = arith.truncf %179 : vector<8x128xf32> to vector<8x128xbf16>
    %c0_81 = arith.constant 0 : index
    %c0_82 = arith.constant 0 : index
    %185 = vector.load %arg5[%c0_81, %c0_82] : memref<128x384xbf16, #tpu.memory_space<vmem>>, vector<128x256xbf16>
    %cst_83 = arith.constant dense<0.000000e+00> : vector<8x256xf32>
    %186 = tpu.matmul %184, %185, %cst_83 {dimension_numbers = #tpu.dot_dimension_numbers<[1], [0], [0], [1], [0, 0, 1, 1], [], []>} : vector<8x128xbf16>, vector<128x256xbf16>, vector<8x256xf32> -> vector<8x256xf32>
    %c0_84 = arith.constant 0 : index
    %c256_85 = arith.constant 256 : index
    %187 = vector.load %arg5[%c0_84, %c256_85] : memref<128x384xbf16, #tpu.memory_space<vmem>>, vector<128x128xbf16>
    %cst_86 = arith.constant dense<0.000000e+00> : vector<8x128xf32>
    %188 = tpu.matmul %184, %187, %cst_86 {dimension_numbers = #tpu.dot_dimension_numbers<[1], [0], [0], [1], [0, 0, 1, 1], [], []>} : vector<8x128xbf16>, vector<128x128xbf16>, vector<8x128xf32> -> vector<8x128xf32>
    %189 = vector.extract_strided_slice %183 {offsets = [0, 0], sizes = [8, 256], strides = [1, 1]} : vector<8x384xf32> to vector<8x256xf32>
    %190 = arith.addf %189, %186 : vector<8x256xf32>
    %191 = arith.negf %190 : vector<8x256xf32>
    %192 = math.exp %191 : vector<8x256xf32>
    %cst_87 = arith.constant 1.000000e+00 : f32
    %193 = vector.broadcast %cst_87 : f32 to vector<8x256xf32>
    %194 = arith.addf %193, %192 : vector<8x256xf32>
    %195 = arith.divf %193, %194 : vector<8x256xf32>
    %196 = vector.extract_strided_slice %195 {offsets = [0, 0], sizes = [8, 128], strides = [1, 1]} : vector<8x256xf32> to vector<8x128xf32>
    %197 = vector.extract_strided_slice %195 {offsets = [0, 128], sizes = [8, 128], strides = [1, 1]} : vector<8x256xf32> to vector<8x128xf32>
    %198 = vector.extract_strided_slice %183 {offsets = [0, 256], sizes = [8, 128], strides = [1, 1]} : vector<8x384xf32> to vector<8x128xf32>
    %199 = arith.addf %188, %13 : vector<8x128xf32>
    %200 = arith.mulf %196, %199 : vector<8x128xf32>
    %201 = arith.addf %198, %200 : vector<8x128xf32>
    %202 = math.tanh %201 : vector<8x128xf32>
    %cst_88 = arith.constant 1.000000e+00 : f32
    %203 = vector.broadcast %cst_88 : f32 to vector<8x128xf32>
    %204 = arith.subf %203, %197 : vector<8x128xf32>
    %205 = arith.mulf %204, %202 : vector<8x128xf32>
    %206 = arith.mulf %197, %179 : vector<8x128xf32>
    %207 = arith.addf %205, %206 : vector<8x128xf32>
    %c6 = arith.constant 6 : index
    %c0_89 = arith.constant 0 : index
    %c0_90 = arith.constant 0 : index
    %208 = vector.load %arg8[%c6, %c0_89, %c0_90] : memref<16x8x128xf32, #tpu.memory_space<vmem>>, vector<1x8x128xf32>
    %209 = vector.shape_cast %208 : vector<1x8x128xf32> to vector<8x128xf32>
    %210 = vector.shape_cast %207 : vector<8x128xf32> to vector<1x8x128xf32>
    tpu.vector_store %arg8[%c6, %c0_89, %c0_90], %210 {strides = array<i32>} : memref<16x8x128xf32, #tpu.memory_space<vmem>>, vector<1x8x128xf32>,
    %c56 = arith.constant 56 : index
    %c0_91 = arith.constant 0 : index
    %211 = vector.load %arg10[%c56, %c0_91] : memref<128x384xf32, #tpu.memory_space<vmem>>, vector<8x384xf32>
    %212 = arith.truncf %207 : vector<8x128xf32> to vector<8x128xbf16>
    %c0_92 = arith.constant 0 : index
    %c0_93 = arith.constant 0 : index
    %213 = vector.load %arg5[%c0_92, %c0_93] : memref<128x384xbf16, #tpu.memory_space<vmem>>, vector<128x256xbf16>
    %cst_94 = arith.constant dense<0.000000e+00> : vector<8x256xf32>
    %214 = tpu.matmul %212, %213, %cst_94 {dimension_numbers = #tpu.dot_dimension_numbers<[1], [0], [0], [1], [0, 0, 1, 1], [], []>} : vector<8x128xbf16>, vector<128x256xbf16>, vector<8x256xf32> -> vector<8x256xf32>
    %c0_95 = arith.constant 0 : index
    %c256_96 = arith.constant 256 : index
    %215 = vector.load %arg5[%c0_95, %c256_96] : memref<128x384xbf16, #tpu.memory_space<vmem>>, vector<128x128xbf16>
    %cst_97 = arith.constant dense<0.000000e+00> : vector<8x128xf32>
    %216 = tpu.matmul %212, %215, %cst_97 {dimension_numbers = #tpu.dot_dimension_numbers<[1], [0], [0], [1], [0, 0, 1, 1], [], []>} : vector<8x128xbf16>, vector<128x128xbf16>, vector<8x128xf32> -> vector<8x128xf32>
    %217 = vector.extract_strided_slice %211 {offsets = [0, 0], sizes = [8, 256], strides = [1, 1]} : vector<8x384xf32> to vector<8x256xf32>
    %218 = arith.addf %217, %214 : vector<8x256xf32>
    %219 = arith.negf %218 : vector<8x256xf32>
    %220 = math.exp %219 : vector<8x256xf32>
    %cst_98 = arith.constant 1.000000e+00 : f32
    %221 = vector.broadcast %cst_98 : f32 to vector<8x256xf32>
    %222 = arith.addf %221, %220 : vector<8x256xf32>
    %223 = arith.divf %221, %222 : vector<8x256xf32>
    %224 = vector.extract_strided_slice %223 {offsets = [0, 0], sizes = [8, 128], strides = [1, 1]} : vector<8x256xf32> to vector<8x128xf32>
    %225 = vector.extract_strided_slice %223 {offsets = [0, 128], sizes = [8, 128], strides = [1, 1]} : vector<8x256xf32> to vector<8x128xf32>
    %226 = vector.extract_strided_slice %211 {offsets = [0, 256], sizes = [8, 128], strides = [1, 1]} : vector<8x384xf32> to vector<8x128xf32>
    %227 = arith.addf %216, %13 : vector<8x128xf32>
    %228 = arith.mulf %224, %227 : vector<8x128xf32>
    %229 = arith.addf %226, %228 : vector<8x128xf32>
    %230 = math.tanh %229 : vector<8x128xf32>
    %cst_99 = arith.constant 1.000000e+00 : f32
    %231 = vector.broadcast %cst_99 : f32 to vector<8x128xf32>
    %232 = arith.subf %231, %225 : vector<8x128xf32>
    %233 = arith.mulf %232, %230 : vector<8x128xf32>
    %234 = arith.mulf %225, %207 : vector<8x128xf32>
    %235 = arith.addf %233, %234 : vector<8x128xf32>
    %c7 = arith.constant 7 : index
    %c0_100 = arith.constant 0 : index
    %c0_101 = arith.constant 0 : index
    %236 = vector.load %arg8[%c7, %c0_100, %c0_101] : memref<16x8x128xf32, #tpu.memory_space<vmem>>, vector<1x8x128xf32>
    %237 = vector.shape_cast %236 : vector<1x8x128xf32> to vector<8x128xf32>
    %238 = vector.shape_cast %235 : vector<8x128xf32> to vector<1x8x128xf32>
    tpu.vector_store %arg8[%c7, %c0_100, %c0_101], %238 {strides = array<i32>} : memref<16x8x128xf32, #tpu.memory_space<vmem>>, vector<1x8x128xf32>,
    %c64 = arith.constant 64 : index
    %c0_102 = arith.constant 0 : index
    %239 = vector.load %arg10[%c64, %c0_102] : memref<128x384xf32, #tpu.memory_space<vmem>>, vector<8x384xf32>
    %240 = arith.truncf %235 : vector<8x128xf32> to vector<8x128xbf16>
    %c0_103 = arith.constant 0 : index
    %c0_104 = arith.constant 0 : index
    %241 = vector.load %arg5[%c0_103, %c0_104] : memref<128x384xbf16, #tpu.memory_space<vmem>>, vector<128x256xbf16>
    %cst_105 = arith.constant dense<0.000000e+00> : vector<8x256xf32>
    %242 = tpu.matmul %240, %241, %cst_105 {dimension_numbers = #tpu.dot_dimension_numbers<[1], [0], [0], [1], [0, 0, 1, 1], [], []>} : vector<8x128xbf16>, vector<128x256xbf16>, vector<8x256xf32> -> vector<8x256xf32>
    %c0_106 = arith.constant 0 : index
    %c256_107 = arith.constant 256 : index
    %243 = vector.load %arg5[%c0_106, %c256_107] : memref<128x384xbf16, #tpu.memory_space<vmem>>, vector<128x128xbf16>
    %cst_108 = arith.constant dense<0.000000e+00> : vector<8x128xf32>
    %244 = tpu.matmul %240, %243, %cst_108 {dimension_numbers = #tpu.dot_dimension_numbers<[1], [0], [0], [1], [0, 0, 1, 1], [], []>} : vector<8x128xbf16>, vector<128x128xbf16>, vector<8x128xf32> -> vector<8x128xf32>
    %245 = vector.extract_strided_slice %239 {offsets = [0, 0], sizes = [8, 256], strides = [1, 1]} : vector<8x384xf32> to vector<8x256xf32>
    %246 = arith.addf %245, %242 : vector<8x256xf32>
    %247 = arith.negf %246 : vector<8x256xf32>
    %248 = math.exp %247 : vector<8x256xf32>
    %cst_109 = arith.constant 1.000000e+00 : f32
    %249 = vector.broadcast %cst_109 : f32 to vector<8x256xf32>
    %250 = arith.addf %249, %248 : vector<8x256xf32>
    %251 = arith.divf %249, %250 : vector<8x256xf32>
    %252 = vector.extract_strided_slice %251 {offsets = [0, 0], sizes = [8, 128], strides = [1, 1]} : vector<8x256xf32> to vector<8x128xf32>
    %253 = vector.extract_strided_slice %251 {offsets = [0, 128], sizes = [8, 128], strides = [1, 1]} : vector<8x256xf32> to vector<8x128xf32>
    %254 = vector.extract_strided_slice %239 {offsets = [0, 256], sizes = [8, 128], strides = [1, 1]} : vector<8x384xf32> to vector<8x128xf32>
    %255 = arith.addf %244, %13 : vector<8x128xf32>
    %256 = arith.mulf %252, %255 : vector<8x128xf32>
    %257 = arith.addf %254, %256 : vector<8x128xf32>
    %258 = math.tanh %257 : vector<8x128xf32>
    %cst_110 = arith.constant 1.000000e+00 : f32
    %259 = vector.broadcast %cst_110 : f32 to vector<8x128xf32>
    %260 = arith.subf %259, %253 : vector<8x128xf32>
    %261 = arith.mulf %260, %258 : vector<8x128xf32>
    %262 = arith.mulf %253, %235 : vector<8x128xf32>
    %263 = arith.addf %261, %262 : vector<8x128xf32>
    %c8_111 = arith.constant 8 : index
    %c0_112 = arith.constant 0 : index
    %c0_113 = arith.constant 0 : index
    %264 = vector.load %arg8[%c8_111, %c0_112, %c0_113] : memref<16x8x128xf32, #tpu.memory_space<vmem>>, vector<1x8x128xf32>
    %265 = vector.shape_cast %264 : vector<1x8x128xf32> to vector<8x128xf32>
    %266 = vector.shape_cast %263 : vector<8x128xf32> to vector<1x8x128xf32>
    tpu.vector_store %arg8[%c8_111, %c0_112, %c0_113], %266 {strides = array<i32>} : memref<16x8x128xf32, #tpu.memory_space<vmem>>, vector<1x8x128xf32>,
    %c72 = arith.constant 72 : index
    %c0_114 = arith.constant 0 : index
    %267 = vector.load %arg10[%c72, %c0_114] : memref<128x384xf32, #tpu.memory_space<vmem>>, vector<8x384xf32>
    %268 = arith.truncf %263 : vector<8x128xf32> to vector<8x128xbf16>
    %c0_115 = arith.constant 0 : index
    %c0_116 = arith.constant 0 : index
    %269 = vector.load %arg5[%c0_115, %c0_116] : memref<128x384xbf16, #tpu.memory_space<vmem>>, vector<128x256xbf16>
    %cst_117 = arith.constant dense<0.000000e+00> : vector<8x256xf32>
    %270 = tpu.matmul %268, %269, %cst_117 {dimension_numbers = #tpu.dot_dimension_numbers<[1], [0], [0], [1], [0, 0, 1, 1], [], []>} : vector<8x128xbf16>, vector<128x256xbf16>, vector<8x256xf32> -> vector<8x256xf32>
    %c0_118 = arith.constant 0 : index
    %c256_119 = arith.constant 256 : index
    %271 = vector.load %arg5[%c0_118, %c256_119] : memref<128x384xbf16, #tpu.memory_space<vmem>>, vector<128x128xbf16>
    %cst_120 = arith.constant dense<0.000000e+00> : vector<8x128xf32>
    %272 = tpu.matmul %268, %271, %cst_120 {dimension_numbers = #tpu.dot_dimension_numbers<[1], [0], [0], [1], [0, 0, 1, 1], [], []>} : vector<8x128xbf16>, vector<128x128xbf16>, vector<8x128xf32> -> vector<8x128xf32>
    %273 = vector.extract_strided_slice %267 {offsets = [0, 0], sizes = [8, 256], strides = [1, 1]} : vector<8x384xf32> to vector<8x256xf32>
    %274 = arith.addf %273, %270 : vector<8x256xf32>
    %275 = arith.negf %274 : vector<8x256xf32>
    %276 = math.exp %275 : vector<8x256xf32>
    %cst_121 = arith.constant 1.000000e+00 : f32
    %277 = vector.broadcast %cst_121 : f32 to vector<8x256xf32>
    %278 = arith.addf %277, %276 : vector<8x256xf32>
    %279 = arith.divf %277, %278 : vector<8x256xf32>
    %280 = vector.extract_strided_slice %279 {offsets = [0, 0], sizes = [8, 128], strides = [1, 1]} : vector<8x256xf32> to vector<8x128xf32>
    %281 = vector.extract_strided_slice %279 {offsets = [0, 128], sizes = [8, 128], strides = [1, 1]} : vector<8x256xf32> to vector<8x128xf32>
    %282 = vector.extract_strided_slice %267 {offsets = [0, 256], sizes = [8, 128], strides = [1, 1]} : vector<8x384xf32> to vector<8x128xf32>
    %283 = arith.addf %272, %13 : vector<8x128xf32>
    %284 = arith.mulf %280, %283 : vector<8x128xf32>
    %285 = arith.addf %282, %284 : vector<8x128xf32>
    %286 = math.tanh %285 : vector<8x128xf32>
    %cst_122 = arith.constant 1.000000e+00 : f32
    %287 = vector.broadcast %cst_122 : f32 to vector<8x128xf32>
    %288 = arith.subf %287, %281 : vector<8x128xf32>
    %289 = arith.mulf %288, %286 : vector<8x128xf32>
    %290 = arith.mulf %281, %263 : vector<8x128xf32>
    %291 = arith.addf %289, %290 : vector<8x128xf32>
    %c9 = arith.constant 9 : index
    %c0_123 = arith.constant 0 : index
    %c0_124 = arith.constant 0 : index
    %292 = vector.load %arg8[%c9, %c0_123, %c0_124] : memref<16x8x128xf32, #tpu.memory_space<vmem>>, vector<1x8x128xf32>
    %293 = vector.shape_cast %292 : vector<1x8x128xf32> to vector<8x128xf32>
    %294 = vector.shape_cast %291 : vector<8x128xf32> to vector<1x8x128xf32>
    tpu.vector_store %arg8[%c9, %c0_123, %c0_124], %294 {strides = array<i32>} : memref<16x8x128xf32, #tpu.memory_space<vmem>>, vector<1x8x128xf32>,
    %c80 = arith.constant 80 : index
    %c0_125 = arith.constant 0 : index
    %295 = vector.load %arg10[%c80, %c0_125] : memref<128x384xf32, #tpu.memory_space<vmem>>, vector<8x384xf32>
    %296 = arith.truncf %291 : vector<8x128xf32> to vector<8x128xbf16>
    %c0_126 = arith.constant 0 : index
    %c0_127 = arith.constant 0 : index
    %297 = vector.load %arg5[%c0_126, %c0_127] : memref<128x384xbf16, #tpu.memory_space<vmem>>, vector<128x256xbf16>
    %cst_128 = arith.constant dense<0.000000e+00> : vector<8x256xf32>
    %298 = tpu.matmul %296, %297, %cst_128 {dimension_numbers = #tpu.dot_dimension_numbers<[1], [0], [0], [1], [0, 0, 1, 1], [], []>} : vector<8x128xbf16>, vector<128x256xbf16>, vector<8x256xf32> -> vector<8x256xf32>
    %c0_129 = arith.constant 0 : index
    %c256_130 = arith.constant 256 : index
    %299 = vector.load %arg5[%c0_129, %c256_130] : memref<128x384xbf16, #tpu.memory_space<vmem>>, vector<128x128xbf16>
    %cst_131 = arith.constant dense<0.000000e+00> : vector<8x128xf32>
    %300 = tpu.matmul %296, %299, %cst_131 {dimension_numbers = #tpu.dot_dimension_numbers<[1], [0], [0], [1], [0, 0, 1, 1], [], []>} : vector<8x128xbf16>, vector<128x128xbf16>, vector<8x128xf32> -> vector<8x128xf32>
    %301 = vector.extract_strided_slice %295 {offsets = [0, 0], sizes = [8, 256], strides = [1, 1]} : vector<8x384xf32> to vector<8x256xf32>
    %302 = arith.addf %301, %298 : vector<8x256xf32>
    %303 = arith.negf %302 : vector<8x256xf32>
    %304 = math.exp %303 : vector<8x256xf32>
    %cst_132 = arith.constant 1.000000e+00 : f32
    %305 = vector.broadcast %cst_132 : f32 to vector<8x256xf32>
    %306 = arith.addf %305, %304 : vector<8x256xf32>
    %307 = arith.divf %305, %306 : vector<8x256xf32>
    %308 = vector.extract_strided_slice %307 {offsets = [0, 0], sizes = [8, 128], strides = [1, 1]} : vector<8x256xf32> to vector<8x128xf32>
    %309 = vector.extract_strided_slice %307 {offsets = [0, 128], sizes = [8, 128], strides = [1, 1]} : vector<8x256xf32> to vector<8x128xf32>
    %310 = vector.extract_strided_slice %295 {offsets = [0, 256], sizes = [8, 128], strides = [1, 1]} : vector<8x384xf32> to vector<8x128xf32>
    %311 = arith.addf %300, %13 : vector<8x128xf32>
    %312 = arith.mulf %308, %311 : vector<8x128xf32>
    %313 = arith.addf %310, %312 : vector<8x128xf32>
    %314 = math.tanh %313 : vector<8x128xf32>
    %cst_133 = arith.constant 1.000000e+00 : f32
    %315 = vector.broadcast %cst_133 : f32 to vector<8x128xf32>
    %316 = arith.subf %315, %309 : vector<8x128xf32>
    %317 = arith.mulf %316, %314 : vector<8x128xf32>
    %318 = arith.mulf %309, %291 : vector<8x128xf32>
    %319 = arith.addf %317, %318 : vector<8x128xf32>
    %c10 = arith.constant 10 : index
    %c0_134 = arith.constant 0 : index
    %c0_135 = arith.constant 0 : index
    %320 = vector.load %arg8[%c10, %c0_134, %c0_135] : memref<16x8x128xf32, #tpu.memory_space<vmem>>, vector<1x8x128xf32>
    %321 = vector.shape_cast %320 : vector<1x8x128xf32> to vector<8x128xf32>
    %322 = vector.shape_cast %319 : vector<8x128xf32> to vector<1x8x128xf32>
    tpu.vector_store %arg8[%c10, %c0_134, %c0_135], %322 {strides = array<i32>} : memref<16x8x128xf32, #tpu.memory_space<vmem>>, vector<1x8x128xf32>,
    %c88 = arith.constant 88 : index
    %c0_136 = arith.constant 0 : index
    %323 = vector.load %arg10[%c88, %c0_136] : memref<128x384xf32, #tpu.memory_space<vmem>>, vector<8x384xf32>
    %324 = arith.truncf %319 : vector<8x128xf32> to vector<8x128xbf16>
    %c0_137 = arith.constant 0 : index
    %c0_138 = arith.constant 0 : index
    %325 = vector.load %arg5[%c0_137, %c0_138] : memref<128x384xbf16, #tpu.memory_space<vmem>>, vector<128x256xbf16>
    %cst_139 = arith.constant dense<0.000000e+00> : vector<8x256xf32>
    %326 = tpu.matmul %324, %325, %cst_139 {dimension_numbers = #tpu.dot_dimension_numbers<[1], [0], [0], [1], [0, 0, 1, 1], [], []>} : vector<8x128xbf16>, vector<128x256xbf16>, vector<8x256xf32> -> vector<8x256xf32>
    %c0_140 = arith.constant 0 : index
    %c256_141 = arith.constant 256 : index
    %327 = vector.load %arg5[%c0_140, %c256_141] : memref<128x384xbf16, #tpu.memory_space<vmem>>, vector<128x128xbf16>
    %cst_142 = arith.constant dense<0.000000e+00> : vector<8x128xf32>
    %328 = tpu.matmul %324, %327, %cst_142 {dimension_numbers = #tpu.dot_dimension_numbers<[1], [0], [0], [1], [0, 0, 1, 1], [], []>} : vector<8x128xbf16>, vector<128x128xbf16>, vector<8x128xf32> -> vector<8x128xf32>
    %329 = vector.extract_strided_slice %323 {offsets = [0, 0], sizes = [8, 256], strides = [1, 1]} : vector<8x384xf32> to vector<8x256xf32>
    %330 = arith.addf %329, %326 : vector<8x256xf32>
    %331 = arith.negf %330 : vector<8x256xf32>
    %332 = math.exp %331 : vector<8x256xf32>
    %cst_143 = arith.constant 1.000000e+00 : f32
    %333 = vector.broadcast %cst_143 : f32 to vector<8x256xf32>
    %334 = arith.addf %333, %332 : vector<8x256xf32>
    %335 = arith.divf %333, %334 : vector<8x256xf32>
    %336 = vector.extract_strided_slice %335 {offsets = [0, 0], sizes = [8, 128], strides = [1, 1]} : vector<8x256xf32> to vector<8x128xf32>
    %337 = vector.extract_strided_slice %335 {offsets = [0, 128], sizes = [8, 128], strides = [1, 1]} : vector<8x256xf32> to vector<8x128xf32>
    %338 = vector.extract_strided_slice %323 {offsets = [0, 256], sizes = [8, 128], strides = [1, 1]} : vector<8x384xf32> to vector<8x128xf32>
    %339 = arith.addf %328, %13 : vector<8x128xf32>
    %340 = arith.mulf %336, %339 : vector<8x128xf32>
    %341 = arith.addf %338, %340 : vector<8x128xf32>
    %342 = math.tanh %341 : vector<8x128xf32>
    %cst_144 = arith.constant 1.000000e+00 : f32
    %343 = vector.broadcast %cst_144 : f32 to vector<8x128xf32>
    %344 = arith.subf %343, %337 : vector<8x128xf32>
    %345 = arith.mulf %344, %342 : vector<8x128xf32>
    %346 = arith.mulf %337, %319 : vector<8x128xf32>
    %347 = arith.addf %345, %346 : vector<8x128xf32>
    %c11 = arith.constant 11 : index
    %c0_145 = arith.constant 0 : index
    %c0_146 = arith.constant 0 : index
    %348 = vector.load %arg8[%c11, %c0_145, %c0_146] : memref<16x8x128xf32, #tpu.memory_space<vmem>>, vector<1x8x128xf32>
    %349 = vector.shape_cast %348 : vector<1x8x128xf32> to vector<8x128xf32>
    %350 = vector.shape_cast %347 : vector<8x128xf32> to vector<1x8x128xf32>
    tpu.vector_store %arg8[%c11, %c0_145, %c0_146], %350 {strides = array<i32>} : memref<16x8x128xf32, #tpu.memory_space<vmem>>, vector<1x8x128xf32>,
    %c96 = arith.constant 96 : index
    %c0_147 = arith.constant 0 : index
    %351 = vector.load %arg10[%c96, %c0_147] : memref<128x384xf32, #tpu.memory_space<vmem>>, vector<8x384xf32>
    %352 = arith.truncf %347 : vector<8x128xf32> to vector<8x128xbf16>
    %c0_148 = arith.constant 0 : index
    %c0_149 = arith.constant 0 : index
    %353 = vector.load %arg5[%c0_148, %c0_149] : memref<128x384xbf16, #tpu.memory_space<vmem>>, vector<128x256xbf16>
    %cst_150 = arith.constant dense<0.000000e+00> : vector<8x256xf32>
    %354 = tpu.matmul %352, %353, %cst_150 {dimension_numbers = #tpu.dot_dimension_numbers<[1], [0], [0], [1], [0, 0, 1, 1], [], []>} : vector<8x128xbf16>, vector<128x256xbf16>, vector<8x256xf32> -> vector<8x256xf32>
    %c0_151 = arith.constant 0 : index
    %c256_152 = arith.constant 256 : index
    %355 = vector.load %arg5[%c0_151, %c256_152] : memref<128x384xbf16, #tpu.memory_space<vmem>>, vector<128x128xbf16>
    %cst_153 = arith.constant dense<0.000000e+00> : vector<8x128xf32>
    %356 = tpu.matmul %352, %355, %cst_153 {dimension_numbers = #tpu.dot_dimension_numbers<[1], [0], [0], [1], [0, 0, 1, 1], [], []>} : vector<8x128xbf16>, vector<128x128xbf16>, vector<8x128xf32> -> vector<8x128xf32>
    %357 = vector.extract_strided_slice %351 {offsets = [0, 0], sizes = [8, 256], strides = [1, 1]} : vector<8x384xf32> to vector<8x256xf32>
    %358 = arith.addf %357, %354 : vector<8x256xf32>
    %359 = arith.negf %358 : vector<8x256xf32>
    %360 = math.exp %359 : vector<8x256xf32>
    %cst_154 = arith.constant 1.000000e+00 : f32
    %361 = vector.broadcast %cst_154 : f32 to vector<8x256xf32>
    %362 = arith.addf %361, %360 : vector<8x256xf32>
    %363 = arith.divf %361, %362 : vector<8x256xf32>
    %364 = vector.extract_strided_slice %363 {offsets = [0, 0], sizes = [8, 128], strides = [1, 1]} : vector<8x256xf32> to vector<8x128xf32>
    %365 = vector.extract_strided_slice %363 {offsets = [0, 128], sizes = [8, 128], strides = [1, 1]} : vector<8x256xf32> to vector<8x128xf32>
    %366 = vector.extract_strided_slice %351 {offsets = [0, 256], sizes = [8, 128], strides = [1, 1]} : vector<8x384xf32> to vector<8x128xf32>
    %367 = arith.addf %356, %13 : vector<8x128xf32>
    %368 = arith.mulf %364, %367 : vector<8x128xf32>
    %369 = arith.addf %366, %368 : vector<8x128xf32>
    %370 = math.tanh %369 : vector<8x128xf32>
    %cst_155 = arith.constant 1.000000e+00 : f32
    %371 = vector.broadcast %cst_155 : f32 to vector<8x128xf32>
    %372 = arith.subf %371, %365 : vector<8x128xf32>
    %373 = arith.mulf %372, %370 : vector<8x128xf32>
    %374 = arith.mulf %365, %347 : vector<8x128xf32>
    %375 = arith.addf %373, %374 : vector<8x128xf32>
    %c12 = arith.constant 12 : index
    %c0_156 = arith.constant 0 : index
    %c0_157 = arith.constant 0 : index
    %376 = vector.load %arg8[%c12, %c0_156, %c0_157] : memref<16x8x128xf32, #tpu.memory_space<vmem>>, vector<1x8x128xf32>
    %377 = vector.shape_cast %376 : vector<1x8x128xf32> to vector<8x128xf32>
    %378 = vector.shape_cast %375 : vector<8x128xf32> to vector<1x8x128xf32>
    tpu.vector_store %arg8[%c12, %c0_156, %c0_157], %378 {strides = array<i32>} : memref<16x8x128xf32, #tpu.memory_space<vmem>>, vector<1x8x128xf32>,
    %c104 = arith.constant 104 : index
    %c0_158 = arith.constant 0 : index
    %379 = vector.load %arg10[%c104, %c0_158] : memref<128x384xf32, #tpu.memory_space<vmem>>, vector<8x384xf32>
    %380 = arith.truncf %375 : vector<8x128xf32> to vector<8x128xbf16>
    %c0_159 = arith.constant 0 : index
    %c0_160 = arith.constant 0 : index
    %381 = vector.load %arg5[%c0_159, %c0_160] : memref<128x384xbf16, #tpu.memory_space<vmem>>, vector<128x256xbf16>
    %cst_161 = arith.constant dense<0.000000e+00> : vector<8x256xf32>
    %382 = tpu.matmul %380, %381, %cst_161 {dimension_numbers = #tpu.dot_dimension_numbers<[1], [0], [0], [1], [0, 0, 1, 1], [], []>} : vector<8x128xbf16>, vector<128x256xbf16>, vector<8x256xf32> -> vector<8x256xf32>
    %c0_162 = arith.constant 0 : index
    %c256_163 = arith.constant 256 : index
    %383 = vector.load %arg5[%c0_162, %c256_163] : memref<128x384xbf16, #tpu.memory_space<vmem>>, vector<128x128xbf16>
    %cst_164 = arith.constant dense<0.000000e+00> : vector<8x128xf32>
    %384 = tpu.matmul %380, %383, %cst_164 {dimension_numbers = #tpu.dot_dimension_numbers<[1], [0], [0], [1], [0, 0, 1, 1], [], []>} : vector<8x128xbf16>, vector<128x128xbf16>, vector<8x128xf32> -> vector<8x128xf32>
    %385 = vector.extract_strided_slice %379 {offsets = [0, 0], sizes = [8, 256], strides = [1, 1]} : vector<8x384xf32> to vector<8x256xf32>
    %386 = arith.addf %385, %382 : vector<8x256xf32>
    %387 = arith.negf %386 : vector<8x256xf32>
    %388 = math.exp %387 : vector<8x256xf32>
    %cst_165 = arith.constant 1.000000e+00 : f32
    %389 = vector.broadcast %cst_165 : f32 to vector<8x256xf32>
    %390 = arith.addf %389, %388 : vector<8x256xf32>
    %391 = arith.divf %389, %390 : vector<8x256xf32>
    %392 = vector.extract_strided_slice %391 {offsets = [0, 0], sizes = [8, 128], strides = [1, 1]} : vector<8x256xf32> to vector<8x128xf32>
    %393 = vector.extract_strided_slice %391 {offsets = [0, 128], sizes = [8, 128], strides = [1, 1]} : vector<8x256xf32> to vector<8x128xf32>
    %394 = vector.extract_strided_slice %379 {offsets = [0, 256], sizes = [8, 128], strides = [1, 1]} : vector<8x384xf32> to vector<8x128xf32>
    %395 = arith.addf %384, %13 : vector<8x128xf32>
    %396 = arith.mulf %392, %395 : vector<8x128xf32>
    %397 = arith.addf %394, %396 : vector<8x128xf32>
    %398 = math.tanh %397 : vector<8x128xf32>
    %cst_166 = arith.constant 1.000000e+00 : f32
    %399 = vector.broadcast %cst_166 : f32 to vector<8x128xf32>
    %400 = arith.subf %399, %393 : vector<8x128xf32>
    %401 = arith.mulf %400, %398 : vector<8x128xf32>
    %402 = arith.mulf %393, %375 : vector<8x128xf32>
    %403 = arith.addf %401, %402 : vector<8x128xf32>
    %c13 = arith.constant 13 : index
    %c0_167 = arith.constant 0 : index
    %c0_168 = arith.constant 0 : index
    %404 = vector.load %arg8[%c13, %c0_167, %c0_168] : memref<16x8x128xf32, #tpu.memory_space<vmem>>, vector<1x8x128xf32>
    %405 = vector.shape_cast %404 : vector<1x8x128xf32> to vector<8x128xf32>
    %406 = vector.shape_cast %403 : vector<8x128xf32> to vector<1x8x128xf32>
    tpu.vector_store %arg8[%c13, %c0_167, %c0_168], %406 {strides = array<i32>} : memref<16x8x128xf32, #tpu.memory_space<vmem>>, vector<1x8x128xf32>,
    %c112 = arith.constant 112 : index
    %c0_169 = arith.constant 0 : index
    %407 = vector.load %arg10[%c112, %c0_169] : memref<128x384xf32, #tpu.memory_space<vmem>>, vector<8x384xf32>
    %408 = arith.truncf %403 : vector<8x128xf32> to vector<8x128xbf16>
    %c0_170 = arith.constant 0 : index
    %c0_171 = arith.constant 0 : index
    %409 = vector.load %arg5[%c0_170, %c0_171] : memref<128x384xbf16, #tpu.memory_space<vmem>>, vector<128x256xbf16>
    %cst_172 = arith.constant dense<0.000000e+00> : vector<8x256xf32>
    %410 = tpu.matmul %408, %409, %cst_172 {dimension_numbers = #tpu.dot_dimension_numbers<[1], [0], [0], [1], [0, 0, 1, 1], [], []>} : vector<8x128xbf16>, vector<128x256xbf16>, vector<8x256xf32> -> vector<8x256xf32>
    %c0_173 = arith.constant 0 : index
    %c256_174 = arith.constant 256 : index
    %411 = vector.load %arg5[%c0_173, %c256_174] : memref<128x384xbf16, #tpu.memory_space<vmem>>, vector<128x128xbf16>
    %cst_175 = arith.constant dense<0.000000e+00> : vector<8x128xf32>
    %412 = tpu.matmul %408, %411, %cst_175 {dimension_numbers = #tpu.dot_dimension_numbers<[1], [0], [0], [1], [0, 0, 1, 1], [], []>} : vector<8x128xbf16>, vector<128x128xbf16>, vector<8x128xf32> -> vector<8x128xf32>
    %413 = vector.extract_strided_slice %407 {offsets = [0, 0], sizes = [8, 256], strides = [1, 1]} : vector<8x384xf32> to vector<8x256xf32>
    %414 = arith.addf %413, %410 : vector<8x256xf32>
    %415 = arith.negf %414 : vector<8x256xf32>
    %416 = math.exp %415 : vector<8x256xf32>
    %cst_176 = arith.constant 1.000000e+00 : f32
    %417 = vector.broadcast %cst_176 : f32 to vector<8x256xf32>
    %418 = arith.addf %417, %416 : vector<8x256xf32>
    %419 = arith.divf %417, %418 : vector<8x256xf32>
    %420 = vector.extract_strided_slice %419 {offsets = [0, 0], sizes = [8, 128], strides = [1, 1]} : vector<8x256xf32> to vector<8x128xf32>
    %421 = vector.extract_strided_slice %419 {offsets = [0, 128], sizes = [8, 128], strides = [1, 1]} : vector<8x256xf32> to vector<8x128xf32>
    %422 = vector.extract_strided_slice %407 {offsets = [0, 256], sizes = [8, 128], strides = [1, 1]} : vector<8x384xf32> to vector<8x128xf32>
    %423 = arith.addf %412, %13 : vector<8x128xf32>
    %424 = arith.mulf %420, %423 : vector<8x128xf32>
    %425 = arith.addf %422, %424 : vector<8x128xf32>
    %426 = math.tanh %425 : vector<8x128xf32>
    %cst_177 = arith.constant 1.000000e+00 : f32
    %427 = vector.broadcast %cst_177 : f32 to vector<8x128xf32>
    %428 = arith.subf %427, %421 : vector<8x128xf32>
    %429 = arith.mulf %428, %426 : vector<8x128xf32>
    %430 = arith.mulf %421, %403 : vector<8x128xf32>
    %431 = arith.addf %429, %430 : vector<8x128xf32>
    %c14 = arith.constant 14 : index
    %c0_178 = arith.constant 0 : index
    %c0_179 = arith.constant 0 : index
    %432 = vector.load %arg8[%c14, %c0_178, %c0_179] : memref<16x8x128xf32, #tpu.memory_space<vmem>>, vector<1x8x128xf32>
    %433 = vector.shape_cast %432 : vector<1x8x128xf32> to vector<8x128xf32>
    %434 = vector.shape_cast %431 : vector<8x128xf32> to vector<1x8x128xf32>
    tpu.vector_store %arg8[%c14, %c0_178, %c0_179], %434 {strides = array<i32>} : memref<16x8x128xf32, #tpu.memory_space<vmem>>, vector<1x8x128xf32>,
    %c120 = arith.constant 120 : index
    %c0_180 = arith.constant 0 : index
    %435 = vector.load %arg10[%c120, %c0_180] : memref<128x384xf32, #tpu.memory_space<vmem>>, vector<8x384xf32>
    %436 = arith.truncf %431 : vector<8x128xf32> to vector<8x128xbf16>
    %c0_181 = arith.constant 0 : index
    %c0_182 = arith.constant 0 : index
    %437 = vector.load %arg5[%c0_181, %c0_182] : memref<128x384xbf16, #tpu.memory_space<vmem>>, vector<128x256xbf16>
    %cst_183 = arith.constant dense<0.000000e+00> : vector<8x256xf32>
    %438 = tpu.matmul %436, %437, %cst_183 {dimension_numbers = #tpu.dot_dimension_numbers<[1], [0], [0], [1], [0, 0, 1, 1], [], []>} : vector<8x128xbf16>, vector<128x256xbf16>, vector<8x256xf32> -> vector<8x256xf32>
    %c0_184 = arith.constant 0 : index
    %c256_185 = arith.constant 256 : index
    %439 = vector.load %arg5[%c0_184, %c256_185] : memref<128x384xbf16, #tpu.memory_space<vmem>>, vector<128x128xbf16>
    %cst_186 = arith.constant dense<0.000000e+00> : vector<8x128xf32>
    %440 = tpu.matmul %436, %439, %cst_186 {dimension_numbers = #tpu.dot_dimension_numbers<[1], [0], [0], [1], [0, 0, 1, 1], [], []>} : vector<8x128xbf16>, vector<128x128xbf16>, vector<8x128xf32> -> vector<8x128xf32>
    %441 = vector.extract_strided_slice %435 {offsets = [0, 0], sizes = [8, 256], strides = [1, 1]} : vector<8x384xf32> to vector<8x256xf32>
    %442 = arith.addf %441, %438 : vector<8x256xf32>
    %443 = arith.negf %442 : vector<8x256xf32>
    %444 = math.exp %443 : vector<8x256xf32>
    %cst_187 = arith.constant 1.000000e+00 : f32
    %445 = vector.broadcast %cst_187 : f32 to vector<8x256xf32>
    %446 = arith.addf %445, %444 : vector<8x256xf32>
    %447 = arith.divf %445, %446 : vector<8x256xf32>
    %448 = vector.extract_strided_slice %447 {offsets = [0, 0], sizes = [8, 128], strides = [1, 1]} : vector<8x256xf32> to vector<8x128xf32>
    %449 = vector.extract_strided_slice %447 {offsets = [0, 128], sizes = [8, 128], strides = [1, 1]} : vector<8x256xf32> to vector<8x128xf32>
    %450 = vector.extract_strided_slice %435 {offsets = [0, 256], sizes = [8, 128], strides = [1, 1]} : vector<8x384xf32> to vector<8x128xf32>
    %451 = arith.addf %440, %13 : vector<8x128xf32>
    %452 = arith.mulf %448, %451 : vector<8x128xf32>
    %453 = arith.addf %450, %452 : vector<8x128xf32>
    %454 = math.tanh %453 : vector<8x128xf32>
    %cst_188 = arith.constant 1.000000e+00 : f32
    %455 = vector.broadcast %cst_188 : f32 to vector<8x128xf32>
    %456 = arith.subf %455, %449 : vector<8x128xf32>
    %457 = arith.mulf %456, %454 : vector<8x128xf32>
    %458 = arith.mulf %449, %431 : vector<8x128xf32>
    %459 = arith.addf %457, %458 : vector<8x128xf32>
    %c15 = arith.constant 15 : index
    %c0_189 = arith.constant 0 : index
    %c0_190 = arith.constant 0 : index
    %460 = vector.load %arg8[%c15, %c0_189, %c0_190] : memref<16x8x128xf32, #tpu.memory_space<vmem>>, vector<1x8x128xf32>
    %461 = vector.shape_cast %460 : vector<1x8x128xf32> to vector<8x128xf32>
    %462 = vector.shape_cast %459 : vector<8x128xf32> to vector<1x8x128xf32>
    tpu.vector_store %arg8[%c15, %c0_189, %c0_190], %462 {strides = array<i32>} : memref<16x8x128xf32, #tpu.memory_space<vmem>>, vector<1x8x128xf32>,
    %c0_191 = arith.constant 0 : index
    %c0_192 = arith.constant 0 : index
    %463 = vector.load %arg9[%c0_191, %c0_192] : memref<8x128xf32, #tpu.memory_space<vmem>>, vector<8x128xf32>
    tpu.vector_store %arg9[%c0_191, %c0_192], %459 {strides = array<i32>} : memref<8x128xf32, #tpu.memory_space<vmem>>, vector<8x128xf32>,
    return
  }
  func.func @transform_0(%arg0: i32, %arg1: i32) -> (i32, i32, i32) {
    %c0_i32 = arith.constant 0 : i32
    %c0_i32_0 = arith.constant 0 : i32
    return %arg1, %arg0, %c0_i32 : i32, i32, i32
  }
  func.func @transform_1(%arg0: i32, %arg1: i32) -> (i32, i32, i32) {
    %c0_i32 = arith.constant 0 : i32
    %c0_i32_0 = arith.constant 0 : i32
    %c0_i32_1 = arith.constant 0 : i32
    return %c0_i32, %arg0, %c0_i32_0 : i32, i32, i32
  }
  func.func @transform_2(%arg0: i32, %arg1: i32) -> (i32, i32) {
    %c0_i32 = arith.constant 0 : i32
    %c0_i32_0 = arith.constant 0 : i32
    %c0_i32_1 = arith.constant 0 : i32
    return %c0_i32, %c0_i32_0 : i32, i32
  }
  func.func @transform_3(%arg0: i32, %arg1: i32) -> (i32, i32) {
    %c0_i32 = arith.constant 0 : i32
    %c0_i32_0 = arith.constant 0 : i32
    %c0_i32_1 = arith.constant 0 : i32
    return %c0_i32, %c0_i32_0 : i32, i32
  }
  func.func @transform_4(%arg0: i32, %arg1: i32) -> (i32, i32) {
    %c0_i32 = arith.constant 0 : i32
    %c0_i32_0 = arith.constant 0 : i32
    %c0_i32_1 = arith.constant 0 : i32
    return %c0_i32, %c0_i32_0 : i32, i32
  }
  func.func @transform_5(%arg0: i32, %arg1: i32) -> (i32, i32) {
    %c0_i32 = arith.constant 0 : i32
    %c0_i32_0 = arith.constant 0 : i32
    %c0_i32_1 = arith.constant 0 : i32
    return %c0_i32, %c0_i32_0 : i32, i32
  }
  func.func @transform_6(%arg0: i32, %arg1: i32) -> (i32, i32, i32) {
    %c0_i32 = arith.constant 0 : i32
    %c0_i32_0 = arith.constant 0 : i32
    return %arg1, %arg0, %c0_i32 : i32, i32, i32
  }
}

</mosaic_0001>

<llo_original>
// kernel: tpu_custom_call.1
$region0: #{tpu_custom_call.1}
  #allocation0 [shape = 'u32[]', space=smem, size = 0x4, offset = 0x4, fixed_abs, tag = 'smem constant byte address 0x4 - core index']
  #allocation1 [shape = 'u32[72,128]{1,0:T(1,128)}', space=vmem, size = 0x9000, scoped, tag = 'internal scratch']
  #allocation2 [shape = 'f32[8,128]{1,0:T(8,128)}', space=vmem, size = 0x1000, scoped, tag = 'scratch operand']
  #allocation3 [shape = 'f32[128,384]{1,0:T(8,128)}', space=vmem, size = 0x30000, scoped, tag = 'scratch operand']
  %s0 = inlined_call_operand.hbm [shape: bf16[16,8,128], index: 0, kind: input, shape index: {}]
  %s1 = inlined_call_operand.hbm [shape: f32[1,8,128], index: 1, kind: input, shape index: {}]
  %s2 = inlined_call_operand.hbm [shape: bf16[128,384], index: 2, kind: input, shape index: {}]
  %s3 = inlined_call_operand.hbm [shape: bf16[128,384], index: 3, kind: input, shape index: {}]
  %s4 = inlined_call_operand.vmem [shape: f32[1,384], index: 4, kind: input, shape index: {}]
  %s5 = inlined_call_operand.vmem [shape: f32[1,128], index: 5, kind: input, shape index: {}]
  %s6 = inlined_call_operand.hbm [shape: f32[16,8,128], index: 6, kind: output, shape index: {}]
  %s7 = sld [smem:[#allocation0]]
  $region54: #{tpu_custom_call.1} parent=0
    _
  %s9 = ssub.s32 1, %s7
  %s10 = scalar_select 0, %s9, %s7
  $region1: #{tpu_custom_call.1} parent=0
    #allocation4 [shape = 'u8[32768]{0}', space=vmem, size = 0x8000, scoped, tag = 'input window, operand 0, single buffered']
    #allocation5 [shape = 's32[1]{0}', space=sflag, size = 0x4, scoped, tag = 'scoped memory for tpu_custom_call.1']
    #allocation6 [shape = 's32[1]{0}', space=sflag, size = 0x4, scoped, tag = 'scoped memory for tpu_custom_call.1']
    #allocation7 [shape = 'u8[4096]{0}', space=vmem, size = 0x1000, scoped, tag = 'input window, operand 1, single buffered']
    #allocation8 [shape = 's32[1]{0}', space=sflag, size = 0x4, scoped, tag = 'scoped memory for tpu_custom_call.1']
    #allocation9 [shape = 'u8[98304]{0}', space=vmem, size = 0x18000, scoped, tag = 'input window, operand 2, single buffered']
    #allocation10 [shape = 'u8[98304]{0}', space=vmem, size = 0x18000, scoped, tag = 'input window, operand 3, single buffered']
    #allocation11 [shape = 's32[1]{0}', space=sflag, size = 0x4, scoped, tag = 'scoped memory for tpu_custom_call.1']
    #allocation12 [shape = 'u8[65536]{0}', space=vmem, size = 0x10000, scoped, tag = 'output window, operand 0, single buffered']
    %11 = vsyncpa [#allocation5], 0
    %12 = vsyncpa [#allocation8], 0
    %13 = vsyncpa [#allocation11], 0
    %14 = vsyncpa [#allocation6], 0
    // Predicated region
    $region2: #{tpu_custom_call.1} parent=1 // pred_check
      _
    $region3: #{tpu_custom_call.1} parent=1 // pred_check_branch
      %16 = sbr.rel (0) target = $region5
    $region4: #{tpu_custom_call.1} parent=1 // pred_region
      %18 = vsyncadd [#allocation5], 0
      %s19 = sshll.u32 %s0, 4
      %s20 = int_to_ptr.hbm [resolvable:$true] %s19
      %s21 = sshll.u32 [#allocation4], 4
      %s22 = int_to_ptr.vmem [resolvable:$true] %s21
      %27 = dma.hbm_to_vmem [thread:$0]  %s20, 1024, %s22, [#allocation5], 64, 64, 4
    $region5: #{tpu_custom_call.1} parent=1 // pred_fallthru
      _
    // Predicated region
    $region6: #{tpu_custom_call.1} parent=1 // pred_check
      _
    $region7: #{tpu_custom_call.1} parent=1 // pred_check_branch
      %29 = sbr.rel (0) target = $region9
    $region8: #{tpu_custom_call.1} parent=1 // pred_region
      %31 = vsyncadd [#allocation8], 0
      %s33 = sshll.u32 %s1, 4
      %s34 = int_to_ptr.hbm [resolvable:$true] %s33
      %s35 = sshll.u32 [#allocation7], 4
      %s36 = int_to_ptr.vmem [resolvable:$true] %s35
      %38 = dma.hbm_to_vmem [thread:$0]  %s34, 128, %s36, [#allocation8]
    $region9: #{tpu_custom_call.1} parent=1 // pred_fallthru
      _
    // Predicated region
    $region10: #{tpu_custom_call.1} parent=1 // pred_check
      _
    $region11: #{tpu_custom_call.1} parent=1 // pred_check_branch
      %40 = sbr.rel (0) target = $region13
    $region12: #{tpu_custom_call.1} parent=1 // pred_region
      %42 = vsyncadd [#allocation8], 0
      %s43 = sshll.u32 %s2, 4
      %s44 = int_to_ptr.hbm [resolvable:$true] %s43
      %s45 = sshll.u32 [#allocation9], 4
      %s46 = int_to_ptr.vmem [resolvable:$true] %s45
      %51 = dma.hbm_to_vmem [thread:$0]  %s44, 3072, %s46, [#allocation8], 192, 192, 12
    $region13: #{tpu_custom_call.1} parent=1 // pred_fallthru
      _
    // Predicated region
    $region14: #{tpu_custom_call.1} parent=1 // pred_check
      _
    $region15: #{tpu_custom_call.1} parent=1 // pred_check_branch
      %53 = sbr.rel (0) target = $region17
    $region16: #{tpu_custom_call.1} parent=1 // pred_region
      %55 = vsyncadd [#allocation11], 0
      %s56 = sshll.u32 %s3, 4
      %s57 = int_to_ptr.hbm [resolvable:$true] %s56
      %s58 = sshll.u32 [#allocation10], 4
      %s59 = int_to_ptr.vmem [resolvable:$true] %s58
      %64 = dma.hbm_to_vmem [thread:$0]  %s57, 3072, %s59, [#allocation11], 192, 192, 12
    $region17: #{tpu_custom_call.1} parent=1 // pred_fallthru
      _
    // Predicated region
    $region18: #{tpu_custom_call.1} parent=1 // pred_check
      _
    $region19: #{tpu_custom_call.1} parent=1 // pred_check_branch
      %66 = sbr.rel (0) target = $region21
    $region20: #{tpu_custom_call.1} parent=1 // pred_region
      _
    $region21: #{tpu_custom_call.1} parent=1 // pred_fallthru
      _
    // Predicated region
    $region22: #{tpu_custom_call.1} parent=1 // pred_check
      _
    $region23: #{tpu_custom_call.1} parent=1 // pred_check_branch
      %68 = sbr.rel (0) target = $region25
    $region24: #{tpu_custom_call.1} parent=1 // pred_region
      _
    $region25: #{tpu_custom_call.1} parent=1 // pred_fallthru
      _
    // Predicated region
    $region26: #{tpu_custom_call.1} parent=1 // pred_check
      _
    $region27: #{tpu_custom_call.1} parent=1 // pred_check_branch
      %70 = sbr.rel (0) target = $region29
    $region28: #{tpu_custom_call.1} parent=1 // pred_region
      %72 = dma.done [#allocation5], 1024
    $region29: #{tpu_custom_call.1} parent=1 // pred_fallthru
      _
    // Predicated region
    $region30: #{tpu_custom_call.1} parent=1 // pred_check
      _
    $region31: #{tpu_custom_call.1} parent=1 // pred_check_branch
      %74 = sbr.rel (0) target = $region33
    $region32: #{tpu_custom_call.1} parent=1 // pred_region
      %76 = dma.done [#allocation8], 128
    $region33: #{tpu_custom_call.1} parent=1 // pred_fallthru
      _
    // Predicated region
    $region34: #{tpu_custom_call.1} parent=1 // pred_check
      _
    $region35: #{tpu_custom_call.1} parent=1 // pred_check_branch
      %78 = sbr.rel (0) target = $region37
    $region36: #{tpu_custom_call.1} parent=1 // pred_region
      %80 = dma.done [#allocation8], 3072
    $region37: #{tpu_custom_call.1} parent=1 // pred_fallthru
      _
    // Predicated region
    $region38: #{tpu_custom_call.1} parent=1 // pred_check
      _
    $region39: #{tpu_custom_call.1} parent=1 // pred_check_branch
      %82 = sbr.rel (0) target = $region41
    $region40: #{tpu_custom_call.1} parent=1 // pred_region
      %84 = dma.done [#allocation11], 3072
    $region41: #{tpu_custom_call.1} parent=1 // pred_fallthru
      _
    %p85 = scmp.eq.s32.totalorder 0, 0
    // Predicated region
    $region42: #{tpu_custom_call.1} parent=1 // pred_check
      %p86 = pneg %p85
    $region43: #{tpu_custom_call.1} parent=1 // pred_check_branch
      %88 = sbr.rel (%p86) target = $region45
    $region44: #{tpu_custom_call.1} parent=1 // pred_region
      %v89 = vld [vmem:[#allocation7] sm:$0xff]
      %90 = vst [vmem:[#allocation2] sm:$0xff] %v89
    $region45: #{tpu_custom_call.1} parent=1 // pred_fallthru
      _
    %v91 = vld [vmem:[#allocation4] sm:$0xf]
    %v92 = vld [vmem:[#allocation4 + $0x4] sm:$0xf]
    %v93 = vld [vmem:[#allocation4 + $0x8] sm:$0xf]
    %v94 = vld [vmem:[#allocation4 + $0xc] sm:$0xf]
    %v95 = vld [vmem:[#allocation4 + $0x10] sm:$0xf]
    %v96 = vld [vmem:[#allocation4 + $0x14] sm:$0xf]
    %v97 = vld [vmem:[#allocation4 + $0x18] sm:$0xf]
    %v98 = vld [vmem:[#allocation4 + $0x1c] sm:$0xf]
    %v99 = vld [vmem:[#allocation4 + $0x20] sm:$0xf]
    %v100 = vld [vmem:[#allocation4 + $0x24] sm:$0xf]
    %v101 = vld [vmem:[#allocation4 + $0x28] sm:$0xf]
    %v102 = vld [vmem:[#allocation4 + $0x2c] sm:$0xf]
    %v103 = vld [vmem:[#allocation4 + $0x30] sm:$0xf]
    %v104 = vld [vmem:[#allocation4 + $0x34] sm:$0xf]
    %v105 = vld [vmem:[#allocation4 + $0x38] sm:$0xf]
    %v106 = vld [vmem:[#allocation4 + $0x3c] sm:$0xf]
    %v107 = vld [vmem:[#allocation9] sm:$0xff]
    %v108 = vld [vmem:[#allocation9 + $0x8] sm:$0xf]
    %v109 = vld [vmem:[#allocation9 + $0xc] sm:$0xff]
    %v110 = vld [vmem:[#allocation9 + $0x14] sm:$0xf]
    %v111 = vld [vmem:[#allocation9 + $0x18] sm:$0xff]
    %v112 = vld [vmem:[#allocation9 + $0x20] sm:$0xf]
    %v113 = vld [vmem:[#allocation9 + $0x24] sm:$0xff]
    %v114 = vld [vmem:[#allocation9 + $0x2c] sm:$0xf]
    %v115 = vld [vmem:[#allocation9 + $0x30] sm:$0xff]
    %v116 = vld [vmem:[#allocation9 + $0x38] sm:$0xf]
    %v117 = vld [vmem:[#allocation9 + $0x3c] sm:$0xff]
    %v118 = vld [vmem:[#allocation9 + $0x44] sm:$0xf]
    %v119 = vld [vmem:[#allocation9 + $0x48] sm:$0xff]
    %v120 = vld [vmem:[#allocation9 + $0x50] sm:$0xf]
    %v121 = vld [vmem:[#allocation9 + $0x54] sm:$0xff]
    %v122 = vld [vmem:[#allocation9 + $0x5c] sm:$0xf]
    %v123 = vld [vmem:[#allocation9 + $0x60] sm:$0xff]
    %v124 = vld [vmem:[#allocation9 + $0x68] sm:$0xf]
    %v125 = vld [vmem:[#allocation9 + $0x6c] sm:$0xff]
    %v126 = vld [vmem:[#allocation9 + $0x74] sm:$0xf]
    %v127 = vld [vmem:[#allocation9 + $0x78] sm:$0xff]
    %v128 = vld [vmem:[#allocation9 + $0x80] sm:$0xf]
    %v129 = vld [vmem:[#allocation9 + $0x84] sm:$0xff]
    %v130 = vld [vmem:[#allocation9 + $0x8c] sm:$0xf]
    %v131 = vld [vmem:[#allocation9 + $0x90] sm:$0xff]
    %v132 = vld [vmem:[#allocation9 + $0x98] sm:$0xf]
    %v133 = vld [vmem:[#allocation9 + $0x9c] sm:$0xff]
    %v134 = vld [vmem:[#allocation9 + $0xa4] sm:$0xf]
    %v135 = vld [vmem:[#allocation9 + $0xa8] sm:$0xff]
    %v136 = vld [vmem:[#allocation9 + $0xb0] sm:$0xf]
    %v137 = vld [vmem:[#allocation9 + $0xb4] sm:$0xff]
    %v138 = vld [vmem:[#allocation9 + $0xbc] sm:$0xf]
    %v139 = vld [vmem:[%s4] sm:$0x7]
    %v141 = vperm.slane %v139, 0
    %v142 = vperm.slane %v139, 1
    %v143 = vperm.slane %v139, 2
    %v163 = vunpack.c.l.b16 %v91
    %v164 = vunpack.c.l.b16 %v92
    %v165 = vunpack.c.l.b16 %v93
    %v166 = vunpack.c.l.b16 %v94
    %v167 = vunpack.c.l.b16 %v95
    %v168 = vunpack.c.l.b16 %v96
    %v169 = vunpack.c.l.b16 %v97
    %v170 = vunpack.c.l.b16 %v98
    %v171 = vunpack.c.l.b16 %v99
    %v172 = vunpack.c.l.b16 %v100
    %v173 = vunpack.c.l.b16 %v101
    %v174 = vunpack.c.l.b16 %v102
    %v175 = vunpack.c.l.b16 %v103
    %v176 = vunpack.c.l.b16 %v104
    %v177 = vunpack.c.l.b16 %v105
    %v178 = vunpack.c.l.b16 %v106
    %v179 = vpack.c.b16 %v164, %v163
    %v180 = vpack.c.b16 %v166, %v165
    %v181 = vpack.c.b16 %v168, %v167
    %v182 = vpack.c.b16 %v170, %v169
    %v183 = vpack.c.b16 %v172, %v171
    %v184 = vpack.c.b16 %v174, %v173
    %v185 = vpack.c.b16 %v176, %v175
    %v186 = vpack.c.b16 %v178, %v177
    %v227 = vunpack.c.l.b16 %v107
    %v228 = vunpack.c.h.b16 %v107
    %v229 = vunpack.c.l.b16 %v108
    %v230 = vunpack.c.l.b16 %v109
    %v231 = vunpack.c.h.b16 %v109
    %v232 = vunpack.c.l.b16 %v110
    %v233 = vunpack.c.l.b16 %v111
    %v234 = vunpack.c.h.b16 %v111
    %v235 = vunpack.c.l.b16 %v112
    %v236 = vunpack.c.l.b16 %v113
    %v237 = vunpack.c.h.b16 %v113
    %v238 = vunpack.c.l.b16 %v114
    %v239 = vunpack.c.l.b16 %v115
    %v240 = vunpack.c.h.b16 %v115
    %v241 = vunpack.c.l.b16 %v116
    %v242 = vunpack.c.l.b16 %v117
    %v243 = vunpack.c.h.b16 %v117
    %v244 = vunpack.c.l.b16 %v118
    %v245 = vunpack.c.l.b16 %v119
    %v246 = vunpack.c.h.b16 %v119
    %v247 = vunpack.c.l.b16 %v120
    %v248 = vunpack.c.l.b16 %v121
    %v249 = vunpack.c.h.b16 %v121
    %v250 = vunpack.c.l.b16 %v122
    %v251 = vunpack.c.l.b16 %v123
    %v252 = vunpack.c.h.b16 %v123
    %v253 = vunpack.c.l.b16 %v124
    %v254 = vunpack.c.l.b16 %v125
    %v255 = vunpack.c.h.b16 %v125
    %v256 = vunpack.c.l.b16 %v126
    %v257 = vunpack.c.l.b16 %v127
    %v258 = vunpack.c.h.b16 %v127
    %v259 = vunpack.c.l.b16 %v128
    %v260 = vunpack.c.l.b16 %v129
    %v261 = vunpack.c.h.b16 %v129
    %v262 = vunpack.c.l.b16 %v130
    %v263 = vunpack.c.l.b16 %v131
    %v264 = vunpack.c.h.b16 %v131
    %v265 = vunpack.c.l.b16 %v132
    %v266 = vunpack.c.l.b16 %v133
    %v267 = vunpack.c.h.b16 %v133
    %v268 = vunpack.c.l.b16 %v134
    %v269 = vunpack.c.l.b16 %v135
    %v270 = vunpack.c.h.b16 %v135
    %v271 = vunpack.c.l.b16 %v136
    %v272 = vunpack.c.l.b16 %v137
    %v273 = vunpack.c.h.b16 %v137
    %v274 = vunpack.c.l.b16 %v138
    %v275 = vpack.c.b16 %v230, %v227
    %v276 = vpack.c.b16 %v231, %v228
    %v277 = vpack.c.b16 %v232, %v229
    %v278 = vpack.c.b16 %v236, %v233
    %v279 = vpack.c.b16 %v237, %v234
    %v280 = vpack.c.b16 %v238, %v235
    %v281 = vpack.c.b16 %v242, %v239
    %v282 = vpack.c.b16 %v243, %v240
    %v283 = vpack.c.b16 %v244, %v241
    %v284 = vpack.c.b16 %v248, %v245
    %v285 = vpack.c.b16 %v249, %v246
    %v286 = vpack.c.b16 %v250, %v247
    %v287 = vpack.c.b16 %v254, %v251
    %v288 = vpack.c.b16 %v255, %v252
    %v289 = vpack.c.b16 %v256, %v253
    %v290 = vpack.c.b16 %v260, %v257
    %v291 = vpack.c.b16 %v261, %v258
    %v292 = vpack.c.b16 %v262, %v259
    %v293 = vpack.c.b16 %v266, %v263
    %v294 = vpack.c.b16 %v267, %v264
    %v295 = vpack.c.b16 %v268, %v265
    %v296 = vpack.c.b16 %v272, %v269
    %v297 = vpack.c.b16 %v273, %v270
    %v298 = vpack.c.b16 %v274, %v271
    %323 = vmatpush.bf16.msra.mxu0 %v296
    %324 = vmatpush.bf16.msra.mxu0 %v293
    %325 = vmatpush.bf16.msra.mxu0 %v290
    %326 = vmatpush.bf16.msra.mxu0 %v287
    %327 = vmatpush.bf16.msra.mxu0 %v284
    %328 = vmatpush.bf16.msra.mxu0 %v281
    %329 = vmatpush.bf16.msra.mxu0 %v278
    %330 = vmatpush.bf16.msra.mxu0 %v275
    %331 = vmatmul.bf16.gmra.mxu0 %v179
    %v332 = vpop.f32.mrf.mxu0
    %v333 = vadd.f32 %v141, %v332
    %v334 = vpop.f32.mrf.mxu0
    %v335 = vadd.f32 %v141, %v334
    %336 = vmatmul.bf16.gmra.mxu0 %v180
    %v337 = vpop.f32.mrf.mxu0
    %v338 = vadd.f32 %v141, %v337
    %v339 = vpop.f32.mrf.mxu0
    %v340 = vadd.f32 %v141, %v339
    %341 = vmatmul.bf16.gmra.mxu0 %v181
    %v342 = vpop.f32.mrf.mxu0
    %v343 = vadd.f32 %v141, %v342
    %v344 = vpop.f32.mrf.mxu0
    %v345 = vadd.f32 %v141, %v344
    %346 = vmatmul.bf16.gmra.mxu0 %v182
    %v347 = vpop.f32.mrf.mxu0
    %v348 = vadd.f32 %v141, %v347
    %v349 = vpop.f32.mrf.mxu0
    %v350 = vadd.f32 %v141, %v349
    %351 = vmatmul.bf16.gmra.mxu0 %v183
    %v352 = vpop.f32.mrf.mxu0
    %v353 = vadd.f32 %v141, %v352
    %v354 = vpop.f32.mrf.mxu0
    %v355 = vadd.f32 %v141, %v354
    %356 = vmatmul.bf16.gmra.mxu0 %v184
    %v357 = vpop.f32.mrf.mxu0
    %v358 = vadd.f32 %v141, %v357
    %v359 = vpop.f32.mrf.mxu0
    %v360 = vadd.f32 %v141, %v359
    %361 = vmatmul.bf16.gmra.mxu0 %v185
    %v362 = vpop.f32.mrf.mxu0
    %v363 = vadd.f32 %v141, %v362
    %v364 = vpop.f32.mrf.mxu0
    %v365 = vadd.f32 %v141, %v364
    %366 = vmatmul.bf16.gmra.mxu0 %v186
    %v367 = vpop.f32.mrf.mxu0
    %v368 = vadd.f32 %v141, %v367
    %v369 = vpop.f32.mrf.mxu0
    %v370 = vadd.f32 %v141, %v369
    %371 = vdwg.mxu0
    %372 = vmatpush.bf16.msra.mxu0 %v297
    %373 = vmatpush.bf16.msra.mxu0 %v294
    %374 = vmatpush.bf16.msra.mxu0 %v291
    %375 = vmatpush.bf16.msra.mxu0 %v288
    %376 = vmatpush.bf16.msra.mxu0 %v285
    %377 = vmatpush.bf16.msra.mxu0 %v282
    %378 = vmatpush.bf16.msra.mxu0 %v279
    %379 = vmatpush.bf16.msra.mxu0 %v276
    %380 = vmatmul.bf16.gmra.mxu0 %v179
    %v381 = vpop.f32.mrf.mxu0
    %v382 = vadd.f32 %v142, %v381
    %v383 = vpop.f32.mrf.mxu0
    %v384 = vadd.f32 %v142, %v383
    %385 = vmatmul.bf16.gmra.mxu0 %v180
    %v386 = vpop.f32.mrf.mxu0
    %v387 = vadd.f32 %v142, %v386
    %v388 = vpop.f32.mrf.mxu0
    %v389 = vadd.f32 %v142, %v388
    %390 = vmatmul.bf16.gmra.mxu0 %v181
    %v391 = vpop.f32.mrf.mxu0
    %v392 = vadd.f32 %v142, %v391
    %v393 = vpop.f32.mrf.mxu0
    %v394 = vadd.f32 %v142, %v393
    %395 = vmatmul.bf16.gmra.mxu0 %v182
    %v396 = vpop.f32.mrf.mxu0
    %v397 = vadd.f32 %v142, %v396
    %v398 = vpop.f32.mrf.mxu0
    %v399 = vadd.f32 %v142, %v398
    %400 = vmatmul.bf16.gmra.mxu0 %v183
    %v401 = vpop.f32.mrf.mxu0
    %v402 = vadd.f32 %v142, %v401
    %v403 = vpop.f32.mrf.mxu0
    %v404 = vadd.f32 %v142, %v403
    %405 = vmatmul.bf16.gmra.mxu0 %v184
    %v406 = vpop.f32.mrf.mxu0
    %v407 = vadd.f32 %v142, %v406
    %v408 = vpop.f32.mrf.mxu0
    %v409 = vadd.f32 %v142, %v408
    %410 = vmatmul.bf16.gmra.mxu0 %v185
    %v411 = vpop.f32.mrf.mxu0
    %v412 = vadd.f32 %v142, %v411
    %v413 = vpop.f32.mrf.mxu0
    %v414 = vadd.f32 %v142, %v413
    %415 = vmatmul.bf16.gmra.mxu0 %v186
    %v416 = vpop.f32.mrf.mxu0
    %v417 = vadd.f32 %v142, %v416
    %v418 = vpop.f32.mrf.mxu0
    %v419 = vadd.f32 %v142, %v418
    %420 = vdwg.mxu0
    %421 = vmatpush.bf16.msra.mxu0 %v298
    %422 = vmatpush.bf16.msra.mxu0 %v295
    %423 = vmatpush.bf16.msra.mxu0 %v292
    %424 = vmatpush.bf16.msra.mxu0 %v289
    %425 = vmatpush.bf16.msra.mxu0 %v286
    %426 = vmatpush.bf16.msra.mxu0 %v283
    %427 = vmatpush.bf16.msra.mxu0 %v280
    %428 = vmatpush.bf16.msra.mxu0 %v277
    %429 = vmatmul.bf16.gmra.mxu0 %v179
    %v430 = vpop.f32.mrf.mxu0
    %v431 = vadd.f32 %v143, %v430
    %v432 = vpop.f32.mrf.mxu0
    %v433 = vadd.f32 %v143, %v432
    %434 = vmatmul.bf16.gmra.mxu0 %v180
    %v435 = vpop.f32.mrf.mxu0
    %v436 = vadd.f32 %v143, %v435
    %v437 = vpop.f32.mrf.mxu0
    %v438 = vadd.f32 %v143, %v437
    %439 = vmatmul.bf16.gmra.mxu0 %v181
    %v440 = vpop.f32.mrf.mxu0
    %v441 = vadd.f32 %v143, %v440
    %v442 = vpop.f32.mrf.mxu0
    %v443 = vadd.f32 %v143, %v442
    %444 = vmatmul.bf16.gmra.mxu0 %v182
    %v445 = vpop.f32.mrf.mxu0
    %v446 = vadd.f32 %v143, %v445
    %v447 = vpop.f32.mrf.mxu0
    %v448 = vadd.f32 %v143, %v447
    %449 = vmatmul.bf16.gmra.mxu0 %v183
    %v450 = vpop.f32.mrf.mxu0
    %v451 = vadd.f32 %v143, %v450
    %v452 = vpop.f32.mrf.mxu0
    %v453 = vadd.f32 %v143, %v452
    %454 = vmatmul.bf16.gmra.mxu0 %v184
    %v455 = vpop.f32.mrf.mxu0
    %v456 = vadd.f32 %v143, %v455
    %v457 = vpop.f32.mrf.mxu0
    %v458 = vadd.f32 %v143, %v457
    %459 = vmatmul.bf16.gmra.mxu0 %v185
    %v460 = vpop.f32.mrf.mxu0
    %v461 = vadd.f32 %v143, %v460
    %v462 = vpop.f32.mrf.mxu0
    %v463 = vadd.f32 %v143, %v462
    %464 = vmatmul.bf16.gmra.mxu0 %v186
    %v465 = vpop.f32.mrf.mxu0
    %v466 = vadd.f32 %v143, %v465
    %v467 = vpop.f32.mrf.mxu0
    %v468 = vadd.f32 %v143, %v467
    %469 = vdwg.mxu0
    %470 = vst [vmem:[#allocation3] sm:$0xff] %v333
    %471 = vst [vmem:[#allocation3 + $0x8] sm:$0xff] %v382
    %472 = vst [vmem:[#allocation3 + $0x10] sm:$0xff] %v431
    %473 = vst [vmem:[#allocation3 + $0x18] sm:$0xff] %v335
    %474 = vst [vmem:[#allocation3 + $0x20] sm:$0xff] %v384
    %475 = vst [vmem:[#allocation3 + $0x28] sm:$0xff] %v433
    %476 = vst [vmem:[#allocation3 + $0x30] sm:$0xff] %v338
    %477 = vst [vmem:[#allocation3 + $0x38] sm:$0xff] %v387
    %478 = vst [vmem:[#allocation3 + $0x40] sm:$0xff] %v436
    %479 = vst [vmem:[#allocation3 + $0x48] sm:$0xff] %v340
    %480 = vst [vmem:[#allocation3 + $0x50] sm:$0xff] %v389
    %481 = vst [vmem:[#allocation3 + $0x58] sm:$0xff] %v438
    %482 = vst [vmem:[#allocation3 + $0x60] sm:$0xff] %v343
    %483 = vst [vmem:[#allocation3 + $0x68] sm:$0xff] %v392
    %484 = vst [vmem:[#allocation3 + $0x70] sm:$0xff] %v441
    %485 = vst [vmem:[#allocation3 + $0x78] sm:$0xff] %v345
    %486 = vst [vmem:[#allocation3 + $0x80] sm:$0xff] %v394
    %487 = vst [vmem:[#allocation3 + $0x88] sm:$0xff] %v443
    %488 = vst [vmem:[#allocation3 + $0x90] sm:$0xff] %v348
    %489 = vst [vmem:[#allocation3 + $0x98] sm:$0xff] %v397
    %490 = vst [vmem:[#allocation3 + $0xa0] sm:$0xff] %v446
    %491 = vst [vmem:[#allocation3 + $0xa8] sm:$0xff] %v350
    %492 = vst [vmem:[#allocation3 + $0xb0] sm:$0xff] %v399
    %493 = vst [vmem:[#allocation3 + $0xb8] sm:$0xff] %v448
    %494 = vst [vmem:[#allocation3 + $0xc0] sm:$0xff] %v353
    %495 = vst [vmem:[#allocation3 + $0xc8] sm:$0xff] %v402
    %496 = vst [vmem:[#allocation3 + $0xd0] sm:$0xff] %v451
    %497 = vst [vmem:[#allocation3 + $0xd8] sm:$0xff] %v355
    %498 = vst [vmem:[#allocation3 + $0xe0] sm:$0xff] %v404
    %499 = vst [vmem:[#allocation3 + $0xe8] sm:$0xff] %v453
    %500 = vst [vmem:[#allocation3 + $0xf0] sm:$0xff] %v358
    %501 = vst [vmem:[#allocation3 + $0xf8] sm:$0xff] %v407
    %502 = vst [vmem:[#allocation3 + $0x100] sm:$0xff] %v456
    %503 = vst [vmem:[#allocation3 + $0x108] sm:$0xff] %v360
    %504 = vst [vmem:[#allocation3 + $0x110] sm:$0xff] %v409
    %505 = vst [vmem:[#allocation3 + $0x118] sm:$0xff] %v458
    %506 = vst [vmem:[#allocation3 + $0x120] sm:$0xff] %v363
    %507 = vst [vmem:[#allocation3 + $0x128] sm:$0xff] %v412
    %508 = vst [vmem:[#allocation3 + $0x130] sm:$0xff] %v461
    %509 = vst [vmem:[#allocation3 + $0x138] sm:$0xff] %v365
    %510 = vst [vmem:[#allocation3 + $0x140] sm:$0xff] %v414
    %511 = vst [vmem:[#allocation3 + $0x148] sm:$0xff] %v463
    %512 = vst [vmem:[#allocation3 + $0x150] sm:$0xff] %v368
    %513 = vst [vmem:[#allocation3 + $0x158] sm:$0xff] %v417
    %514 = vst [vmem:[#allocation3 + $0x160] sm:$0xff] %v466
    %515 = vst [vmem:[#allocation3 + $0x168] sm:$0xff] %v370
    %516 = vst [vmem:[#allocation3 + $0x170] sm:$0xff] %v419
    %517 = vst [vmem:[#allocation3 + $0x178] sm:$0xff] %v468
    %v518 = vld [vmem:[%s5] sm:$0x1]
    %v520 = vperm.slane %v518, 0
    %v522 = vld [vmem:[#allocation2] sm:$0xff]
    %v523 = vld [vmem:[#allocation3] sm:$0xff]
    %v524 = vld [vmem:[#allocation3 + $0x8] sm:$0xff]
    %v525 = vld [vmem:[#allocation3 + $0x10] sm:$0xff]
    %v526 = vpack.c.bf16 %v522, %v522
    %v527 = vld [vmem:[#allocation10] sm:$0xff]
    %v528 = vld [vmem:[#allocation10 + $0xc] sm:$0xff]
    %v529 = vld [vmem:[#allocation10 + $0x18] sm:$0xff]
    %v530 = vld [vmem:[#allocation10 + $0x24] sm:$0xff]
    %v531 = vld [vmem:[#allocation10 + $0x30] sm:$0xff]
    %v532 = vld [vmem:[#allocation10 + $0x3c] sm:$0xff]
    %v533 = vld [vmem:[#allocation10 + $0x48] sm:$0xff]
    %v534 = vld [vmem:[#allocation10 + $0x54] sm:$0xff]
    %v535 = vld [vmem:[#allocation10 + $0x60] sm:$0xff]
    %v536 = vld [vmem:[#allocation10 + $0x6c] sm:$0xff]
    %v537 = vld [vmem:[#allocation10 + $0x78] sm:$0xff]
    %v538 = vld [vmem:[#allocation10 + $0x84] sm:$0xff]
    %v539 = vld [vmem:[#allocation10 + $0x90] sm:$0xff]
    %v540 = vld [vmem:[#allocation10 + $0x9c] sm:$0xff]
    %v541 = vld [vmem:[#allocation10 + $0xa8] sm:$0xff]
    %v542 = vld [vmem:[#allocation10 + $0xb4] sm:$0xff]
    %v559 = vunpack.c.l.b16 %v527
    %v560 = vunpack.c.h.b16 %v527
    %v561 = vunpack.c.l.b16 %v528
    %v562 = vunpack.c.h.b16 %v528
    %v563 = vunpack.c.l.b16 %v529
    %v564 = vunpack.c.h.b16 %v529
    %v565 = vunpack.c.l.b16 %v530
    %v566 = vunpack.c.h.b16 %v530
    %v567 = vunpack.c.l.b16 %v531
    %v568 = vunpack.c.h.b16 %v531
    %v569 = vunpack.c.l.b16 %v532
    %v570 = vunpack.c.h.b16 %v532
    %v571 = vunpack.c.l.b16 %v533
    %v572 = vunpack.c.h.b16 %v533
    %v573 = vunpack.c.l.b16 %v534
    %v574 = vunpack.c.h.b16 %v534
    %v575 = vunpack.c.l.b16 %v535
    %v576 = vunpack.c.h.b16 %v535
    %v577 = vunpack.c.l.b16 %v536
    %v578 = vunpack.c.h.b16 %v536
    %v579 = vunpack.c.l.b16 %v537
    %v580 = vunpack.c.h.b16 %v537
    %v581 = vunpack.c.l.b16 %v538
    %v582 = vunpack.c.h.b16 %v538
    %v583 = vunpack.c.l.b16 %v539
    %v584 = vunpack.c.h.b16 %v539
    %v585 = vunpack.c.l.b16 %v540
    %v586 = vunpack.c.h.b16 %v540
    %v587 = vunpack.c.l.b16 %v541
    %v588 = vunpack.c.h.b16 %v541
    %v589 = vunpack.c.l.b16 %v542
    %v590 = vunpack.c.h.b16 %v542
    %v591 = vpack.c.b16 %v561, %v559
    %v592 = vpack.c.b16 %v562, %v560
    %v593 = vpack.c.b16 %v565, %v563
    %v594 = vpack.c.b16 %v566, %v564
    %v595 = vpack.c.b16 %v569, %v567
    %v596 = vpack.c.b16 %v570, %v568
    %v597 = vpack.c.b16 %v573, %v571
    %v598 = vpack.c.b16 %v574, %v572
    %v599 = vpack.c.b16 %v577, %v575
    %v600 = vpack.c.b16 %v578, %v576
    %v601 = vpack.c.b16 %v581, %v579
    %v602 = vpack.c.b16 %v582, %v580
    %v603 = vpack.c.b16 %v585, %v583
    %v604 = vpack.c.b16 %v586, %v584
    %v605 = vpack.c.b16 %v589, %v587
    %v606 = vpack.c.b16 %v590, %v588
    %623 = vmatpush.bf16.msra.mxu0 %v605
    %624 = vmatpush.bf16.msra.mxu0 %v603
    %625 = vmatpush.bf16.msra.mxu0 %v601
    %626 = vmatpush.bf16.msra.mxu0 %v599
    %627 = vmatpush.bf16.msra.mxu0 %v597
    %628 = vmatpush.bf16.msra.mxu0 %v595
    %629 = vmatpush.bf16.msra.mxu0 %v593
    %630 = vmatpush.bf16.msra.mxu0 %v591
    %631 = vmatmul.bf16.gmra.mxu0 %v526
    %v632 = vpop.f32.mrf.mxu0
    %v633 = vadd.f32 0.0, %v632
    %v634 = vpop.f32.mrf.mxu0
    %635 = vdwg.mxu0
    %636 = vmatpush.bf16.msra.mxu0 %v606
    %637 = vmatpush.bf16.msra.mxu0 %v604
    %638 = vmatpush.bf16.msra.mxu0 %v602
    %639 = vmatpush.bf16.msra.mxu0 %v600
    %640 = vmatpush.bf16.msra.mxu0 %v598
    %641 = vmatpush.bf16.msra.mxu0 %v596
    %642 = vmatpush.bf16.msra.mxu0 %v594
    %643 = vmatpush.bf16.msra.mxu0 %v592
    %644 = vmatmul.bf16.gmra.mxu0 %v526
    %v645 = vpop.f32.mrf.mxu0
    %v646 = vadd.f32 0.0, %v645
    %v647 = vpop.f32.mrf.mxu0
    %648 = vdwg.mxu0
    %v649 = vld [vmem:[#allocation10 + $0x8] sm:$0xf]
    %v650 = vld [vmem:[#allocation10 + $0x14] sm:$0xf]
    %v651 = vld [vmem:[#allocation10 + $0x20] sm:$0xf]
    %v652 = vld [vmem:[#allocation10 + $0x2c] sm:$0xf]
    %v653 = vld [vmem:[#allocation10 + $0x38] sm:$0xf]
    %v654 = vld [vmem:[#allocation10 + $0x44] sm:$0xf]
    %v655 = vld [vmem:[#allocation10 + $0x50] sm:$0xf]
    %v656 = vld [vmem:[#allocation10 + $0x5c] sm:$0xf]
    %v657 = vld [vmem:[#allocation10 + $0x68] sm:$0xf]
    %v658 = vld [vmem:[#allocation10 + $0x74] sm:$0xf]
    %v659 = vld [vmem:[#allocation10 + $0x80] sm:$0xf]
    %v660 = vld [vmem:[#allocation10 + $0x8c] sm:$0xf]
    %v661 = vld [vmem:[#allocation10 + $0x98] sm:$0xf]
    %v662 = vld [vmem:[#allocation10 + $0xa4] sm:$0xf]
    %v663 = vld [vmem:[#allocation10 + $0xb0] sm:$0xf]
    %v664 = vld [vmem:[#allocation10 + $0xbc] sm:$0xf]
    %v665 = vadd.f32 %v523, %v633
    %v666 = vadd.f32 %v524, %v646
    %v667 = vxor.u32 %v665, 2147483648
    %v668 = vxor.u32 %v666, 2147483648
    %v669 = vmul.f32 %v667, 1.442695
    %v670 = vpow.pop %v669
    %v671 = vmul.f32 %v668, 1.442695
    %v672 = vpow.pop %v671
    %v673 = vadd.f32 %v670, 1.0
    %v674 = vadd.f32 %v672, 1.0
    %v675 = vrcp.pop %v673
    %v676 = vmul.f32 %v673, %v675
    %v677 = vsub.f32 1.0, %v676
    %v678 = vmul.f32 %v675, %v677
    %v679 = vadd.f32 %v675, %v678
    %vm680 = vweird.f32 %v673
    %vm681 = vweird.f32 %v675
    %vm682 = vmor %vm680, %vm681
    %v683 = vsel %vm682, %v675, %v679
    %v684 = vand.u32 2147483647, %v673
    %vm685 = vcmp.eq.f32.partialorder %v684, 8.507059e+37
    %v686 = vand.u32 %v673, 2147483648
    %v687 = vor.u32 1.1754944e-38, %v686
    %v688 = vsel %vm685, %v687, %v683
    %v689 = vmul.f32 1.0, %v688
    %v690 = vrcp.pop %v674
    %v691 = vmul.f32 %v674, %v690
    %v692 = vsub.f32 1.0, %v691
    %v693 = vmul.f32 %v690, %v692
    %v694 = vadd.f32 %v690, %v693
    %vm695 = vweird.f32 %v674
    %vm696 = vweird.f32 %v690
    %vm697 = vmor %vm695, %vm696
    %v698 = vsel %vm697, %v690, %v694
    %v699 = vand.u32 2147483647, %v674
    %vm700 = vcmp.eq.f32.partialorder %v699, 8.507059e+37
    %v701 = vand.u32 %v674, 2147483648
    %v702 = vor.u32 1.1754944e-38, %v701
    %v703 = vsel %vm700, %v702, %v698
    %v704 = vmul.f32 1.0, %v703
    %v721 = vunpack.c.l.b16 %v649
    %v722 = vunpack.c.l.b16 %v650
    %v723 = vunpack.c.l.b16 %v651
    %v724 = vunpack.c.l.b16 %v652
    %v725 = vunpack.c.l.b16 %v653
    %v726 = vunpack.c.l.b16 %v654
    %v727 = vunpack.c.l.b16 %v655
    %v728 = vunpack.c.l.b16 %v656
    %v729 = vunpack.c.l.b16 %v657
    %v730 = vunpack.c.l.b16 %v658
    %v731 = vunpack.c.l.b16 %v659
    %v732 = vunpack.c.l.b16 %v660
    %v733 = vunpack.c.l.b16 %v661
    %v734 = vunpack.c.l.b16 %v662
    %v735 = vunpack.c.l.b16 %v663
    %v736 = vunpack.c.l.b16 %v664
    %v737 = vpack.c.b16 %v722, %v721
    %v738 = vpack.c.b16 %v724, %v723
    %v739 = vpack.c.b16 %v726, %v725
    %v740 = vpack.c.b16 %v728, %v727
    %v741 = vpack.c.b16 %v730, %v729
    %v742 = vpack.c.b16 %v732, %v731
    %v743 = vpack.c.b16 %v734, %v733
    %v744 = vpack.c.b16 %v736, %v735
    %753 = vmatpush.bf16.msra.mxu0 %v744
    %754 = vmatpush.bf16.msra.mxu0 %v743
    %755 = vmatpush.bf16.msra.mxu0 %v742
    %756 = vmatpush.bf16.msra.mxu0 %v741
    %757 = vmatpush.bf16.msra.mxu0 %v740
    %758 = vmatpush.bf16.msra.mxu0 %v739
    %759 = vmatpush.bf16.msra.mxu0 %v738
    %760 = vmatpush.bf16.msra.mxu0 %v737
    %761 = vmatmul.bf16.gmra.mxu0 %v526
    %v762 = vpop.f32.mrf.mxu0
    %v763 = vadd.f32 %v520, %v762
    %v764 = vpop.f32.mrf.mxu0
    %765 = vdwg.mxu0
    %v766 = vmul.f32 %v689, %v763
    %v767 = vadd.f32 %v525, %v766
    %v768 = vtanh.pop %v767
    %v769 = vsub.f32 1.0, %v704
    %v770 = vmul.f32 %v769, %v768
    %v771 = vmul.f32 %v704, %v522
    %v772 = vadd.f32 %v770, %v771
    %773 = vst [vmem:[#allocation12] sm:$0xff] %v772
    %v774 = vld [vmem:[#allocation3 + $0x18] sm:$0xff]
    %v775 = vld [vmem:[#allocation3 + $0x20] sm:$0xff]
    %v776 = vld [vmem:[#allocation3 + $0x28] sm:$0xff]
    %v777 = vpack.c.bf16 %v772, %v772
    %v778 = vld [vmem:[#allocation10] sm:$0xff]
    %v779 = vld [vmem:[#allocation10 + $0xc] sm:$0xff]
    %v780 = vld [vmem:[#allocation10 + $0x18] sm:$0xff]
    %v781 = vld [vmem:[#allocation10 + $0x24] sm:$0xff]
    %v782 = vld [vmem:[#allocation10 + $0x30] sm:$0xff]
    %v783 = vld [vmem:[#allocation10 + $0x3c] sm:$0xff]
    %v784 = vld [vmem:[#allocation10 + $0x48] sm:$0xff]
    %v785 = vld [vmem:[#allocation10 + $0x54] sm:$0xff]
    %v786 = vld [vmem:[#allocation10 + $0x60] sm:$0xff]
    %v787 = vld [vmem:[#allocation10 + $0x6c] sm:$0xff]
    %v788 = vld [vmem:[#allocation10 + $0x78] sm:$0xff]
    %v789 = vld [vmem:[#allocation10 + $0x84] sm:$0xff]
    %v790 = vld [vmem:[#allocation10 + $0x90] sm:$0xff]
    %v791 = vld [vmem:[#allocation10 + $0x9c] sm:$0xff]
    %v792 = vld [vmem:[#allocation10 + $0xa8] sm:$0xff]
    %v793 = vld [vmem:[#allocation10 + $0xb4] sm:$0xff]
    %v810 = vunpack.c.l.b16 %v778
    %v811 = vunpack.c.h.b16 %v778
    %v812 = vunpack.c.l.b16 %v779
    %v813 = vunpack.c.h.b16 %v779
    %v814 = vunpack.c.l.b16 %v780
    %v815 = vunpack.c.h.b16 %v780
    %v816 = vunpack.c.l.b16 %v781
    %v817 = vunpack.c.h.b16 %v781
    %v818 = vunpack.c.l.b16 %v782
    %v819 = vunpack.c.h.b16 %v782
    %v820 = vunpack.c.l.b16 %v783
    %v821 = vunpack.c.h.b16 %v783
    %v822 = vunpack.c.l.b16 %v784
    %v823 = vunpack.c.h.b16 %v784
    %v824 = vunpack.c.l.b16 %v785
    %v825 = vunpack.c.h.b16 %v785
    %v826 = vunpack.c.l.b16 %v786
    %v827 = vunpack.c.h.b16 %v786
    %v828 = vunpack.c.l.b16 %v787
    %v829 = vunpack.c.h.b16 %v787
    %v830 = vunpack.c.l.b16 %v788
    %v831 = vunpack.c.h.b16 %v788
    %v832 = vunpack.c.l.b16 %v789
    %v833 = vunpack.c.h.b16 %v789
    %v834 = vunpack.c.l.b16 %v790
    %v835 = vunpack.c.h.b16 %v790
    %v836 = vunpack.c.l.b16 %v791
    %v837 = vunpack.c.h.b16 %v791
    %v838 = vunpack.c.l.b16 %v792
    %v839 = vunpack.c.h.b16 %v792
    %v840 = vunpack.c.l.b16 %v793
    %v841 = vunpack.c.h.b16 %v793
    %v842 = vpack.c.b16 %v812, %v810
    %v843 = vpack.c.b16 %v813, %v811
    %v844 = vpack.c.b16 %v816, %v814
    %v845 = vpack.c.b16 %v817, %v815
    %v846 = vpack.c.b16 %v820, %v818
    %v847 = vpack.c.b16 %v821, %v819
    %v848 = vpack.c.b16 %v824, %v822
    %v849 = vpack.c.b16 %v825, %v823
    %v850 = vpack.c.b16 %v828, %v826
    %v851 = vpack.c.b16 %v829, %v827
    %v852 = vpack.c.b16 %v832, %v830
    %v853 = vpack.c.b16 %v833, %v831
    %v854 = vpack.c.b16 %v836, %v834
    %v855 = vpack.c.b16 %v837, %v835
    %v856 = vpack.c.b16 %v840, %v838
    %v857 = vpack.c.b16 %v841, %v839
    %874 = vmatpush.bf16.msra.mxu0 %v856
    %875 = vmatpush.bf16.msra.mxu0 %v854
    %876 = vmatpush.bf16.msra.mxu0 %v852
    %877 = vmatpush.bf16.msra.mxu0 %v850
    %878 = vmatpush.bf16.msra.mxu0 %v848
    %879 = vmatpush.bf16.msra.mxu0 %v846
    %880 = vmatpush.bf16.msra.mxu0 %v844
    %881 = vmatpush.bf16.msra.mxu0 %v842
    %882 = vmatmul.bf16.gmra.mxu0 %v777
    %v883 = vpop.f32.mrf.mxu0
    %v884 = vadd.f32 0.0, %v883
    %v885 = vpop.f32.mrf.mxu0
    %886 = vdwg.mxu0
    %887 = vmatpush.bf16.msra.mxu0 %v857
    %888 = vmatpush.bf16.msra.mxu0 %v855
    %889 = vmatpush.bf16.msra.mxu0 %v853
    %890 = vmatpush.bf16.msra.mxu0 %v851
    %891 = vmatpush.bf16.msra.mxu0 %v849
    %892 = vmatpush.bf16.msra.mxu0 %v847
    %893 = vmatpush.bf16.msra.mxu0 %v845
    %894 = vmatpush.bf16.msra.mxu0 %v843
    %895 = vmatmul.bf16.gmra.mxu0 %v777
    %v896 = vpop.f32.mrf.mxu0
    %v897 = vadd.f32 0.0, %v896
    %v898 = vpop.f32.mrf.mxu0
    %899 = vdwg.mxu0
    %v900 = vld [vmem:[#allocation10 + $0x8] sm:$0xf]
    %v901 = vld [vmem:[#allocation10 + $0x14] sm:$0xf]
    %v902 = vld [vmem:[#allocation10 + $0x20] sm:$0xf]
    %v903 = vld [vmem:[#allocation10 + $0x2c] sm:$0xf]
    %v904 = vld [vmem:[#allocation10 + $0x38] sm:$0xf]
    %v905 = vld [vmem:[#allocation10 + $0x44] sm:$0xf]
    %v906 = vld [vmem:[#allocation10 + $0x50] sm:$0xf]
    %v907 = vld [vmem:[#allocation10 + $0x5c] sm:$0xf]
    %v908 = vld [vmem:[#allocation10 + $0x68] sm:$0xf]
    %v909 = vld [vmem:[#allocation10 + $0x74] sm:$0xf]
    %v910 = vld [vmem:[#allocation10 + $0x80] sm:$0xf]
    %v911 = vld [vmem:[#allocation10 + $0x8c] sm:$0xf]
    %v912 = vld [vmem:[#allocation10 + $0x98] sm:$0xf]
    %v913 = vld [vmem:[#allocation10 + $0xa4] sm:$0xf]
    %v914 = vld [vmem:[#allocation10 + $0xb0] sm:$0xf]
    %v915 = vld [vmem:[#allocation10 + $0xbc] sm:$0xf]
    %v916 = vadd.f32 %v774, %v884
    %v917 = vadd.f32 %v775, %v897
    %v918 = vxor.u32 %v916, 2147483648
    %v919 = vxor.u32 %v917, 2147483648
    %v920 = vmul.f32 %v918, 1.442695
    %v921 = vpow.pop %v920
    %v922 = vmul.f32 %v919, 1.442695
    %v923 = vpow.pop %v922
    %v924 = vadd.f32 %v921, 1.0
    %v925 = vadd.f32 %v923, 1.0
    %v926 = vrcp.pop %v924
    %v927 = vmul.f32 %v924, %v926
    %v928 = vsub.f32 1.0, %v927
    %v929 = vmul.f32 %v926, %v928
    %v930 = vadd.f32 %v926, %v929
    %vm931 = vweird.f32 %v924
    %vm932 = vweird.f32 %v926
    %vm933 = vmor %vm931, %vm932
    %v934 = vsel %vm933, %v926, %v930
    %v935 = vand.u32 2147483647, %v924
    %vm936 = vcmp.eq.f32.partialorder %v935, 8.507059e+37
    %v937 = vand.u32 %v924, 2147483648
    %v938 = vor.u32 1.1754944e-38, %v937
    %v939 = vsel %vm936, %v938, %v934
    %v940 = vmul.f32 1.0, %v939
    %v941 = vrcp.pop %v925
    %v942 = vmul.f32 %v925, %v941
    %v943 = vsub.f32 1.0, %v942
    %v944 = vmul.f32 %v941, %v943
    %v945 = vadd.f32 %v941, %v944
    %vm946 = vweird.f32 %v925
    %vm947 = vweird.f32 %v941
    %vm948 = vmor %vm946, %vm947
    %v949 = vsel %vm948, %v941, %v945
    %v950 = vand.u32 2147483647, %v925
    %vm951 = vcmp.eq.f32.partialorder %v950, 8.507059e+37
    %v952 = vand.u32 %v925, 2147483648
    %v953 = vor.u32 1.1754944e-38, %v952
    %v954 = vsel %vm951, %v953, %v949
    %v955 = vmul.f32 1.0, %v954
    %v972 = vunpack.c.l.b16 %v900
    %v973 = vunpack.c.l.b16 %v901
    %v974 = vunpack.c.l.b16 %v902
    %v975 = vunpack.c.l.b16 %v903
    %v976 = vunpack.c.l.b16 %v904
    %v977 = vunpack.c.l.b16 %v905
    %v978 = vunpack.c.l.b16 %v906
    %v979 = vunpack.c.l.b16 %v907
    %v980 = vunpack.c.l.b16 %v908
    %v981 = vunpack.c.l.b16 %v909
    %v982 = vunpack.c.l.b16 %v910
    %v983 = vunpack.c.l.b16 %v911
    %v984 = vunpack.c.l.b16 %v912
    %v985 = vunpack.c.l.b16 %v913
    %v986 = vunpack.c.l.b16 %v914
    %v987 = vunpack.c.l.b16 %v915
    %v988 = vpack.c.b16 %v973, %v972
    %v989 = vpack.c.b16 %v975, %v974
    %v990 = vpack.c.b16 %v977, %v976
    %v991 = vpack.c.b16 %v979, %v978
    %v992 = vpack.c.b16 %v981, %v980
    %v993 = vpack.c.b16 %v983, %v982
    %v994 = vpack.c.b16 %v985, %v984
    %v995 = vpack.c.b16 %v987, %v986
    %1004 = vmatpush.bf16.msra.mxu0 %v995
    %1005 = vmatpush.bf16.msra.mxu0 %v994
    %1006 = vmatpush.bf16.msra.mxu0 %v993
    %1007 = vmatpush.bf16.msra.mxu0 %v992
    %1008 = vmatpush.bf16.msra.mxu0 %v991
    %1009 = vmatpush.bf16.msra.mxu0 %v990
    %1010 = vmatpush.bf16.msra.mxu0 %v989
    %1011 = vmatpush.bf16.msra.mxu0 %v988
    %1012 = vmatmul.bf16.gmra.mxu0 %v777
    %v1013 = vpop.f32.mrf.mxu0
    %v1014 = vadd.f32 %v520, %v1013
    %v1015 = vpop.f32.mrf.mxu0
    %1016 = vdwg.mxu0
    %v1017 = vmul.f32 %v940, %v1014
    %v1018 = vadd.f32 %v776, %v1017
    %v1019 = vtanh.pop %v1018
    %v1020 = vsub.f32 1.0, %v955
    %v1021 = vmul.f32 %v1020, %v1019
    %v1022 = vmul.f32 %v955, %v772
    %v1023 = vadd.f32 %v1021, %v1022
    %s1024 = scalar_lea.vmem [#allocation12], 8
    %1025 = vst [vmem:[%s1024] sm:$0xff] %v1023
    %v1026 = vld [vmem:[#allocation3 + $0x30] sm:$0xff]
    %v1027 = vld [vmem:[#allocation3 + $0x38] sm:$0xff]
    %v1028 = vld [vmem:[#allocation3 + $0x40] sm:$0xff]
    %v1029 = vpack.c.bf16 %v1023, %v1023
    %v1030 = vld [vmem:[#allocation10] sm:$0xff]
    %v1031 = vld [vmem:[#allocation10 + $0xc] sm:$0xff]
    %v1032 = vld [vmem:[#allocation10 + $0x18] sm:$0xff]
    %v1033 = vld [vmem:[#allocation10 + $0x24] sm:$0xff]
    %v1034 = vld [vmem:[#allocation10 + $0x30] sm:$0xff]
    %v1035 = vld [vmem:[#allocation10 + $0x3c] sm:$0xff]
    %v1036 = vld [vmem:[#allocation10 + $0x48] sm:$0xff]
    %v1037 = vld [vmem:[#allocation10 + $0x54] sm:$0xff]
    %v1038 = vld [vmem:[#allocation10 + $0x60] sm:$0xff]
    %v1039 = vld [vmem:[#allocation10 + $0x6c] sm:$0xff]
    %v1040 = vld [vmem:[#allocation10 + $0x78] sm:$0xff]
    %v1041 = vld [vmem:[#allocation10 + $0x84] sm:$0xff]
    %v1042 = vld [vmem:[#allocation10 + $0x90] sm:$0xff]
    %v1043 = vld [vmem:[#allocation10 + $0x9c] sm:$0xff]
    %v1044 = vld [vmem:[#allocation10 + $0xa8] sm:$0xff]
    %v1045 = vld [vmem:[#allocation10 + $0xb4] sm:$0xff]
    %v1062 = vunpack.c.l.b16 %v1030
    %v1063 = vunpack.c.h.b16 %v1030
    %v1064 = vunpack.c.l.b16 %v1031
    %v1065 = vunpack.c.h.b16 %v1031
    %v1066 = vunpack.c.l.b16 %v1032
    %v1067 = vunpack.c.h.b16 %v1032
    %v1068 = vunpack.c.l.b16 %v1033
    %v1069 = vunpack.c.h.b16 %v1033
    %v1070 = vunpack.c.l.b16 %v1034
    %v1071 = vunpack.c.h.b16 %v1034
    %v1072 = vunpack.c.l.b16 %v1035
    %v1073 = vunpack.c.h.b16 %v1035
    %v1074 = vunpack.c.l.b16 %v1036
    %v1075 = vunpack.c.h.b16 %v1036
    %v1076 = vunpack.c.l.b16 %v1037
    %v1077 = vunpack.c.h.b16 %v1037
    %v1078 = vunpack.c.l.b16 %v1038
    %v1079 = vunpack.c.h.b16 %v1038
    %v1080 = vunpack.c.l.b16 %v1039
    %v1081 = vunpack.c.h.b16 %v1039
    %v1082 = vunpack.c.l.b16 %v1040
    %v1083 = vunpack.c.h.b16 %v1040
    %v1084 = vunpack.c.l.b16 %v1041
    %v1085 = vunpack.c.h.b16 %v1041
    %v1086 = vunpack.c.l.b16 %v1042
    %v1087 = vunpack.c.h.b16 %v1042
    %v1088 = vunpack.c.l.b16 %v1043
    %v1089 = vunpack.c.h.b16 %v1043
    %v1090 = vunpack.c.l.b16 %v1044
    %v1091 = vunpack.c.h.b16 %v1044
    %v1092 = vunpack.c.l.b16 %v1045
    %v1093 = vunpack.c.h.b16 %v1045
    %v1094 = vpack.c.b16 %v1064, %v1062
    %v1095 = vpack.c.b16 %v1065, %v1063
    %v1096 = vpack.c.b16 %v1068, %v1066
    %v1097 = vpack.c.b16 %v1069, %v1067
    %v1098 = vpack.c.b16 %v1072, %v1070
    %v1099 = vpack.c.b16 %v1073, %v1071
    %v1100 = vpack.c.b16 %v1076, %v1074
    %v1101 = vpack.c.b16 %v1077, %v1075
    %v1102 = vpack.c.b16 %v1080, %v1078
    %v1103 = vpack.c.b16 %v1081, %v1079
    %v1104 = vpack.c.b16 %v1084, %v1082
    %v1105 = vpack.c.b16 %v1085, %v1083
    %v1106 = vpack.c.b16 %v1088, %v1086
    %v1107 = vpack.c.b16 %v1089, %v1087
    %v1108 = vpack.c.b16 %v1092, %v1090
    %v1109 = vpack.c.b16 %v1093, %v1091
    %1126 = vmatpush.bf16.msra.mxu0 %v1108
    %1127 = vmatpush.bf16.msra.mxu0 %v1106
    %1128 = vmatpush.bf16.msra.mxu0 %v1104
    %1129 = vmatpush.bf16.msra.mxu0 %v1102
    %1130 = vmatpush.bf16.msra.mxu0 %v1100
    %1131 = vmatpush.bf16.msra.mxu0 %v1098
    %1132 = vmatpush.bf16.msra.mxu0 %v1096
    %1133 = vmatpush.bf16.msra.mxu0 %v1094
    %1134 = vmatmul.bf16.gmra.mxu0 %v1029
    %v1135 = vpop.f32.mrf.mxu0
    %v1136 = vadd.f32 0.0, %v1135
    %v1137 = vpop.f32.mrf.mxu0
    %1138 = vdwg.mxu0
    %1139 = vmatpush.bf16.msra.mxu0 %v1109
    %1140 = vmatpush.bf16.msra.mxu0 %v1107
    %1141 = vmatpush.bf16.msra.mxu0 %v1105
    %1142 = vmatpush.bf16.msra.mxu0 %v1103
    %1143 = vmatpush.bf16.msra.mxu0 %v1101
    %1144 = vmatpush.bf16.msra.mxu0 %v1099
    %1145 = vmatpush.bf16.msra.mxu0 %v1097
    %1146 = vmatpush.bf16.msra.mxu0 %v1095
    %1147 = vmatmul.bf16.gmra.mxu0 %v1029
    %v1148 = vpop.f32.mrf.mxu0
    %v1149 = vadd.f32 0.0, %v1148
    %v1150 = vpop.f32.mrf.mxu0
    %1151 = vdwg.mxu0
    %v1152 = vld [vmem:[#allocation10 + $0x8] sm:$0xf]
    %v1153 = vld [vmem:[#allocation10 + $0x14] sm:$0xf]
    %v1154 = vld [vmem:[#allocation10 + $0x20] sm:$0xf]
    %v1155 = vld [vmem:[#allocation10 + $0x2c] sm:$0xf]
    %v1156 = vld [vmem:[#allocation10 + $0x38] sm:$0xf]
    %v1157 = vld [vmem:[#allocation10 + $0x44] sm:$0xf]
    %v1158 = vld [vmem:[#allocation10 + $0x50] sm:$0xf]
    %v1159 = vld [vmem:[#allocation10 + $0x5c] sm:$0xf]
    %v1160 = vld [vmem:[#allocation10 + $0x68] sm:$0xf]
    %v1161 = vld [vmem:[#allocation10 + $0x74] sm:$0xf]
    %v1162 = vld [vmem:[#allocation10 + $0x80] sm:$0xf]
    %v1163 = vld [vmem:[#allocation10 + $0x8c] sm:$0xf]
    %v1164 = vld [vmem:[#allocation10 + $0x98] sm:$0xf]
    %v1165 = vld [vmem:[#allocation10 + $0xa4] sm:$0xf]
    %v1166 = vld [vmem:[#allocation10 + $0xb0] sm:$0xf]
    %v1167 = vld [vmem:[#allocation10 + $0xbc] sm:$0xf]
    %v1168 = vadd.f32 %v1026, %v1136
    %v1169 = vadd.f32 %v1027, %v1149
    %v1170 = vxor.u32 %v1168, 2147483648
    %v1171 = vxor.u32 %v1169, 2147483648
    %v1172 = vmul.f32 %v1170, 1.442695
    %v1173 = vpow.pop %v1172
    %v1174 = vmul.f32 %v1171, 1.442695
    %v1175 = vpow.pop %v1174
    %v1176 = vadd.f32 %v1173, 1.0
    %v1177 = vadd.f32 %v1175, 1.0
    %v1178 = vrcp.pop %v1176
    %v1179 = vmul.f32 %v1176, %v1178
    %v1180 = vsub.f32 1.0, %v1179
    %v1181 = vmul.f32 %v1178, %v1180
    %v1182 = vadd.f32 %v1178, %v1181
    %vm1183 = vweird.f32 %v1176
    %vm1184 = vweird.f32 %v1178
    %vm1185 = vmor %vm1183, %vm1184
    %v1186 = vsel %vm1185, %v1178, %v1182
    %v1187 = vand.u32 2147483647, %v1176
    %vm1188 = vcmp.eq.f32.partialorder %v1187, 8.507059e+37
    %v1189 = vand.u32 %v1176, 2147483648
    %v1190 = vor.u32 1.1754944e-38, %v1189
    %v1191 = vsel %vm1188, %v1190, %v1186
    %v1192 = vmul.f32 1.0, %v1191
    %v1193 = vrcp.pop %v1177
    %v1194 = vmul.f32 %v1177, %v1193
    %v1195 = vsub.f32 1.0, %v1194
    %v1196 = vmul.f32 %v1193, %v1195
    %v1197 = vadd.f32 %v1193, %v1196
    %vm1198 = vweird.f32 %v1177
    %vm1199 = vweird.f32 %v1193
    %vm1200 = vmor %vm1198, %vm1199
    %v1201 = vsel %vm1200, %v1193, %v1197
    %v1202 = vand.u32 2147483647, %v1177
    %vm1203 = vcmp.eq.f32.partialorder %v1202, 8.507059e+37
    %v1204 = vand.u32 %v1177, 2147483648
    %v1205 = vor.u32 1.1754944e-38, %v1204
    %v1206 = vsel %vm1203, %v1205, %v1201
    %v1207 = vmul.f32 1.0, %v1206
    %v1224 = vunpack.c.l.b16 %v1152
    %v1225 = vunpack.c.l.b16 %v1153
    %v1226 = vunpack.c.l.b16 %v1154
    %v1227 = vunpack.c.l.b16 %v1155
    %v1228 = vunpack.c.l.b16 %v1156
    %v1229 = vunpack.c.l.b16 %v1157
    %v1230 = vunpack.c.l.b16 %v1158
    %v1231 = vunpack.c.l.b16 %v1159
    %v1232 = vunpack.c.l.b16 %v1160
    %v1233 = vunpack.c.l.b16 %v1161
    %v1234 = vunpack.c.l.b16 %v1162
    %v1235 = vunpack.c.l.b16 %v1163
    %v1236 = vunpack.c.l.b16 %v1164
    %v1237 = vunpack.c.l.b16 %v1165
    %v1238 = vunpack.c.l.b16 %v1166
    %v1239 = vunpack.c.l.b16 %v1167
    %v1240 = vpack.c.b16 %v1225, %v1224
    %v1241 = vpack.c.b16 %v1227, %v1226
    %v1242 = vpack.c.b16 %v1229, %v1228
    %v1243 = vpack.c.b16 %v1231, %v1230
    %v1244 = vpack.c.b16 %v1233, %v1232
    %v1245 = vpack.c.b16 %v1235, %v1234
    %v1246 = vpack.c.b16 %v1237, %v1236
    %v1247 = vpack.c.b16 %v1239, %v1238
    %1256 = vmatpush.bf16.msra.mxu0 %v1247
    %1257 = vmatpush.bf16.msra.mxu0 %v1246
    %1258 = vmatpush.bf16.msra.mxu0 %v1245
    %1259 = vmatpush.bf16.msra.mxu0 %v1244
    %1260 = vmatpush.bf16.msra.mxu0 %v1243
    %1261 = vmatpush.bf16.msra.mxu0 %v1242
    %1262 = vmatpush.bf16.msra.mxu0 %v1241
    %1263 = vmatpush.bf16.msra.mxu0 %v1240
    %1264 = vmatmul.bf16.gmra.mxu0 %v1029
    %v1265 = vpop.f32.mrf.mxu0
    %v1266 = vadd.f32 %v520, %v1265
    %v1267 = vpop.f32.mrf.mxu0
    %1268 = vdwg.mxu0
    %v1269 = vmul.f32 %v1192, %v1266
    %v1270 = vadd.f32 %v1028, %v1269
    %v1271 = vtanh.pop %v1270
    %v1272 = vsub.f32 1.0, %v1207
    %v1273 = vmul.f32 %v1272, %v1271
    %v1274 = vmul.f32 %v1207, %v1023
    %v1275 = vadd.f32 %v1273, %v1274
    %s1276 = scalar_lea.vmem [#allocation12], 16
    %1277 = vst [vmem:[%s1276] sm:$0xff] %v1275
    %v1278 = vld [vmem:[#allocation3 + $0x48] sm:$0xff]
    %v1279 = vld [vmem:[#allocation3 + $0x50] sm:$0xff]
    %v1280 = vld [vmem:[#allocation3 + $0x58] sm:$0xff]
    %v1281 = vpack.c.bf16 %v1275, %v1275
    %v1282 = vld [vmem:[#allocation10] sm:$0xff]
    %v1283 = vld [vmem:[#allocation10 + $0xc] sm:$0xff]
    %v1284 = vld [vmem:[#allocation10 + $0x18] sm:$0xff]
    %v1285 = vld [vmem:[#allocation10 + $0x24] sm:$0xff]
    %v1286 = vld [vmem:[#allocation10 + $0x30] sm:$0xff]
    %v1287 = vld [vmem:[#allocation10 + $0x3c] sm:$0xff]
    %v1288 = vld [vmem:[#allocation10 + $0x48] sm:$0xff]
    %v1289 = vld [vmem:[#allocation10 + $0x54] sm:$0xff]
    %v1290 = vld [vmem:[#allocation10 + $0x60] sm:$0xff]
    %v1291 = vld [vmem:[#allocation10 + $0x6c] sm:$0xff]
    %v1292 = vld [vmem:[#allocation10 + $0x78] sm:$0xff]
    %v1293 = vld [vmem:[#allocation10 + $0x84] sm:$0xff]
    %v1294 = vld [vmem:[#allocation10 + $0x90] sm:$0xff]
    %v1295 = vld [vmem:[#allocation10 + $0x9c] sm:$0xff]
    %v1296 = vld [vmem:[#allocation10 + $0xa8] sm:$0xff]
    %v1297 = vld [vmem:[#allocation10 + $0xb4] sm:$0xff]
    %v1314 = vunpack.c.l.b16 %v1282
    %v1315 = vunpack.c.h.b16 %v1282
    %v1316 = vunpack.c.l.b16 %v1283
    %v1317 = vunpack.c.h.b16 %v1283
    %v1318 = vunpack.c.l.b16 %v1284
    %v1319 = vunpack.c.h.b16 %v1284
    %v1320 = vunpack.c.l.b16 %v1285
    %v1321 = vunpack.c.h.b16 %v1285
    %v1322 = vunpack.c.l.b16 %v1286
    %v1323 = vunpack.c.h.b16 %v1286
    %v1324 = vunpack.c.l.b16 %v1287
    %v1325 = vunpack.c.h.b16 %v1287
    %v1326 = vunpack.c.l.b16 %v1288
    %v1327 = vunpack.c.h.b16 %v1288
    %v1328 = vunpack.c.l.b16 %v1289
    %v1329 = vunpack.c.h.b16 %v1289
    %v1330 = vunpack.c.l.b16 %v1290
    %v1331 = vunpack.c.h.b16 %v1290
    %v1332 = vunpack.c.l.b16 %v1291
    %v1333 = vunpack.c.h.b16 %v1291
    %v1334 = vunpack.c.l.b16 %v1292
    %v1335 = vunpack.c.h.b16 %v1292
    %v1336 = vunpack.c.l.b16 %v1293
    %v1337 = vunpack.c.h.b16 %v1293
    %v1338 = vunpack.c.l.b16 %v1294
    %v1339 = vunpack.c.h.b16 %v1294
    %v1340 = vunpack.c.l.b16 %v1295
    %v1341 = vunpack.c.h.b16 %v1295
    %v1342 = vunpack.c.l.b16 %v1296
    %v1343 = vunpack.c.h.b16 %v1296
    %v1344 = vunpack.c.l.b16 %v1297
    %v1345 = vunpack.c.h.b16 %v1297
    %v1346 = vpack.c.b16 %v1316, %v1314
    %v1347 = vpack.c.b16 %v1317, %v1315
    %v1348 = vpack.c.b16 %v1320, %v1318
    %v1349 = vpack.c.b16 %v1321, %v1319
    %v1350 = vpack.c.b16 %v1324, %v1322
    %v1351 = vpack.c.b16 %v1325, %v1323
    %v1352 = vpack.c.b16 %v1328, %v1326
    %v1353 = vpack.c.b16 %v1329, %v1327
    %v1354 = vpack.c.b16 %v1332, %v1330
    %v1355 = vpack.c.b16 %v1333, %v1331
    %v1356 = vpack.c.b16 %v1336, %v1334
    %v1357 = vpack.c.b16 %v1337, %v1335
    %v1358 = vpack.c.b16 %v1340, %v1338
    %v1359 = vpack.c.b16 %v1341, %v1339
    %v1360 = vpack.c.b16 %v1344, %v1342
    %v1361 = vpack.c.b16 %v1345, %v1343
    %1378 = vmatpush.bf16.msra.mxu0 %v1360
    %1379 = vmatpush.bf16.msra.mxu0 %v1358
    %1380 = vmatpush.bf16.msra.mxu0 %v1356
    %1381 = vmatpush.bf16.msra.mxu0 %v1354
    %1382 = vmatpush.bf16.msra.mxu0 %v1352
    %1383 = vmatpush.bf16.msra.mxu0 %v1350
    %1384 = vmatpush.bf16.msra.mxu0 %v1348
    %1385 = vmatpush.bf16.msra.mxu0 %v1346
    %1386 = vmatmul.bf16.gmra.mxu0 %v1281
    %v1387 = vpop.f32.mrf.mxu0
    %v1388 = vadd.f32 0.0, %v1387
    %v1389 = vpop.f32.mrf.mxu0
    %1390 = vdwg.mxu0
    %1391 = vmatpush.bf16.msra.mxu0 %v1361
    %1392 = vmatpush.bf16.msra.mxu0 %v1359
    %1393 = vmatpush.bf16.msra.mxu0 %v1357
    %1394 = vmatpush.bf16.msra.mxu0 %v1355
    %1395 = vmatpush.bf16.msra.mxu0 %v1353
    %1396 = vmatpush.bf16.msra.mxu0 %v1351
    %1397 = vmatpush.bf16.msra.mxu0 %v1349
    %1398 = vmatpush.bf16.msra.mxu0 %v1347
    %1399 = vmatmul.bf16.gmra.mxu0 %v1281
    %v1400 = vpop.f32.mrf.mxu0
    %v1401 = vadd.f32 0.0, %v1400
    %v1402 = vpop.f32.mrf.mxu0
    %1403 = vdwg.mxu0
    %v1404 = vld [vmem:[#allocation10 + $0x8] sm:$0xf]
    %v1405 = vld [vmem:[#allocation10 + $0x14] sm:$0xf]
    %v1406 = vld [vmem:[#allocation10 + $0x20] sm:$0xf]
    %v1407 = vld [vmem:[#allocation10 + $0x2c] sm:$0xf]
    %v1408 = vld [vmem:[#allocation10 + $0x38] sm:$0xf]
    %v1409 = vld [vmem:[#allocation10 + $0x44] sm:$0xf]
    %v1410 = vld [vmem:[#allocation10 + $0x50] sm:$0xf]
    %v1411 = vld [vmem:[#allocation10 + $0x5c] sm:$0xf]
    %v1412 = vld [vmem:[#allocation10 + $0x68] sm:$0xf]
    %v1413 = vld [vmem:[#allocation10 + $0x74] sm:$0xf]
    %v1414 = vld [vmem:[#allocation10 + $0x80] sm:$0xf]
    %v1415 = vld [vmem:[#allocation10 + $0x8c] sm:$0xf]
    %v1416 = vld [vmem:[#allocation10 + $0x98] sm:$0xf]
    %v1417 = vld [vmem:[#allocation10 + $0xa4] sm:$0xf]
    %v1418 = vld [vmem:[#allocation10 + $0xb0] sm:$0xf]
    %v1419 = vld [vmem:[#allocation10 + $0xbc] sm:$0xf]
    %v1420 = vadd.f32 %v1278, %v1388
    %v1421 = vadd.f32 %v1279, %v1401
    %v1422 = vxor.u32 %v1420, 2147483648
    %v1423 = vxor.u32 %v1421, 2147483648
    %v1424 = vmul.f32 %v1422, 1.442695
    %v1425 = vpow.pop %v1424
    %v1426 = vmul.f32 %v1423, 1.442695
    %v1427 = vpow.pop %v1426
    %v1428 = vadd.f32 %v1425, 1.0
    %v1429 = vadd.f32 %v1427, 1.0
    %v1430 = vrcp.pop %v1428
    %v1431 = vmul.f32 %v1428, %v1430
    %v1432 = vsub.f32 1.0, %v1431
    %v1433 = vmul.f32 %v1430, %v1432
    %v1434 = vadd.f32 %v1430, %v1433
    %vm1435 = vweird.f32 %v1428
    %vm1436 = vweird.f32 %v1430
    %vm1437 = vmor %vm1435, %vm1436
    %v1438 = vsel %vm1437, %v1430, %v1434
    %v1439 = vand.u32 2147483647, %v1428
    %vm1440 = vcmp.eq.f32.partialorder %v1439, 8.507059e+37
    %v1441 = vand.u32 %v1428, 2147483648
    %v1442 = vor.u32 1.1754944e-38, %v1441
    %v1443 = vsel %vm1440, %v1442, %v1438
    %v1444 = vmul.f32 1.0, %v1443
    %v1445 = vrcp.pop %v1429
    %v1446 = vmul.f32 %v1429, %v1445
    %v1447 = vsub.f32 1.0, %v1446
    %v1448 = vmul.f32 %v1445, %v1447
    %v1449 = vadd.f32 %v1445, %v1448
    %vm1450 = vweird.f32 %v1429
    %vm1451 = vweird.f32 %v1445
    %vm1452 = vmor %vm1450, %vm1451
    %v1453 = vsel %vm1452, %v1445, %v1449
    %v1454 = vand.u32 2147483647, %v1429
    %vm1455 = vcmp.eq.f32.partialorder %v1454, 8.507059e+37
    %v1456 = vand.u32 %v1429, 2147483648
    %v1457 = vor.u32 1.1754944e-38, %v1456
    %v1458 = vsel %vm1455, %v1457, %v1453
    %v1459 = vmul.f32 1.0, %v1458
    %v1476 = vunpack.c.l.b16 %v1404
    %v1477 = vunpack.c.l.b16 %v1405
    %v1478 = vunpack.c.l.b16 %v1406
    %v1479 = vunpack.c.l.b16 %v1407
    %v1480 = vunpack.c.l.b16 %v1408
    %v1481 = vunpack.c.l.b16 %v1409
    %v1482 = vunpack.c.l.b16 %v1410
    %v1483 = vunpack.c.l.b16 %v1411
    %v1484 = vunpack.c.l.b16 %v1412
    %v1485 = vunpack.c.l.b16 %v1413
    %v1486 = vunpack.c.l.b16 %v1414
    %v1487 = vunpack.c.l.b16 %v1415
    %v1488 = vunpack.c.l.b16 %v1416
    %v1489 = vunpack.c.l.b16 %v1417
    %v1490 = vunpack.c.l.b16 %v1418
    %v1491 = vunpack.c.l.b16 %v1419
    %v1492 = vpack.c.b16 %v1477, %v1476
    %v1493 = vpack.c.b16 %v1479, %v1478
    %v1494 = vpack.c.b16 %v1481, %v1480
    %v1495 = vpack.c.b16 %v1483, %v1482
    %v1496 = vpack.c.b16 %v1485, %v1484
    %v1497 = vpack.c.b16 %v1487, %v1486
    %v1498 = vpack.c.b16 %v1489, %v1488
    %v1499 = vpack.c.b16 %v1491, %v1490
    %1508 = vmatpush.bf16.msra.mxu0 %v1499
    %1509 = vmatpush.bf16.msra.mxu0 %v1498
    %1510 = vmatpush.bf16.msra.mxu0 %v1497
    %1511 = vmatpush.bf16.msra.mxu0 %v1496
    %1512 = vmatpush.bf16.msra.mxu0 %v1495
    %1513 = vmatpush.bf16.msra.mxu0 %v1494
    %1514 = vmatpush.bf16.msra.mxu0 %v1493
    %1515 = vmatpush.bf16.msra.mxu0 %v1492
    %1516 = vmatmul.bf16.gmra.mxu0 %v1281
    %v1517 = vpop.f32.mrf.mxu0
    %v1518 = vadd.f32 %v520, %v1517
    %v1519 = vpop.f32.mrf.mxu0
    %1520 = vdwg.mxu0
    %v1521 = vmul.f32 %v1444, %v1518
    %v1522 = vadd.f32 %v1280, %v1521
    %v1523 = vtanh.pop %v1522
    %v1524 = vsub.f32 1.0, %v1459
    %v1525 = vmul.f32 %v1524, %v1523
    %v1526 = vmul.f32 %v1459, %v1275
    %v1527 = vadd.f32 %v1525, %v1526
    %s1528 = scalar_lea.vmem [#allocation12], 24
    %1529 = vst [vmem:[%s1528] sm:$0xff] %v1527
    %v1530 = vld [vmem:[#allocation3 + $0x60] sm:$0xff]
    %v1531 = vld [vmem:[#allocation3 + $0x68] sm:$0xff]
    %v1532 = vld [vmem:[#allocation3 + $0x70] sm:$0xff]
    %v1533 = vpack.c.bf16 %v1527, %v1527
    %v1534 = vld [vmem:[#allocation10] sm:$0xff]
    %v1535 = vld [vmem:[#allocation10 + $0xc] sm:$0xff]
    %v1536 = vld [vmem:[#allocation10 + $0x18] sm:$0xff]
    %v1537 = vld [vmem:[#allocation10 + $0x24] sm:$0xff]
    %v1538 = vld [vmem:[#allocation10 + $0x30] sm:$0xff]
    %v1539 = vld [vmem:[#allocation10 + $0x3c] sm:$0xff]
    %v1540 = vld [vmem:[#allocation10 + $0x48] sm:$0xff]
    %v1541 = vld [vmem:[#allocation10 + $0x54] sm:$0xff]
    %v1542 = vld [vmem:[#allocation10 + $0x60] sm:$0xff]
    %v1543 = vld [vmem:[#allocation10 + $0x6c] sm:$0xff]
    %v1544 = vld [vmem:[#allocation10 + $0x78] sm:$0xff]
    %v1545 = vld [vmem:[#allocation10 + $0x84] sm:$0xff]
    %v1546 = vld [vmem:[#allocation10 + $0x90] sm:$0xff]
    %v1547 = vld [vmem:[#allocation10 + $0x9c] sm:$0xff]
    %v1548 = vld [vmem:[#allocation10 + $0xa8] sm:$0xff]
    %v1549 = vld [vmem:[#allocation10 + $0xb4] sm:$0xff]
    %v1566 = vunpack.c.l.b16 %v1534
    %v1567 = vunpack.c.h.b16 %v1534
    %v1568 = vunpack.c.l.b16 %v1535
    %v1569 = vunpack.c.h.b16 %v1535
    %v1570 = vunpack.c.l.b16 %v1536
    %v1571 = vunpack.c.h.b16 %v1536
    %v1572 = vunpack.c.l.b16 %v1537
    %v1573 = vunpack.c.h.b16 %v1537
    %v1574 = vunpack.c.l.b16 %v1538
    %v1575 = vunpack.c.h.b16 %v1538
    %v1576 = vunpack.c.l.b16 %v1539
    %v1577 = vunpack.c.h.b16 %v1539
    %v1578 = vunpack.c.l.b16 %v1540
    %v1579 = vunpack.c.h.b16 %v1540
    %v1580 = vunpack.c.l.b16 %v1541
    %v1581 = vunpack.c.h.b16 %v1541
    %v1582 = vunpack.c.l.b16 %v1542
    %v1583 = vunpack.c.h.b16 %v1542
    %v1584 = vunpack.c.l.b16 %v1543
    %v1585 = vunpack.c.h.b16 %v1543
    %v1586 = vunpack.c.l.b16 %v1544
    %v1587 = vunpack.c.h.b16 %v1544
    %v1588 = vunpack.c.l.b16 %v1545
    %v1589 = vunpack.c.h.b16 %v1545
    %v1590 = vunpack.c.l.b16 %v1546
    %v1591 = vunpack.c.h.b16 %v1546
    %v1592 = vunpack.c.l.b16 %v1547
    %v1593 = vunpack.c.h.b16 %v1547
    %v1594 = vunpack.c.l.b16 %v1548
    %v1595 = vunpack.c.h.b16 %v1548
    %v1596 = vunpack.c.l.b16 %v1549
    %v1597 = vunpack.c.h.b16 %v1549
    %v1598 = vpack.c.b16 %v1568, %v1566
    %v1599 = vpack.c.b16 %v1569, %v1567
    %v1600 = vpack.c.b16 %v1572, %v1570
    %v1601 = vpack.c.b16 %v1573, %v1571
    %v1602 = vpack.c.b16 %v1576, %v1574
    %v1603 = vpack.c.b16 %v1577, %v1575
    %v1604 = vpack.c.b16 %v1580, %v1578
    %v1605 = vpack.c.b16 %v1581, %v1579
    %v1606 = vpack.c.b16 %v1584, %v1582
    %v1607 = vpack.c.b16 %v1585, %v1583
    %v1608 = vpack.c.b16 %v1588, %v1586
    %v1609 = vpack.c.b16 %v1589, %v1587
    %v1610 = vpack.c.b16 %v1592, %v1590
    %v1611 = vpack.c.b16 %v1593, %v1591
    %v1612 = vpack.c.b16 %v1596, %v1594
    %v1613 = vpack.c.b16 %v1597, %v1595
    %1630 = vmatpush.bf16.msra.mxu0 %v1612
    %1631 = vmatpush.bf16.msra.mxu0 %v1610
    %1632 = vmatpush.bf16.msra.mxu0 %v1608
    %1633 = vmatpush.bf16.msra.mxu0 %v1606
    %1634 = vmatpush.bf16.msra.mxu0 %v1604
    %1635 = vmatpush.bf16.msra.mxu0 %v1602
    %1636 = vmatpush.bf16.msra.mxu0 %v1600
    %1637 = vmatpush.bf16.msra.mxu0 %v1598
    %1638 = vmatmul.bf16.gmra.mxu0 %v1533
    %v1639 = vpop.f32.mrf.mxu0
    %v1640 = vadd.f32 0.0, %v1639
    %v1641 = vpop.f32.mrf.mxu0
    %1642 = vdwg.mxu0
    %1643 = vmatpush.bf16.msra.mxu0 %v1613
    %1644 = vmatpush.bf16.msra.mxu0 %v1611
    %1645 = vmatpush.bf16.msra.mxu0 %v1609
    %1646 = vmatpush.bf16.msra.mxu0 %v1607
    %1647 = vmatpush.bf16.msra.mxu0 %v1605
    %1648 = vmatpush.bf16.msra.mxu0 %v1603
    %1649 = vmatpush.bf16.msra.mxu0 %v1601
    %1650 = vmatpush.bf16.msra.mxu0 %v1599
    %1651 = vmatmul.bf16.gmra.mxu0 %v1533
    %v1652 = vpop.f32.mrf.mxu0
    %v1653 = vadd.f32 0.0, %v1652
    %v1654 = vpop.f32.mrf.mxu0
    %1655 = vdwg.mxu0
    %v1656 = vld [vmem:[#allocation10 + $0x8] sm:$0xf]
    %v1657 = vld [vmem:[#allocation10 + $0x14] sm:$0xf]
    %v1658 = vld [vmem:[#allocation10 + $0x20] sm:$0xf]
    %v1659 = vld [vmem:[#allocation10 + $0x2c] sm:$0xf]
    %v1660 = vld [vmem:[#allocation10 + $0x38] sm:$0xf]
    %v1661 = vld [vmem:[#allocation10 + $0x44] sm:$0xf]
    %v1662 = vld [vmem:[#allocation10 + $0x50] sm:$0xf]
    %v1663 = vld [vmem:[#allocation10 + $0x5c] sm:$0xf]
    %v1664 = vld [vmem:[#allocation10 + $0x68] sm:$0xf]
    %v1665 = vld [vmem:[#allocation10 + $0x74] sm:$0xf]
    %v1666 = vld [vmem:[#allocation10 + $0x80] sm:$0xf]
    %v1667 = vld [vmem:[#allocation10 + $0x8c] sm:$0xf]
    %v1668 = vld [vmem:[#allocation10 + $0x98] sm:$0xf]
    %v1669 = vld [vmem:[#allocation10 + $0xa4] sm:$0xf]
    %v1670 = vld [vmem:[#allocation10 + $0xb0] sm:$0xf]
    %v1671 = vld [vmem:[#allocation10 + $0xbc] sm:$0xf]
    %v1672 = vadd.f32 %v1530, %v1640
    %v1673 = vadd.f32 %v1531, %v1653
    %v1674 = vxor.u32 %v1672, 2147483648
    %v1675 = vxor.u32 %v1673, 2147483648
    %v1676 = vmul.f32 %v1674, 1.442695
    %v1677 = vpow.pop %v1676
    %v1678 = vmul.f32 %v1675, 1.442695
    %v1679 = vpow.pop %v1678
    %v1680 = vadd.f32 %v1677, 1.0
    %v1681 = vadd.f32 %v1679, 1.0
    %v1682 = vrcp.pop %v1680
    %v1683 = vmul.f32 %v1680, %v1682
    %v1684 = vsub.f32 1.0, %v1683
    %v1685 = vmul.f32 %v1682, %v1684
    %v1686 = vadd.f32 %v1682, %v1685
    %vm1687 = vweird.f32 %v1680
    %vm1688 = vweird.f32 %v1682
    %vm1689 = vmor %vm1687, %vm1688
    %v1690 = vsel %vm1689, %v1682, %v1686
    %v1691 = vand.u32 2147483647, %v1680
    %vm1692 = vcmp.eq.f32.partialorder %v1691, 8.507059e+37
    %v1693 = vand.u32 %v1680, 2147483648
    %v1694 = vor.u32 1.1754944e-38, %v1693
    %v1695 = vsel %vm1692, %v1694, %v1690
    %v1696 = vmul.f32 1.0, %v1695
    %v1697 = vrcp.pop %v1681
    %v1698 = vmul.f32 %v1681, %v1697
    %v1699 = vsub.f32 1.0, %v1698
    %v1700 = vmul.f32 %v1697, %v1699
    %v1701 = vadd.f32 %v1697, %v1700
    %vm1702 = vweird.f32 %v1681
    %vm1703 = vweird.f32 %v1697
    %vm1704 = vmor %vm1702, %vm1703
    %v1705 = vsel %vm1704, %v1697, %v1701
    %v1706 = vand.u32 2147483647, %v1681
    %vm1707 = vcmp.eq.f32.partialorder %v1706, 8.507059e+37
    %v1708 = vand.u32 %v1681, 2147483648
    %v1709 = vor.u32 1.1754944e-38, %v1708
    %v1710 = vsel %vm1707, %v1709, %v1705
    %v1711 = vmul.f32 1.0, %v1710
    %v1728 = vunpack.c.l.b16 %v1656
    %v1729 = vunpack.c.l.b16 %v1657
    %v1730 = vunpack.c.l.b16 %v1658
    %v1731 = vunpack.c.l.b16 %v1659
    %v1732 = vunpack.c.l.b16 %v1660
    %v1733 = vunpack.c.l.b16 %v1661
    %v1734 = vunpack.c.l.b16 %v1662
    %v1735 = vunpack.c.l.b16 %v1663
    %v1736 = vunpack.c.l.b16 %v1664
    %v1737 = vunpack.c.l.b16 %v1665
    %v1738 = vunpack.c.l.b16 %v1666
    %v1739 = vunpack.c.l.b16 %v1667
    %v1740 = vunpack.c.l.b16 %v1668
    %v1741 = vunpack.c.l.b16 %v1669
    %v1742 = vunpack.c.l.b16 %v1670
    %v1743 = vunpack.c.l.b16 %v1671
    %v1744 = vpack.c.b16 %v1729, %v1728
    %v1745 = vpack.c.b16 %v1731, %v1730
    %v1746 = vpack.c.b16 %v1733, %v1732
    %v1747 = vpack.c.b16 %v1735, %v1734
    %v1748 = vpack.c.b16 %v1737, %v1736
    %v1749 = vpack.c.b16 %v1739, %v1738
    %v1750 = vpack.c.b16 %v1741, %v1740
    %v1751 = vpack.c.b16 %v1743, %v1742
    %1760 = vmatpush.bf16.msra.mxu0 %v1751
    %1761 = vmatpush.bf16.msra.mxu0 %v1750
    %1762 = vmatpush.bf16.msra.mxu0 %v1749
    %1763 = vmatpush.bf16.msra.mxu0 %v1748
    %1764 = vmatpush.bf16.msra.mxu0 %v1747
    %1765 = vmatpush.bf16.msra.mxu0 %v1746
    %1766 = vmatpush.bf16.msra.mxu0 %v1745
    %1767 = vmatpush.bf16.msra.mxu0 %v1744
    %1768 = vmatmul.bf16.gmra.mxu0 %v1533
    %v1769 = vpop.f32.mrf.mxu0
    %v1770 = vadd.f32 %v520, %v1769
    %v1771 = vpop.f32.mrf.mxu0
    %1772 = vdwg.mxu0
    %v1773 = vmul.f32 %v1696, %v1770
    %v1774 = vadd.f32 %v1532, %v1773
    %v1775 = vtanh.pop %v1774
    %v1776 = vsub.f32 1.0, %v1711
    %v1777 = vmul.f32 %v1776, %v1775
    %v1778 = vmul.f32 %v1711, %v1527
    %v1779 = vadd.f32 %v1777, %v1778
    %s1780 = scalar_lea.vmem [#allocation12], 32
    %1781 = vst [vmem:[%s1780] sm:$0xff] %v1779
    %v1782 = vld [vmem:[#allocation3 + $0x78] sm:$0xff]
    %v1783 = vld [vmem:[#allocation3 + $0x80] sm:$0xff]
    %v1784 = vld [vmem:[#allocation3 + $0x88] sm:$0xff]
    %v1785 = vpack.c.bf16 %v1779, %v1779
    %v1786 = vld [vmem:[#allocation10] sm:$0xff]
    %v1787 = vld [vmem:[#allocation10 + $0xc] sm:$0xff]
    %v1788 = vld [vmem:[#allocation10 + $0x18] sm:$0xff]
    %v1789 = vld [vmem:[#allocation10 + $0x24] sm:$0xff]
    %v1790 = vld [vmem:[#allocation10 + $0x30] sm:$0xff]
    %v1791 = vld [vmem:[#allocation10 + $0x3c] sm:$0xff]
    %v1792 = vld [vmem:[#allocation10 + $0x48] sm:$0xff]
    %v1793 = vld [vmem:[#allocation10 + $0x54] sm:$0xff]
    %v1794 = vld [vmem:[#allocation10 + $0x60] sm:$0xff]
    %v1795 = vld [vmem:[#allocation10 + $0x6c] sm:$0xff]
    %v1796 = vld [vmem:[#allocation10 + $0x78] sm:$0xff]
    %v1797 = vld [vmem:[#allocation10 + $0x84] sm:$0xff]
    %v1798 = vld [vmem:[#allocation10 + $0x90] sm:$0xff]
    %v1799 = vld [vmem:[#allocation10 + $0x9c] sm:$0xff]
    %v1800 = vld [vmem:[#allocation10 + $0xa8] sm:$0xff]
    %v1801 = vld [vmem:[#allocation10 + $0xb4] sm:$0xff]
    %v1818 = vunpack.c.l.b16 %v1786
    %v1819 = vunpack.c.h.b16 %v1786
    %v1820 = vunpack.c.l.b16 %v1787
    %v1821 = vunpack.c.h.b16 %v1787
    %v1822 = vunpack.c.l.b16 %v1788
    %v1823 = vunpack.c.h.b16 %v1788
    %v1824 = vunpack.c.l.b16 %v1789
    %v1825 = vunpack.c.h.b16 %v1789
    %v1826 = vunpack.c.l.b16 %v1790
    %v1827 = vunpack.c.h.b16 %v1790
    %v1828 = vunpack.c.l.b16 %v1791
    %v1829 = vunpack.c.h.b16 %v1791
    %v1830 = vunpack.c.l.b16 %v1792
    %v1831 = vunpack.c.h.b16 %v1792
    %v1832 = vunpack.c.l.b16 %v1793
    %v1833 = vunpack.c.h.b16 %v1793
    %v1834 = vunpack.c.l.b16 %v1794
    %v1835 = vunpack.c.h.b16 %v1794
    %v1836 = vunpack.c.l.b16 %v1795
    %v1837 = vunpack.c.h.b16 %v1795
    %v1838 = vunpack.c.l.b16 %v1796
    %v1839 = vunpack.c.h.b16 %v1796
    %v1840 = vunpack.c.l.b16 %v1797
    %v1841 = vunpack.c.h.b16 %v1797
    %v1842 = vunpack.c.l.b16 %v1798
    %v1843 = vunpack.c.h.b16 %v1798
    %v1844 = vunpack.c.l.b16 %v1799
    %v1845 = vunpack.c.h.b16 %v1799
    %v1846 = vunpack.c.l.b16 %v1800
    %v1847 = vunpack.c.h.b16 %v1800
    %v1848 = vunpack.c.l.b16 %v1801
    %v1849 = vunpack.c.h.b16 %v1801
    %v1850 = vpack.c.b16 %v1820, %v1818
    %v1851 = vpack.c.b16 %v1821, %v1819
    %v1852 = vpack.c.b16 %v1824, %v1822
    %v1853 = vpack.c.b16 %v1825, %v1823
    %v1854 = vpack.c.b16 %v1828, %v1826
    %v1855 = vpack.c.b16 %v1829, %v1827
    %v1856 = vpack.c.b16 %v1832, %v1830
    %v1857 = vpack.c.b16 %v1833, %v1831
    %v1858 = vpack.c.b16 %v1836, %v1834
    %v1859 = vpack.c.b16 %v1837, %v1835
    %v1860 = vpack.c.b16 %v1840, %v1838
    %v1861 = vpack.c.b16 %v1841, %v1839
    %v1862 = vpack.c.b16 %v1844, %v1842
    %v1863 = vpack.c.b16 %v1845, %v1843
    %v1864 = vpack.c.b16 %v1848, %v1846
    %v1865 = vpack.c.b16 %v1849, %v1847
    %1882 = vmatpush.bf16.msra.mxu0 %v1864
    %1883 = vmatpush.bf16.msra.mxu0 %v1862
    %1884 = vmatpush.bf16.msra.mxu0 %v1860
    %1885 = vmatpush.bf16.msra.mxu0 %v1858
    %1886 = vmatpush.bf16.msra.mxu0 %v1856
    %1887 = vmatpush.bf16.msra.mxu0 %v1854
    %1888 = vmatpush.bf16.msra.mxu0 %v1852
    %1889 = vmatpush.bf16.msra.mxu0 %v1850
    %1890 = vmatmul.bf16.gmra.mxu0 %v1785
    %v1891 = vpop.f32.mrf.mxu0
    %v1892 = vadd.f32 0.0, %v1891
    %v1893 = vpop.f32.mrf.mxu0
    %1894 = vdwg.mxu0
    %1895 = vmatpush.bf16.msra.mxu0 %v1865
    %1896 = vmatpush.bf16.msra.mxu0 %v1863
    %1897 = vmatpush.bf16.msra.mxu0 %v1861
    %1898 = vmatpush.bf16.msra.mxu0 %v1859
    %1899 = vmatpush.bf16.msra.mxu0 %v1857
    %1900 = vmatpush.bf16.msra.mxu0 %v1855
    %1901 = vmatpush.bf16.msra.mxu0 %v1853
    %1902 = vmatpush.bf16.msra.mxu0 %v1851
    %1903 = vmatmul.bf16.gmra.mxu0 %v1785
    %v1904 = vpop.f32.mrf.mxu0
    %v1905 = vadd.f32 0.0, %v1904
    %v1906 = vpop.f32.mrf.mxu0
    %1907 = vdwg.mxu0
    %v1908 = vld [vmem:[#allocation10 + $0x8] sm:$0xf]
    %v1909 = vld [vmem:[#allocation10 + $0x14] sm:$0xf]
    %v1910 = vld [vmem:[#allocation10 + $0x20] sm:$0xf]
    %v1911 = vld [vmem:[#allocation10 + $0x2c] sm:$0xf]
    %v1912 = vld [vmem:[#allocation10 + $0x38] sm:$0xf]
    %v1913 = vld [vmem:[#allocation10 + $0x44] sm:$0xf]
    %v1914 = vld [vmem:[#allocation10 + $0x50] sm:$0xf]
    %v1915 = vld [vmem:[#allocation10 + $0x5c] sm:$0xf]
    %v1916 = vld [vmem:[#allocation10 + $0x68] sm:$0xf]
    %v1917 = vld [vmem:[#allocation10 + $0x74] sm:$0xf]
    %v1918 = vld [vmem:[#allocation10 + $0x80] sm:$0xf]
    %v1919 = vld [vmem:[#allocation10 + $0x8c] sm:$0xf]
    %v1920 = vld [vmem:[#allocation10 + $0x98] sm:$0xf]
    %v1921 = vld [vmem:[#allocation10 + $0xa4] sm:$0xf]
    %v1922 = vld [vmem:[#allocation10 + $0xb0] sm:$0xf]
    %v1923 = vld [vmem:[#allocation10 + $0xbc] sm:$0xf]
    %v1924 = vadd.f32 %v1782, %v1892
    %v1925 = vadd.f32 %v1783, %v1905
    %v1926 = vxor.u32 %v1924, 2147483648
    %v1927 = vxor.u32 %v1925, 2147483648
    %v1928 = vmul.f32 %v1926, 1.442695
    %v1929 = vpow.pop %v1928
    %v1930 = vmul.f32 %v1927, 1.442695
    %v1931 = vpow.pop %v1930
    %v1932 = vadd.f32 %v1929, 1.0
    %v1933 = vadd.f32 %v1931, 1.0
    %v1934 = vrcp.pop %v1932
    %v1935 = vmul.f32 %v1932, %v1934
    %v1936 = vsub.f32 1.0, %v1935
    %v1937 = vmul.f32 %v1934, %v1936
    %v1938 = vadd.f32 %v1934, %v1937
    %vm1939 = vweird.f32 %v1932
    %vm1940 = vweird.f32 %v1934
    %vm1941 = vmor %vm1939, %vm1940
    %v1942 = vsel %vm1941, %v1934, %v1938
    %v1943 = vand.u32 2147483647, %v1932
    %vm1944 = vcmp.eq.f32.partialorder %v1943, 8.507059e+37
    %v1945 = vand.u32 %v1932, 2147483648
    %v1946 = vor.u32 1.1754944e-38, %v1945
    %v1947 = vsel %vm1944, %v1946, %v1942
    %v1948 = vmul.f32 1.0, %v1947
    %v1949 = vrcp.pop %v1933
    %v1950 = vmul.f32 %v1933, %v1949
    %v1951 = vsub.f32 1.0, %v1950
    %v1952 = vmul.f32 %v1949, %v1951
    %v1953 = vadd.f32 %v1949, %v1952
    %vm1954 = vweird.f32 %v1933
    %vm1955 = vweird.f32 %v1949
    %vm1956 = vmor %vm1954, %vm1955
    %v1957 = vsel %vm1956, %v1949, %v1953
    %v1958 = vand.u32 2147483647, %v1933
    %vm1959 = vcmp.eq.f32.partialorder %v1958, 8.507059e+37
    %v1960 = vand.u32 %v1933, 2147483648
    %v1961 = vor.u32 1.1754944e-38, %v1960
    %v1962 = vsel %vm1959, %v1961, %v1957
    %v1963 = vmul.f32 1.0, %v1962
    %v1980 = vunpack.c.l.b16 %v1908
    %v1981 = vunpack.c.l.b16 %v1909
    %v1982 = vunpack.c.l.b16 %v1910
    %v1983 = vunpack.c.l.b16 %v1911
    %v1984 = vunpack.c.l.b16 %v1912
    %v1985 = vunpack.c.l.b16 %v1913
    %v1986 = vunpack.c.l.b16 %v1914
    %v1987 = vunpack.c.l.b16 %v1915
    %v1988 = vunpack.c.l.b16 %v1916
    %v1989 = vunpack.c.l.b16 %v1917
    %v1990 = vunpack.c.l.b16 %v1918
    %v1991 = vunpack.c.l.b16 %v1919
    %v1992 = vunpack.c.l.b16 %v1920
    %v1993 = vunpack.c.l.b16 %v1921
    %v1994 = vunpack.c.l.b16 %v1922
    %v1995 = vunpack.c.l.b16 %v1923
    %v1996 = vpack.c.b16 %v1981, %v1980
    %v1997 = vpack.c.b16 %v1983, %v1982
    %v1998 = vpack.c.b16 %v1985, %v1984
    %v1999 = vpack.c.b16 %v1987, %v1986
    %v2000 = vpack.c.b16 %v1989, %v1988
    %v2001 = vpack.c.b16 %v1991, %v1990
    %v2002 = vpack.c.b16 %v1993, %v1992
    %v2003 = vpack.c.b16 %v1995, %v1994
    %2012 = vmatpush.bf16.msra.mxu0 %v2003
    %2013 = vmatpush.bf16.msra.mxu0 %v2002
    %2014 = vmatpush.bf16.msra.mxu0 %v2001
    %2015 = vmatpush.bf16.msra.mxu0 %v2000
    %2016 = vmatpush.bf16.msra.mxu0 %v1999
    %2017 = vmatpush.bf16.msra.mxu0 %v1998
    %2018 = vmatpush.bf16.msra.mxu0 %v1997
    %2019 = vmatpush.bf16.msra.mxu0 %v1996
    %2020 = vmatmul.bf16.gmra.mxu0 %v1785
    %v2021 = vpop.f32.mrf.mxu0
    %v2022 = vadd.f32 %v520, %v2021
    %v2023 = vpop.f32.mrf.mxu0
    %2024 = vdwg.mxu0
    %v2025 = vmul.f32 %v1948, %v2022
    %v2026 = vadd.f32 %v1784, %v2025
    %v2027 = vtanh.pop %v2026
    %v2028 = vsub.f32 1.0, %v1963
    %v2029 = vmul.f32 %v2028, %v2027
    %v2030 = vmul.f32 %v1963, %v1779
    %v2031 = vadd.f32 %v2029, %v2030
    %s2032 = scalar_lea.vmem [#allocation12], 40
    %2033 = vst [vmem:[%s2032] sm:$0xff] %v2031
    %v2034 = vld [vmem:[#allocation3 + $0x90] sm:$0xff]
    %v2035 = vld [vmem:[#allocation3 + $0x98] sm:$0xff]
    %v2036 = vld [vmem:[#allocation3 + $0xa0] sm:$0xff]
    %v2037 = vpack.c.bf16 %v2031, %v2031
    %v2038 = vld [vmem:[#allocation10] sm:$0xff]
    %v2039 = vld [vmem:[#allocation10 + $0xc] sm:$0xff]
    %v2040 = vld [vmem:[#allocation10 + $0x18] sm:$0xff]
    %v2041 = vld [vmem:[#allocation10 + $0x24] sm:$0xff]
    %v2042 = vld [vmem:[#allocation10 + $0x30] sm:$0xff]
    %v2043 = vld [vmem:[#allocation10 + $0x3c] sm:$0xff]
    %v2044 = vld [vmem:[#allocation10 + $0x48] sm:$0xff]
    %v2045 = vld [vmem:[#allocation10 + $0x54] sm:$0xff]
    %v2046 = vld [vmem:[#allocation10 + $0x60] sm:$0xff]
    %v2047 = vld [vmem:[#allocation10 + $0x6c] sm:$0xff]
    %v2048 = vld [vmem:[#allocation10 + $0x78] sm:$0xff]
    %v2049 = vld [vmem:[#allocation10 + $0x84] sm:$0xff]
    %v2050 = vld [vmem:[#allocation10 + $0x90] sm:$0xff]
    %v2051 = vld [vmem:[#allocation10 + $0x9c] sm:$0xff]
    %v2052 = vld [vmem:[#allocation10 + $0xa8] sm:$0xff]
    %v2053 = vld [vmem:[#allocation10 + $0xb4] sm:$0xff]
    %v2070 = vunpack.c.l.b16 %v2038
    %v2071 = vunpack.c.h.b16 %v2038
    %v2072 = vunpack.c.l.b16 %v2039
    %v2073 = vunpack.c.h.b16 %v2039
    %v2074 = vunpack.c.l.b16 %v2040
    %v2075 = vunpack.c.h.b16 %v2040
    %v2076 = vunpack.c.l.b16 %v2041
    %v2077 = vunpack.c.h.b16 %v2041
    %v2078 = vunpack.c.l.b16 %v2042
    %v2079 = vunpack.c.h.b16 %v2042
    %v2080 = vunpack.c.l.b16 %v2043
    %v2081 = vunpack.c.h.b16 %v2043
    %v2082 = vunpack.c.l.b16 %v2044
    %v2083 = vunpack.c.h.b16 %v2044
    %v2084 = vunpack.c.l.b16 %v2045
    %v2085 = vunpack.c.h.b16 %v2045
    %v2086 = vunpack.c.l.b16 %v2046
    %v2087 = vunpack.c.h.b16 %v2046
    %v2088 = vunpack.c.l.b16 %v2047
    %v2089 = vunpack.c.h.b16 %v2047
    %v2090 = vunpack.c.l.b16 %v2048
    %v2091 = vunpack.c.h.b16 %v2048
    %v2092 = vunpack.c.l.b16 %v2049
    %v2093 = vunpack.c.h.b16 %v2049
    %v2094 = vunpack.c.l.b16 %v2050
    %v2095 = vunpack.c.h.b16 %v2050
    %v2096 = vunpack.c.l.b16 %v2051
    %v2097 = vunpack.c.h.b16 %v2051
    %v2098 = vunpack.c.l.b16 %v2052
    %v2099 = vunpack.c.h.b16 %v2052
    %v2100 = vunpack.c.l.b16 %v2053
    %v2101 = vunpack.c.h.b16 %v2053
    %v2102 = vpack.c.b16 %v2072, %v2070
    %v2103 = vpack.c.b16 %v2073, %v2071
    %v2104 = vpack.c.b16 %v2076, %v2074
    %v2105 = vpack.c.b16 %v2077, %v2075
    %v2106 = vpack.c.b16 %v2080, %v2078
    %v2107 = vpack.c.b16 %v2081, %v2079
    %v2108 = vpack.c.b16 %v2084, %v2082
    %v2109 = vpack.c.b16 %v2085, %v2083
    %v2110 = vpack.c.b16 %v2088, %v2086
    %v2111 = vpack.c.b16 %v2089, %v2087
    %v2112 = vpack.c.b16 %v2092, %v2090
    %v2113 = vpack.c.b16 %v2093, %v2091
    %v2114 = vpack.c.b16 %v2096, %v2094
    %v2115 = vpack.c.b16 %v2097, %v2095
    %v2116 = vpack.c.b16 %v2100, %v2098
    %v2117 = vpack.c.b16 %v2101, %v2099
    %2134 = vmatpush.bf16.msra.mxu0 %v2116
    %2135 = vmatpush.bf16.msra.mxu0 %v2114
    %2136 = vmatpush.bf16.msra.mxu0 %v2112
    %2137 = vmatpush.bf16.msra.mxu0 %v2110
    %2138 = vmatpush.bf16.msra.mxu0 %v2108
    %2139 = vmatpush.bf16.msra.mxu0 %v2106
    %2140 = vmatpush.bf16.msra.mxu0 %v2104
    %2141 = vmatpush.bf16.msra.mxu0 %v2102
    %2142 = vmatmul.bf16.gmra.mxu0 %v2037
    %v2143 = vpop.f32.mrf.mxu0
    %v2144 = vadd.f32 0.0, %v2143
    %v2145 = vpop.f32.mrf.mxu0
    %2146 = vdwg.mxu0
    %2147 = vmatpush.bf16.msra.mxu0 %v2117
    %2148 = vmatpush.bf16.msra.mxu0 %v2115
    %2149 = vmatpush.bf16.msra.mxu0 %v2113
    %2150 = vmatpush.bf16.msra.mxu0 %v2111
    %2151 = vmatpush.bf16.msra.mxu0 %v2109
    %2152 = vmatpush.bf16.msra.mxu0 %v2107
    %2153 = vmatpush.bf16.msra.mxu0 %v2105
    %2154 = vmatpush.bf16.msra.mxu0 %v2103
    %2155 = vmatmul.bf16.gmra.mxu0 %v2037
    %v2156 = vpop.f32.mrf.mxu0
    %v2157 = vadd.f32 0.0, %v2156
    %v2158 = vpop.f32.mrf.mxu0
    %2159 = vdwg.mxu0
    %v2160 = vld [vmem:[#allocation10 + $0x8] sm:$0xf]
    %v2161 = vld [vmem:[#allocation10 + $0x14] sm:$0xf]
    %v2162 = vld [vmem:[#allocation10 + $0x20] sm:$0xf]
    %v2163 = vld [vmem:[#allocation10 + $0x2c] sm:$0xf]
    %v2164 = vld [vmem:[#allocation10 + $0x38] sm:$0xf]
    %v2165 = vld [vmem:[#allocation10 + $0x44] sm:$0xf]
    %v2166 = vld [vmem:[#allocation10 + $0x50] sm:$0xf]
    %v2167 = vld [vmem:[#allocation10 + $0x5c] sm:$0xf]
    %v2168 = vld [vmem:[#allocation10 + $0x68] sm:$0xf]
    %v2169 = vld [vmem:[#allocation10 + $0x74] sm:$0xf]
    %v2170 = vld [vmem:[#allocation10 + $0x80] sm:$0xf]
    %v2171 = vld [vmem:[#allocation10 + $0x8c] sm:$0xf]
    %v2172 = vld [vmem:[#allocation10 + $0x98] sm:$0xf]
    %v2173 = vld [vmem:[#allocation10 + $0xa4] sm:$0xf]
    %v2174 = vld [vmem:[#allocation10 + $0xb0] sm:$0xf]
    %v2175 = vld [vmem:[#allocation10 + $0xbc] sm:$0xf]
    %v2176 = vadd.f32 %v2034, %v2144
    %v2177 = vadd.f32 %v2035, %v2157
    %v2178 = vxor.u32 %v2176, 2147483648
    %v2179 = vxor.u32 %v2177, 2147483648
    %v2180 = vmul.f32 %v2178, 1.442695
    %v2181 = vpow.pop %v2180
    %v2182 = vmul.f32 %v2179, 1.442695
    %v2183 = vpow.pop %v2182
    %v2184 = vadd.f32 %v2181, 1.0
    %v2185 = vadd.f32 %v2183, 1.0
    %v2186 = vrcp.pop %v2184
    %v2187 = vmul.f32 %v2184, %v2186
    %v2188 = vsub.f32 1.0, %v2187
    %v2189 = vmul.f32 %v2186, %v2188
    %v2190 = vadd.f32 %v2186, %v2189
    %vm2191 = vweird.f32 %v2184
    %vm2192 = vweird.f32 %v2186
    %vm2193 = vmor %vm2191, %vm2192
    %v2194 = vsel %vm2193, %v2186, %v2190
    %v2195 = vand.u32 2147483647, %v2184
    %vm2196 = vcmp.eq.f32.partialorder %v2195, 8.507059e+37
    %v2197 = vand.u32 %v2184, 2147483648
    %v2198 = vor.u32 1.1754944e-38, %v2197
    %v2199 = vsel %vm2196, %v2198, %v2194
    %v2200 = vmul.f32 1.0, %v2199
    %v2201 = vrcp.pop %v2185
    %v2202 = vmul.f32 %v2185, %v2201
    %v2203 = vsub.f32 1.0, %v2202
    %v2204 = vmul.f32 %v2201, %v2203
    %v2205 = vadd.f32 %v2201, %v2204
    %vm2206 = vweird.f32 %v2185
    %vm2207 = vweird.f32 %v2201
    %vm2208 = vmor %vm2206, %vm2207
    %v2209 = vsel %vm2208, %v2201, %v2205
    %v2210 = vand.u32 2147483647, %v2185
    %vm2211 = vcmp.eq.f32.partialorder %v2210, 8.507059e+37
    %v2212 = vand.u32 %v2185, 2147483648
    %v2213 = vor.u32 1.1754944e-38, %v2212
    %v2214 = vsel %vm2211, %v2213, %v2209
    %v2215 = vmul.f32 1.0, %v2214
    %v2232 = vunpack.c.l.b16 %v2160
    %v2233 = vunpack.c.l.b16 %v2161
    %v2234 = vunpack.c.l.b16 %v2162
    %v2235 = vunpack.c.l.b16 %v2163
    %v2236 = vunpack.c.l.b16 %v2164
    %v2237 = vunpack.c.l.b16 %v2165
    %v2238 = vunpack.c.l.b16 %v2166
    %v2239 = vunpack.c.l.b16 %v2167
    %v2240 = vunpack.c.l.b16 %v2168
    %v2241 = vunpack.c.l.b16 %v2169
    %v2242 = vunpack.c.l.b16 %v2170
    %v2243 = vunpack.c.l.b16 %v2171
    %v2244 = vunpack.c.l.b16 %v2172
    %v2245 = vunpack.c.l.b16 %v2173
    %v2246 = vunpack.c.l.b16 %v2174
    %v2247 = vunpack.c.l.b16 %v2175
    %v2248 = vpack.c.b16 %v2233, %v2232
    %v2249 = vpack.c.b16 %v2235, %v2234
    %v2250 = vpack.c.b16 %v2237, %v2236
    %v2251 = vpack.c.b16 %v2239, %v2238
    %v2252 = vpack.c.b16 %v2241, %v2240
    %v2253 = vpack.c.b16 %v2243, %v2242
    %v2254 = vpack.c.b16 %v2245, %v2244
    %v2255 = vpack.c.b16 %v2247, %v2246
    %2264 = vmatpush.bf16.msra.mxu0 %v2255
    %2265 = vmatpush.bf16.msra.mxu0 %v2254
    %2266 = vmatpush.bf16.msra.mxu0 %v2253
    %2267 = vmatpush.bf16.msra.mxu0 %v2252
    %2268 = vmatpush.bf16.msra.mxu0 %v2251
    %2269 = vmatpush.bf16.msra.mxu0 %v2250
    %2270 = vmatpush.bf16.msra.mxu0 %v2249
    %2271 = vmatpush.bf16.msra.mxu0 %v2248
    %2272 = vmatmul.bf16.gmra.mxu0 %v2037
    %v2273 = vpop.f32.mrf.mxu0
    %v2274 = vadd.f32 %v520, %v2273
    %v2275 = vpop.f32.mrf.mxu0
    %2276 = vdwg.mxu0
    %v2277 = vmul.f32 %v2200, %v2274
    %v2278 = vadd.f32 %v2036, %v2277
    %v2279 = vtanh.pop %v2278
    %v2280 = vsub.f32 1.0, %v2215
    %v2281 = vmul.f32 %v2280, %v2279
    %v2282 = vmul.f32 %v2215, %v2031
    %v2283 = vadd.f32 %v2281, %v2282
    %s2284 = scalar_lea.vmem [#allocation12], 48
    %2285 = vst [vmem:[%s2284] sm:$0xff] %v2283
    %v2286 = vld [vmem:[#allocation3 + $0xa8] sm:$0xff]
    %v2287 = vld [vmem:[#allocation3 + $0xb0] sm:$0xff]
    %v2288 = vld [vmem:[#allocation3 + $0xb8] sm:$0xff]
    %v2289 = vpack.c.bf16 %v2283, %v2283
    %v2290 = vld [vmem:[#allocation10] sm:$0xff]
    %v2291 = vld [vmem:[#allocation10 + $0xc] sm:$0xff]
    %v2292 = vld [vmem:[#allocation10 + $0x18] sm:$0xff]
    %v2293 = vld [vmem:[#allocation10 + $0x24] sm:$0xff]
    %v2294 = vld [vmem:[#allocation10 + $0x30] sm:$0xff]
    %v2295 = vld [vmem:[#allocation10 + $0x3c] sm:$0xff]
    %v2296 = vld [vmem:[#allocation10 + $0x48] sm:$0xff]
    %v2297 = vld [vmem:[#allocation10 + $0x54] sm:$0xff]
    %v2298 = vld [vmem:[#allocation10 + $0x60] sm:$0xff]
    %v2299 = vld [vmem:[#allocation10 + $0x6c] sm:$0xff]
    %v2300 = vld [vmem:[#allocation10 + $0x78] sm:$0xff]
    %v2301 = vld [vmem:[#allocation10 + $0x84] sm:$0xff]
    %v2302 = vld [vmem:[#allocation10 + $0x90] sm:$0xff]
    %v2303 = vld [vmem:[#allocation10 + $0x9c] sm:$0xff]
    %v2304 = vld [vmem:[#allocation10 + $0xa8] sm:$0xff]
    %v2305 = vld [vmem:[#allocation10 + $0xb4] sm:$0xff]
    %v2322 = vunpack.c.l.b16 %v2290
    %v2323 = vunpack.c.h.b16 %v2290
    %v2324 = vunpack.c.l.b16 %v2291
    %v2325 = vunpack.c.h.b16 %v2291
    %v2326 = vunpack.c.l.b16 %v2292
    %v2327 = vunpack.c.h.b16 %v2292
    %v2328 = vunpack.c.l.b16 %v2293
    %v2329 = vunpack.c.h.b16 %v2293
    %v2330 = vunpack.c.l.b16 %v2294
    %v2331 = vunpack.c.h.b16 %v2294
    %v2332 = vunpack.c.l.b16 %v2295
    %v2333 = vunpack.c.h.b16 %v2295
    %v2334 = vunpack.c.l.b16 %v2296
    %v2335 = vunpack.c.h.b16 %v2296
    %v2336 = vunpack.c.l.b16 %v2297
    %v2337 = vunpack.c.h.b16 %v2297
    %v2338 = vunpack.c.l.b16 %v2298
    %v2339 = vunpack.c.h.b16 %v2298
    %v2340 = vunpack.c.l.b16 %v2299
    %v2341 = vunpack.c.h.b16 %v2299
    %v2342 = vunpack.c.l.b16 %v2300
    %v2343 = vunpack.c.h.b16 %v2300
    %v2344 = vunpack.c.l.b16 %v2301
    %v2345 = vunpack.c.h.b16 %v2301
    %v2346 = vunpack.c.l.b16 %v2302
    %v2347 = vunpack.c.h.b16 %v2302
    %v2348 = vunpack.c.l.b16 %v2303
    %v2349 = vunpack.c.h.b16 %v2303
    %v2350 = vunpack.c.l.b16 %v2304
    %v2351 = vunpack.c.h.b16 %v2304
    %v2352 = vunpack.c.l.b16 %v2305
    %v2353 = vunpack.c.h.b16 %v2305
    %v2354 = vpack.c.b16 %v2324, %v2322
    %v2355 = vpack.c.b16 %v2325, %v2323
    %v2356 = vpack.c.b16 %v2328, %v2326
    %v2357 = vpack.c.b16 %v2329, %v2327
    %v2358 = vpack.c.b16 %v2332, %v2330
    %v2359 = vpack.c.b16 %v2333, %v2331
    %v2360 = vpack.c.b16 %v2336, %v2334
    %v2361 = vpack.c.b16 %v2337, %v2335
    %v2362 = vpack.c.b16 %v2340, %v2338
    %v2363 = vpack.c.b16 %v2341, %v2339
    %v2364 = vpack.c.b16 %v2344, %v2342
    %v2365 = vpack.c.b16 %v2345, %v2343
    %v2366 = vpack.c.b16 %v2348, %v2346
    %v2367 = vpack.c.b16 %v2349, %v2347
    %v2368 = vpack.c.b16 %v2352, %v2350
    %v2369 = vpack.c.b16 %v2353, %v2351
    %2386 = vmatpush.bf16.msra.mxu0 %v2368
    %2387 = vmatpush.bf16.msra.mxu0 %v2366
    %2388 = vmatpush.bf16.msra.mxu0 %v2364
    %2389 = vmatpush.bf16.msra.mxu0 %v2362
    %2390 = vmatpush.bf16.msra.mxu0 %v2360
    %2391 = vmatpush.bf16.msra.mxu0 %v2358
    %2392 = vmatpush.bf16.msra.mxu0 %v2356
    %2393 = vmatpush.bf16.msra.mxu0 %v2354
    %2394 = vmatmul.bf16.gmra.mxu0 %v2289
    %v2395 = vpop.f32.mrf.mxu0
    %v2396 = vadd.f32 0.0, %v2395
    %v2397 = vpop.f32.mrf.mxu0
    %2398 = vdwg.mxu0
    %2399 = vmatpush.bf16.msra.mxu0 %v2369
    %2400 = vmatpush.bf16.msra.mxu0 %v2367
    %2401 = vmatpush.bf16.msra.mxu0 %v2365
    %2402 = vmatpush.bf16.msra.mxu0 %v2363
    %2403 = vmatpush.bf16.msra.mxu0 %v2361
    %2404 = vmatpush.bf16.msra.mxu0 %v2359
    %2405 = vmatpush.bf16.msra.mxu0 %v2357
    %2406 = vmatpush.bf16.msra.mxu0 %v2355
    %2407 = vmatmul.bf16.gmra.mxu0 %v2289
    %v2408 = vpop.f32.mrf.mxu0
    %v2409 = vadd.f32 0.0, %v2408
    %v2410 = vpop.f32.mrf.mxu0
    %2411 = vdwg.mxu0
    %v2412 = vld [vmem:[#allocation10 + $0x8] sm:$0xf]
    %v2413 = vld [vmem:[#allocation10 + $0x14] sm:$0xf]
    %v2414 = vld [vmem:[#allocation10 + $0x20] sm:$0xf]
    %v2415 = vld [vmem:[#allocation10 + $0x2c] sm:$0xf]
    %v2416 = vld [vmem:[#allocation10 + $0x38] sm:$0xf]
    %v2417 = vld [vmem:[#allocation10 + $0x44] sm:$0xf]
    %v2418 = vld [vmem:[#allocation10 + $0x50] sm:$0xf]
    %v2419 = vld [vmem:[#allocation10 + $0x5c] sm:$0xf]
    %v2420 = vld [vmem:[#allocation10 + $0x68] sm:$0xf]
    %v2421 = vld [vmem:[#allocation10 + $0x74] sm:$0xf]
    %v2422 = vld [vmem:[#allocation10 + $0x80] sm:$0xf]
    %v2423 = vld [vmem:[#allocation10 + $0x8c] sm:$0xf]
    %v2424 = vld [vmem:[#allocation10 + $0x98] sm:$0xf]
    %v2425 = vld [vmem:[#allocation10 + $0xa4] sm:$0xf]
    %v2426 = vld [vmem:[#allocation10 + $0xb0] sm:$0xf]
    %v2427 = vld [vmem:[#allocation10 + $0xbc] sm:$0xf]
    %v2428 = vadd.f32 %v2286, %v2396
    %v2429 = vadd.f32 %v2287, %v2409
    %v2430 = vxor.u32 %v2428, 2147483648
    %v2431 = vxor.u32 %v2429, 2147483648
    %v2432 = vmul.f32 %v2430, 1.442695
    %v2433 = vpow.pop %v2432
    %v2434 = vmul.f32 %v2431, 1.442695
    %v2435 = vpow.pop %v2434
    %v2436 = vadd.f32 %v2433, 1.0
    %v2437 = vadd.f32 %v2435, 1.0
    %v2438 = vrcp.pop %v2436
    %v2439 = vmul.f32 %v2436, %v2438
    %v2440 = vsub.f32 1.0, %v2439
    %v2441 = vmul.f32 %v2438, %v2440
    %v2442 = vadd.f32 %v2438, %v2441
    %vm2443 = vweird.f32 %v2436
    %vm2444 = vweird.f32 %v2438
    %vm2445 = vmor %vm2443, %vm2444
    %v2446 = vsel %vm2445, %v2438, %v2442
    %v2447 = vand.u32 2147483647, %v2436
    %vm2448 = vcmp.eq.f32.partialorder %v2447, 8.507059e+37
    %v2449 = vand.u32 %v2436, 2147483648
    %v2450 = vor.u32 1.1754944e-38, %v2449
    %v2451 = vsel %vm2448, %v2450, %v2446
    %v2452 = vmul.f32 1.0, %v2451
    %v2453 = vrcp.pop %v2437
    %v2454 = vmul.f32 %v2437, %v2453
    %v2455 = vsub.f32 1.0, %v2454
    %v2456 = vmul.f32 %v2453, %v2455
    %v2457 = vadd.f32 %v2453, %v2456
    %vm2458 = vweird.f32 %v2437
    %vm2459 = vweird.f32 %v2453
    %vm2460 = vmor %vm2458, %vm2459
    %v2461 = vsel %vm2460, %v2453, %v2457
    %v2462 = vand.u32 2147483647, %v2437
    %vm2463 = vcmp.eq.f32.partialorder %v2462, 8.507059e+37
    %v2464 = vand.u32 %v2437, 2147483648
    %v2465 = vor.u32 1.1754944e-38, %v2464
    %v2466 = vsel %vm2463, %v2465, %v2461
    %v2467 = vmul.f32 1.0, %v2466
    %v2484 = vunpack.c.l.b16 %v2412
    %v2485 = vunpack.c.l.b16 %v2413
    %v2486 = vunpack.c.l.b16 %v2414
    %v2487 = vunpack.c.l.b16 %v2415
    %v2488 = vunpack.c.l.b16 %v2416
    %v2489 = vunpack.c.l.b16 %v2417
    %v2490 = vunpack.c.l.b16 %v2418
    %v2491 = vunpack.c.l.b16 %v2419
    %v2492 = vunpack.c.l.b16 %v2420
    %v2493 = vunpack.c.l.b16 %v2421
    %v2494 = vunpack.c.l.b16 %v2422
    %v2495 = vunpack.c.l.b16 %v2423
    %v2496 = vunpack.c.l.b16 %v2424
    %v2497 = vunpack.c.l.b16 %v2425
    %v2498 = vunpack.c.l.b16 %v2426
    %v2499 = vunpack.c.l.b16 %v2427
    %v2500 = vpack.c.b16 %v2485, %v2484
    %v2501 = vpack.c.b16 %v2487, %v2486
    %v2502 = vpack.c.b16 %v2489, %v2488
    %v2503 = vpack.c.b16 %v2491, %v2490
    %v2504 = vpack.c.b16 %v2493, %v2492
    %v2505 = vpack.c.b16 %v2495, %v2494
    %v2506 = vpack.c.b16 %v2497, %v2496
    %v2507 = vpack.c.b16 %v2499, %v2498
    %2516 = vmatpush.bf16.msra.mxu0 %v2507
    %2517 = vmatpush.bf16.msra.mxu0 %v2506
    %2518 = vmatpush.bf16.msra.mxu0 %v2505
    %2519 = vmatpush.bf16.msra.mxu0 %v2504
    %2520 = vmatpush.bf16.msra.mxu0 %v2503
    %2521 = vmatpush.bf16.msra.mxu0 %v2502
    %2522 = vmatpush.bf16.msra.mxu0 %v2501
    %2523 = vmatpush.bf16.msra.mxu0 %v2500
    %2524 = vmatmul.bf16.gmra.mxu0 %v2289
    %v2525 = vpop.f32.mrf.mxu0
    %v2526 = vadd.f32 %v520, %v2525
    %v2527 = vpop.f32.mrf.mxu0
    %2528 = vdwg.mxu0
    %v2529 = vmul.f32 %v2452, %v2526
    %v2530 = vadd.f32 %v2288, %v2529
    %v2531 = vtanh.pop %v2530
    %v2532 = vsub.f32 1.0, %v2467
    %v2533 = vmul.f32 %v2532, %v2531
    %v2534 = vmul.f32 %v2467, %v2283
    %v2535 = vadd.f32 %v2533, %v2534
    %s2536 = scalar_lea.vmem [#allocation12], 56
    %2537 = vst [vmem:[%s2536] sm:$0xff] %v2535
    %v2538 = vld [vmem:[#allocation3 + $0xc0] sm:$0xff]
    %v2539 = vld [vmem:[#allocation3 + $0xc8] sm:$0xff]
    %v2540 = vld [vmem:[#allocation3 + $0xd0] sm:$0xff]
    %v2541 = vpack.c.bf16 %v2535, %v2535
    %v2542 = vld [vmem:[#allocation10] sm:$0xff]
    %v2543 = vld [vmem:[#allocation10 + $0xc] sm:$0xff]
    %v2544 = vld [vmem:[#allocation10 + $0x18] sm:$0xff]
    %v2545 = vld [vmem:[#allocation10 + $0x24] sm:$0xff]
    %v2546 = vld [vmem:[#allocation10 + $0x30] sm:$0xff]
    %v2547 = vld [vmem:[#allocation10 + $0x3c] sm:$0xff]
    %v2548 = vld [vmem:[#allocation10 + $0x48] sm:$0xff]
    %v2549 = vld [vmem:[#allocation10 + $0x54] sm:$0xff]
    %v2550 = vld [vmem:[#allocation10 + $0x60] sm:$0xff]
    %v2551 = vld [vmem:[#allocation10 + $0x6c] sm:$0xff]
    %v2552 = vld [vmem:[#allocation10 + $0x78] sm:$0xff]
    %v2553 = vld [vmem:[#allocation10 + $0x84] sm:$0xff]
    %v2554 = vld [vmem:[#allocation10 + $0x90] sm:$0xff]
    %v2555 = vld [vmem:[#allocation10 + $0x9c] sm:$0xff]
    %v2556 = vld [vmem:[#allocation10 + $0xa8] sm:$0xff]
    %v2557 = vld [vmem:[#allocation10 + $0xb4] sm:$0xff]
    %v2574 = vunpack.c.l.b16 %v2542
    %v2575 = vunpack.c.h.b16 %v2542
    %v2576 = vunpack.c.l.b16 %v2543
    %v2577 = vunpack.c.h.b16 %v2543
    %v2578 = vunpack.c.l.b16 %v2544
    %v2579 = vunpack.c.h.b16 %v2544
    %v2580 = vunpack.c.l.b16 %v2545
    %v2581 = vunpack.c.h.b16 %v2545
    %v2582 = vunpack.c.l.b16 %v2546
    %v2583 = vunpack.c.h.b16 %v2546
    %v2584 = vunpack.c.l.b16 %v2547
    %v2585 = vunpack.c.h.b16 %v2547
    %v2586 = vunpack.c.l.b16 %v2548
    %v2587 = vunpack.c.h.b16 %v2548
    %v2588 = vunpack.c.l.b16 %v2549
    %v2589 = vunpack.c.h.b16 %v2549
    %v2590 = vunpack.c.l.b16 %v2550
    %v2591 = vunpack.c.h.b16 %v2550
    %v2592 = vunpack.c.l.b16 %v2551
    %v2593 = vunpack.c.h.b16 %v2551
    %v2594 = vunpack.c.l.b16 %v2552
    %v2595 = vunpack.c.h.b16 %v2552
    %v2596 = vunpack.c.l.b16 %v2553
    %v2597 = vunpack.c.h.b16 %v2553
    %v2598 = vunpack.c.l.b16 %v2554
    %v2599 = vunpack.c.h.b16 %v2554
    %v2600 = vunpack.c.l.b16 %v2555
    %v2601 = vunpack.c.h.b16 %v2555
    %v2602 = vunpack.c.l.b16 %v2556
    %v2603 = vunpack.c.h.b16 %v2556
    %v2604 = vunpack.c.l.b16 %v2557
    %v2605 = vunpack.c.h.b16 %v2557
    %v2606 = vpack.c.b16 %v2576, %v2574
    %v2607 = vpack.c.b16 %v2577, %v2575
    %v2608 = vpack.c.b16 %v2580, %v2578
    %v2609 = vpack.c.b16 %v2581, %v2579
    %v2610 = vpack.c.b16 %v2584, %v2582
    %v2611 = vpack.c.b16 %v2585, %v2583
    %v2612 = vpack.c.b16 %v2588, %v2586
    %v2613 = vpack.c.b16 %v2589, %v2587
    %v2614 = vpack.c.b16 %v2592, %v2590
    %v2615 = vpack.c.b16 %v2593, %v2591
    %v2616 = vpack.c.b16 %v2596, %v2594
    %v2617 = vpack.c.b16 %v2597, %v2595
    %v2618 = vpack.c.b16 %v2600, %v2598
    %v2619 = vpack.c.b16 %v2601, %v2599
    %v2620 = vpack.c.b16 %v2604, %v2602
    %v2621 = vpack.c.b16 %v2605, %v2603
    %2638 = vmatpush.bf16.msra.mxu0 %v2620
    %2639 = vmatpush.bf16.msra.mxu0 %v2618
    %2640 = vmatpush.bf16.msra.mxu0 %v2616
    %2641 = vmatpush.bf16.msra.mxu0 %v2614
    %2642 = vmatpush.bf16.msra.mxu0 %v2612
    %2643 = vmatpush.bf16.msra.mxu0 %v2610
    %2644 = vmatpush.bf16.msra.mxu0 %v2608
    %2645 = vmatpush.bf16.msra.mxu0 %v2606
    %2646 = vmatmul.bf16.gmra.mxu0 %v2541
    %v2647 = vpop.f32.mrf.mxu0
    %v2648 = vadd.f32 0.0, %v2647
    %v2649 = vpop.f32.mrf.mxu0
    %2650 = vdwg.mxu0
    %2651 = vmatpush.bf16.msra.mxu0 %v2621
    %2652 = vmatpush.bf16.msra.mxu0 %v2619
    %2653 = vmatpush.bf16.msra.mxu0 %v2617
    %2654 = vmatpush.bf16.msra.mxu0 %v2615
    %2655 = vmatpush.bf16.msra.mxu0 %v2613
    %2656 = vmatpush.bf16.msra.mxu0 %v2611
    %2657 = vmatpush.bf16.msra.mxu0 %v2609
    %2658 = vmatpush.bf16.msra.mxu0 %v2607
    %2659 = vmatmul.bf16.gmra.mxu0 %v2541
    %v2660 = vpop.f32.mrf.mxu0
    %v2661 = vadd.f32 0.0, %v2660
    %v2662 = vpop.f32.mrf.mxu0
    %2663 = vdwg.mxu0
    %v2664 = vld [vmem:[#allocation10 + $0x8] sm:$0xf]
    %v2665 = vld [vmem:[#allocation10 + $0x14] sm:$0xf]
    %v2666 = vld [vmem:[#allocation10 + $0x20] sm:$0xf]
    %v2667 = vld [vmem:[#allocation10 + $0x2c] sm:$0xf]
    %v2668 = vld [vmem:[#allocation10 + $0x38] sm:$0xf]
    %v2669 = vld [vmem:[#allocation10 + $0x44] sm:$0xf]
    %v2670 = vld [vmem:[#allocation10 + $0x50] sm:$0xf]
    %v2671 = vld [vmem:[#allocation10 + $0x5c] sm:$0xf]
    %v2672 = vld [vmem:[#allocation10 + $0x68] sm:$0xf]
    %v2673 = vld [vmem:[#allocation10 + $0x74] sm:$0xf]
    %v2674 = vld [vmem:[#allocation10 + $0x80] sm:$0xf]
    %v2675 = vld [vmem:[#allocation10 + $0x8c] sm:$0xf]
    %v2676 = vld [vmem:[#allocation10 + $0x98] sm:$0xf]
    %v2677 = vld [vmem:[#allocation10 + $0xa4] sm:$0xf]
    %v2678 = vld [vmem:[#allocation10 + $0xb0] sm:$0xf]
    %v2679 = vld [vmem:[#allocation10 + $0xbc] sm:$0xf]
    %v2680 = vadd.f32 %v2538, %v2648
    %v2681 = vadd.f32 %v2539, %v2661
    %v2682 = vxor.u32 %v2680, 2147483648
    %v2683 = vxor.u32 %v2681, 2147483648
    %v2684 = vmul.f32 %v2682, 1.442695
    %v2685 = vpow.pop %v2684
    %v2686 = vmul.f32 %v2683, 1.442695
    %v2687 = vpow.pop %v2686
    %v2688 = vadd.f32 %v2685, 1.0
    %v2689 = vadd.f32 %v2687, 1.0
    %v2690 = vrcp.pop %v2688
    %v2691 = vmul.f32 %v2688, %v2690
    %v2692 = vsub.f32 1.0, %v2691
    %v2693 = vmul.f32 %v2690, %v2692
    %v2694 = vadd.f32 %v2690, %v2693
    %vm2695 = vweird.f32 %v2688
    %vm2696 = vweird.f32 %v2690
    %vm2697 = vmor %vm2695, %vm2696
    %v2698 = vsel %vm2697, %v2690, %v2694
    %v2699 = vand.u32 2147483647, %v2688
    %vm2700 = vcmp.eq.f32.partialorder %v2699, 8.507059e+37
    %v2701 = vand.u32 %v2688, 2147483648
    %v2702 = vor.u32 1.1754944e-38, %v2701
    %v2703 = vsel %vm2700, %v2702, %v2698
    %v2704 = vmul.f32 1.0, %v2703
    %v2705 = vrcp.pop %v2689
    %v2706 = vmul.f32 %v2689, %v2705
    %v2707 = vsub.f32 1.0, %v2706
    %v2708 = vmul.f32 %v2705, %v2707
    %v2709 = vadd.f32 %v2705, %v2708
    %vm2710 = vweird.f32 %v2689
    %vm2711 = vweird.f32 %v2705
    %vm2712 = vmor %vm2710, %vm2711
    %v2713 = vsel %vm2712, %v2705, %v2709
    %v2714 = vand.u32 2147483647, %v2689
    %vm2715 = vcmp.eq.f32.partialorder %v2714, 8.507059e+37
    %v2716 = vand.u32 %v2689, 2147483648
    %v2717 = vor.u32 1.1754944e-38, %v2716
    %v2718 = vsel %vm2715, %v2717, %v2713
    %v2719 = vmul.f32 1.0, %v2718
    %v2736 = vunpack.c.l.b16 %v2664
    %v2737 = vunpack.c.l.b16 %v2665
    %v2738 = vunpack.c.l.b16 %v2666
    %v2739 = vunpack.c.l.b16 %v2667
    %v2740 = vunpack.c.l.b16 %v2668
    %v2741 = vunpack.c.l.b16 %v2669
    %v2742 = vunpack.c.l.b16 %v2670
    %v2743 = vunpack.c.l.b16 %v2671
    %v2744 = vunpack.c.l.b16 %v2672
    %v2745 = vunpack.c.l.b16 %v2673
    %v2746 = vunpack.c.l.b16 %v2674
    %v2747 = vunpack.c.l.b16 %v2675
    %v2748 = vunpack.c.l.b16 %v2676
    %v2749 = vunpack.c.l.b16 %v2677
    %v2750 = vunpack.c.l.b16 %v2678
    %v2751 = vunpack.c.l.b16 %v2679
    %v2752 = vpack.c.b16 %v2737, %v2736
    %v2753 = vpack.c.b16 %v2739, %v2738
    %v2754 = vpack.c.b16 %v2741, %v2740
    %v2755 = vpack.c.b16 %v2743, %v2742
    %v2756 = vpack.c.b16 %v2745, %v2744
    %v2757 = vpack.c.b16 %v2747, %v2746
    %v2758 = vpack.c.b16 %v2749, %v2748
    %v2759 = vpack.c.b16 %v2751, %v2750
    %2768 = vmatpush.bf16.msra.mxu0 %v2759
    %2769 = vmatpush.bf16.msra.mxu0 %v2758
    %2770 = vmatpush.bf16.msra.mxu0 %v2757
    %2771 = vmatpush.bf16.msra.mxu0 %v2756
    %2772 = vmatpush.bf16.msra.mxu0 %v2755
    %2773 = vmatpush.bf16.msra.mxu0 %v2754
    %2774 = vmatpush.bf16.msra.mxu0 %v2753
    %2775 = vmatpush.bf16.msra.mxu0 %v2752
    %2776 = vmatmul.bf16.gmra.mxu0 %v2541
    %v2777 = vpop.f32.mrf.mxu0
    %v2778 = vadd.f32 %v520, %v2777
    %v2779 = vpop.f32.mrf.mxu0
    %2780 = vdwg.mxu0
    %v2781 = vmul.f32 %v2704, %v2778
    %v2782 = vadd.f32 %v2540, %v2781
    %v2783 = vtanh.pop %v2782
    %v2784 = vsub.f32 1.0, %v2719
    %v2785 = vmul.f32 %v2784, %v2783
    %v2786 = vmul.f32 %v2719, %v2535
    %v2787 = vadd.f32 %v2785, %v2786
    %s2788 = scalar_lea.vmem [#allocation12], 64
    %2789 = vst [vmem:[%s2788] sm:$0xff] %v2787
    %v2790 = vld [vmem:[#allocation3 + $0xd8] sm:$0xff]
    %v2791 = vld [vmem:[#allocation3 + $0xe0] sm:$0xff]
    %v2792 = vld [vmem:[#allocation3 + $0xe8] sm:$0xff]
    %v2793 = vpack.c.bf16 %v2787, %v2787
    %v2794 = vld [vmem:[#allocation10] sm:$0xff]
    %v2795 = vld [vmem:[#allocation10 + $0xc] sm:$0xff]
    %v2796 = vld [vmem:[#allocation10 + $0x18] sm:$0xff]
    %v2797 = vld [vmem:[#allocation10 + $0x24] sm:$0xff]
    %v2798 = vld [vmem:[#allocation10 + $0x30] sm:$0xff]
    %v2799 = vld [vmem:[#allocation10 + $0x3c] sm:$0xff]
    %v2800 = vld [vmem:[#allocation10 + $0x48] sm:$0xff]
    %v2801 = vld [vmem:[#allocation10 + $0x54] sm:$0xff]
    %v2802 = vld [vmem:[#allocation10 + $0x60] sm:$0xff]
    %v2803 = vld [vmem:[#allocation10 + $0x6c] sm:$0xff]
    %v2804 = vld [vmem:[#allocation10 + $0x78] sm:$0xff]
    %v2805 = vld [vmem:[#allocation10 + $0x84] sm:$0xff]
    %v2806 = vld [vmem:[#allocation10 + $0x90] sm:$0xff]
    %v2807 = vld [vmem:[#allocation10 + $0x9c] sm:$0xff]
    %v2808 = vld [vmem:[#allocation10 + $0xa8] sm:$0xff]
    %v2809 = vld [vmem:[#allocation10 + $0xb4] sm:$0xff]
    %v2826 = vunpack.c.l.b16 %v2794
    %v2827 = vunpack.c.h.b16 %v2794
    %v2828 = vunpack.c.l.b16 %v2795
    %v2829 = vunpack.c.h.b16 %v2795
    %v2830 = vunpack.c.l.b16 %v2796
    %v2831 = vunpack.c.h.b16 %v2796
    %v2832 = vunpack.c.l.b16 %v2797
    %v2833 = vunpack.c.h.b16 %v2797
    %v2834 = vunpack.c.l.b16 %v2798
    %v2835 = vunpack.c.h.b16 %v2798
    %v2836 = vunpack.c.l.b16 %v2799
    %v2837 = vunpack.c.h.b16 %v2799
    %v2838 = vunpack.c.l.b16 %v2800
    %v2839 = vunpack.c.h.b16 %v2800
    %v2840 = vunpack.c.l.b16 %v2801
    %v2841 = vunpack.c.h.b16 %v2801
    %v2842 = vunpack.c.l.b16 %v2802
    %v2843 = vunpack.c.h.b16 %v2802
    %v2844 = vunpack.c.l.b16 %v2803
    %v2845 = vunpack.c.h.b16 %v2803
    %v2846 = vunpack.c.l.b16 %v2804
    %v2847 = vunpack.c.h.b16 %v2804
    %v2848 = vunpack.c.l.b16 %v2805
    %v2849 = vunpack.c.h.b16 %v2805
    %v2850 = vunpack.c.l.b16 %v2806
    %v2851 = vunpack.c.h.b16 %v2806
    %v2852 = vunpack.c.l.b16 %v2807
    %v2853 = vunpack.c.h.b16 %v2807
    %v2854 = vunpack.c.l.b16 %v2808
    %v2855 = vunpack.c.h.b16 %v2808
    %v2856 = vunpack.c.l.b16 %v2809
    %v2857 = vunpack.c.h.b16 %v2809
    %v2858 = vpack.c.b16 %v2828, %v2826
    %v2859 = vpack.c.b16 %v2829, %v2827
    %v2860 = vpack.c.b16 %v2832, %v2830
    %v2861 = vpack.c.b16 %v2833, %v2831
    %v2862 = vpack.c.b16 %v2836, %v2834
    %v2863 = vpack.c.b16 %v2837, %v2835
    %v2864 = vpack.c.b16 %v2840, %v2838
    %v2865 = vpack.c.b16 %v2841, %v2839
    %v2866 = vpack.c.b16 %v2844, %v2842
    %v2867 = vpack.c.b16 %v2845, %v2843
    %v2868 = vpack.c.b16 %v2848, %v2846
    %v2869 = vpack.c.b16 %v2849, %v2847
    %v2870 = vpack.c.b16 %v2852, %v2850
    %v2871 = vpack.c.b16 %v2853, %v2851
    %v2872 = vpack.c.b16 %v2856, %v2854
    %v2873 = vpack.c.b16 %v2857, %v2855
    %2890 = vmatpush.bf16.msra.mxu0 %v2872
    %2891 = vmatpush.bf16.msra.mxu0 %v2870
    %2892 = vmatpush.bf16.msra.mxu0 %v2868
    %2893 = vmatpush.bf16.msra.mxu0 %v2866
    %2894 = vmatpush.bf16.msra.mxu0 %v2864
    %2895 = vmatpush.bf16.msra.mxu0 %v2862
    %2896 = vmatpush.bf16.msra.mxu0 %v2860
    %2897 = vmatpush.bf16.msra.mxu0 %v2858
    %2898 = vmatmul.bf16.gmra.mxu0 %v2793
    %v2899 = vpop.f32.mrf.mxu0
    %v2900 = vadd.f32 0.0, %v2899
    %v2901 = vpop.f32.mrf.mxu0
    %2902 = vdwg.mxu0
    %2903 = vmatpush.bf16.msra.mxu0 %v2873
    %2904 = vmatpush.bf16.msra.mxu0 %v2871
    %2905 = vmatpush.bf16.msra.mxu0 %v2869
    %2906 = vmatpush.bf16.msra.mxu0 %v2867
    %2907 = vmatpush.bf16.msra.mxu0 %v2865
    %2908 = vmatpush.bf16.msra.mxu0 %v2863
    %2909 = vmatpush.bf16.msra.mxu0 %v2861
    %2910 = vmatpush.bf16.msra.mxu0 %v2859
    %2911 = vmatmul.bf16.gmra.mxu0 %v2793
    %v2912 = vpop.f32.mrf.mxu0
    %v2913 = vadd.f32 0.0, %v2912
    %v2914 = vpop.f32.mrf.mxu0
    %2915 = vdwg.mxu0
    %v2916 = vld [vmem:[#allocation10 + $0x8] sm:$0xf]
    %v2917 = vld [vmem:[#allocation10 + $0x14] sm:$0xf]
    %v2918 = vld [vmem:[#allocation10 + $0x20] sm:$0xf]
    %v2919 = vld [vmem:[#allocation10 + $0x2c] sm:$0xf]
    %v2920 = vld [vmem:[#allocation10 + $0x38] sm:$0xf]
    %v2921 = vld [vmem:[#allocation10 + $0x44] sm:$0xf]
    %v2922 = vld [vmem:[#allocation10 + $0x50] sm:$0xf]
    %v2923 = vld [vmem:[#allocation10 + $0x5c] sm:$0xf]
    %v2924 = vld [vmem:[#allocation10 + $0x68] sm:$0xf]
    %v2925 = vld [vmem:[#allocation10 + $0x74] sm:$0xf]
    %v2926 = vld [vmem:[#allocation10 + $0x80] sm:$0xf]
    %v2927 = vld [vmem:[#allocation10 + $0x8c] sm:$0xf]
    %v2928 = vld [vmem:[#allocation10 + $0x98] sm:$0xf]
    %v2929 = vld [vmem:[#allocation10 + $0xa4] sm:$0xf]
    %v2930 = vld [vmem:[#allocation10 + $0xb0] sm:$0xf]
    %v2931 = vld [vmem:[#allocation10 + $0xbc] sm:$0xf]
    %v2932 = vadd.f32 %v2790, %v2900
    %v2933 = vadd.f32 %v2791, %v2913
    %v2934 = vxor.u32 %v2932, 2147483648
    %v2935 = vxor.u32 %v2933, 2147483648
    %v2936 = vmul.f32 %v2934, 1.442695
    %v2937 = vpow.pop %v2936
    %v2938 = vmul.f32 %v2935, 1.442695
    %v2939 = vpow.pop %v2938
    %v2940 = vadd.f32 %v2937, 1.0
    %v2941 = vadd.f32 %v2939, 1.0
    %v2942 = vrcp.pop %v2940
    %v2943 = vmul.f32 %v2940, %v2942
    %v2944 = vsub.f32 1.0, %v2943
    %v2945 = vmul.f32 %v2942, %v2944
    %v2946 = vadd.f32 %v2942, %v2945
    %vm2947 = vweird.f32 %v2940
    %vm2948 = vweird.f32 %v2942
    %vm2949 = vmor %vm2947, %vm2948
    %v2950 = vsel %vm2949, %v2942, %v2946
    %v2951 = vand.u32 2147483647, %v2940
    %vm2952 = vcmp.eq.f32.partialorder %v2951, 8.507059e+37
    %v2953 = vand.u32 %v2940, 2147483648
    %v2954 = vor.u32 1.1754944e-38, %v2953
    %v2955 = vsel %vm2952, %v2954, %v2950
    %v2956 = vmul.f32 1.0, %v2955
    %v2957 = vrcp.pop %v2941
    %v2958 = vmul.f32 %v2941, %v2957
    %v2959 = vsub.f32 1.0, %v2958
    %v2960 = vmul.f32 %v2957, %v2959
    %v2961 = vadd.f32 %v2957, %v2960
    %vm2962 = vweird.f32 %v2941
    %vm2963 = vweird.f32 %v2957
    %vm2964 = vmor %vm2962, %vm2963
    %v2965 = vsel %vm2964, %v2957, %v2961
    %v2966 = vand.u32 2147483647, %v2941
    %vm2967 = vcmp.eq.f32.partialorder %v2966, 8.507059e+37
    %v2968 = vand.u32 %v2941, 2147483648
    %v2969 = vor.u32 1.1754944e-38, %v2968
    %v2970 = vsel %vm2967, %v2969, %v2965
    %v2971 = vmul.f32 1.0, %v2970
    %v2988 = vunpack.c.l.b16 %v2916
    %v2989 = vunpack.c.l.b16 %v2917
    %v2990 = vunpack.c.l.b16 %v2918
    %v2991 = vunpack.c.l.b16 %v2919
    %v2992 = vunpack.c.l.b16 %v2920
    %v2993 = vunpack.c.l.b16 %v2921
    %v2994 = vunpack.c.l.b16 %v2922
    %v2995 = vunpack.c.l.b16 %v2923
    %v2996 = vunpack.c.l.b16 %v2924
    %v2997 = vunpack.c.l.b16 %v2925
    %v2998 = vunpack.c.l.b16 %v2926
    %v2999 = vunpack.c.l.b16 %v2927
    %v3000 = vunpack.c.l.b16 %v2928
    %v3001 = vunpack.c.l.b16 %v2929
    %v3002 = vunpack.c.l.b16 %v2930
    %v3003 = vunpack.c.l.b16 %v2931
    %v3004 = vpack.c.b16 %v2989, %v2988
    %v3005 = vpack.c.b16 %v2991, %v2990
    %v3006 = vpack.c.b16 %v2993, %v2992
    %v3007 = vpack.c.b16 %v2995, %v2994
    %v3008 = vpack.c.b16 %v2997, %v2996
    %v3009 = vpack.c.b16 %v2999, %v2998
    %v3010 = vpack.c.b16 %v3001, %v3000
    %v3011 = vpack.c.b16 %v3003, %v3002
    %3020 = vmatpush.bf16.msra.mxu0 %v3011
    %3021 = vmatpush.bf16.msra.mxu0 %v3010
    %3022 = vmatpush.bf16.msra.mxu0 %v3009
    %3023 = vmatpush.bf16.msra.mxu0 %v3008
    %3024 = vmatpush.bf16.msra.mxu0 %v3007
    %3025 = vmatpush.bf16.msra.mxu0 %v3006
    %3026 = vmatpush.bf16.msra.mxu0 %v3005
    %3027 = vmatpush.bf16.msra.mxu0 %v3004
    %3028 = vmatmul.bf16.gmra.mxu0 %v2793
    %v3029 = vpop.f32.mrf.mxu0
    %v3030 = vadd.f32 %v520, %v3029
    %v3031 = vpop.f32.mrf.mxu0
    %3032 = vdwg.mxu0
    %v3033 = vmul.f32 %v2956, %v3030
    %v3034 = vadd.f32 %v2792, %v3033
    %v3035 = vtanh.pop %v3034
    %v3036 = vsub.f32 1.0, %v2971
    %v3037 = vmul.f32 %v3036, %v3035
    %v3038 = vmul.f32 %v2971, %v2787
    %v3039 = vadd.f32 %v3037, %v3038
    %s3040 = scalar_lea.vmem [#allocation12], 72
    %3041 = vst [vmem:[%s3040] sm:$0xff] %v3039
    %v3042 = vld [vmem:[#allocation3 + $0xf0] sm:$0xff]
    %v3043 = vld [vmem:[#allocation3 + $0xf8] sm:$0xff]
    %v3044 = vld [vmem:[#allocation3 + $0x100] sm:$0xff]
    %v3045 = vpack.c.bf16 %v3039, %v3039
    %v3046 = vld [vmem:[#allocation10] sm:$0xff]
    %v3047 = vld [vmem:[#allocation10 + $0xc] sm:$0xff]
    %v3048 = vld [vmem:[#allocation10 + $0x18] sm:$0xff]
    %v3049 = vld [vmem:[#allocation10 + $0x24] sm:$0xff]
    %v3050 = vld [vmem:[#allocation10 + $0x30] sm:$0xff]
    %v3051 = vld [vmem:[#allocation10 + $0x3c] sm:$0xff]
    %v3052 = vld [vmem:[#allocation10 + $0x48] sm:$0xff]
    %v3053 = vld [vmem:[#allocation10 + $0x54] sm:$0xff]
    %v3054 = vld [vmem:[#allocation10 + $0x60] sm:$0xff]
    %v3055 = vld [vmem:[#allocation10 + $0x6c] sm:$0xff]
    %v3056 = vld [vmem:[#allocation10 + $0x78] sm:$0xff]
    %v3057 = vld [vmem:[#allocation10 + $0x84] sm:$0xff]
    %v3058 = vld [vmem:[#allocation10 + $0x90] sm:$0xff]
    %v3059 = vld [vmem:[#allocation10 + $0x9c] sm:$0xff]
    %v3060 = vld [vmem:[#allocation10 + $0xa8] sm:$0xff]
    %v3061 = vld [vmem:[#allocation10 + $0xb4] sm:$0xff]
    %v3078 = vunpack.c.l.b16 %v3046
    %v3079 = vunpack.c.h.b16 %v3046
    %v3080 = vunpack.c.l.b16 %v3047
    %v3081 = vunpack.c.h.b16 %v3047
    %v3082 = vunpack.c.l.b16 %v3048
    %v3083 = vunpack.c.h.b16 %v3048
    %v3084 = vunpack.c.l.b16 %v3049
    %v3085 = vunpack.c.h.b16 %v3049
    %v3086 = vunpack.c.l.b16 %v3050
    %v3087 = vunpack.c.h.b16 %v3050
    %v3088 = vunpack.c.l.b16 %v3051
    %v3089 = vunpack.c.h.b16 %v3051
    %v3090 = vunpack.c.l.b16 %v3052
    %v3091 = vunpack.c.h.b16 %v3052
    %v3092 = vunpack.c.l.b16 %v3053
    %v3093 = vunpack.c.h.b16 %v3053
    %v3094 = vunpack.c.l.b16 %v3054
    %v3095 = vunpack.c.h.b16 %v3054
    %v3096 = vunpack.c.l.b16 %v3055
    %v3097 = vunpack.c.h.b16 %v3055
    %v3098 = vunpack.c.l.b16 %v3056
    %v3099 = vunpack.c.h.b16 %v3056
    %v3100 = vunpack.c.l.b16 %v3057
    %v3101 = vunpack.c.h.b16 %v3057
    %v3102 = vunpack.c.l.b16 %v3058
    %v3103 = vunpack.c.h.b16 %v3058
    %v3104 = vunpack.c.l.b16 %v3059
    %v3105 = vunpack.c.h.b16 %v3059
    %v3106 = vunpack.c.l.b16 %v3060
    %v3107 = vunpack.c.h.b16 %v3060
    %v3108 = vunpack.c.l.b16 %v3061
    %v3109 = vunpack.c.h.b16 %v3061
    %v3110 = vpack.c.b16 %v3080, %v3078
    %v3111 = vpack.c.b16 %v3081, %v3079
    %v3112 = vpack.c.b16 %v3084, %v3082
    %v3113 = vpack.c.b16 %v3085, %v3083
    %v3114 = vpack.c.b16 %v3088, %v3086
    %v3115 = vpack.c.b16 %v3089, %v3087
    %v3116 = vpack.c.b16 %v3092, %v3090
    %v3117 = vpack.c.b16 %v3093, %v3091
    %v3118 = vpack.c.b16 %v3096, %v3094
    %v3119 = vpack.c.b16 %v3097, %v3095
    %v3120 = vpack.c.b16 %v3100, %v3098
    %v3121 = vpack.c.b16 %v3101, %v3099
    %v3122 = vpack.c.b16 %v3104, %v3102
    %v3123 = vpack.c.b16 %v3105, %v3103
    %v3124 = vpack.c.b16 %v3108, %v3106
    %v3125 = vpack.c.b16 %v3109, %v3107
    %3142 = vmatpush.bf16.msra.mxu0 %v3124
    %3143 = vmatpush.bf16.msra.mxu0 %v3122
    %3144 = vmatpush.bf16.msra.mxu0 %v3120
    %3145 = vmatpush.bf16.msra.mxu0 %v3118
    %3146 = vmatpush.bf16.msra.mxu0 %v3116
    %3147 = vmatpush.bf16.msra.mxu0 %v3114
    %3148 = vmatpush.bf16.msra.mxu0 %v3112
    %3149 = vmatpush.bf16.msra.mxu0 %v3110
    %3150 = vmatmul.bf16.gmra.mxu0 %v3045
    %v3151 = vpop.f32.mrf.mxu0
    %v3152 = vadd.f32 0.0, %v3151
    %v3153 = vpop.f32.mrf.mxu0
    %3154 = vdwg.mxu0
    %3155 = vmatpush.bf16.msra.mxu0 %v3125
    %3156 = vmatpush.bf16.msra.mxu0 %v3123
    %3157 = vmatpush.bf16.msra.mxu0 %v3121
    %3158 = vmatpush.bf16.msra.mxu0 %v3119
    %3159 = vmatpush.bf16.msra.mxu0 %v3117
    %3160 = vmatpush.bf16.msra.mxu0 %v3115
    %3161 = vmatpush.bf16.msra.mxu0 %v3113
    %3162 = vmatpush.bf16.msra.mxu0 %v3111
    %3163 = vmatmul.bf16.gmra.mxu0 %v3045
    %v3164 = vpop.f32.mrf.mxu0
    %v3165 = vadd.f32 0.0, %v3164
    %v3166 = vpop.f32.mrf.mxu0
    %3167 = vdwg.mxu0
    %v3168 = vld [vmem:[#allocation10 + $0x8] sm:$0xf]
    %v3169 = vld [vmem:[#allocation10 + $0x14] sm:$0xf]
    %v3170 = vld [vmem:[#allocation10 + $0x20] sm:$0xf]
    %v3171 = vld [vmem:[#allocation10 + $0x2c] sm:$0xf]
    %v3172 = vld [vmem:[#allocation10 + $0x38] sm:$0xf]
    %v3173 = vld [vmem:[#allocation10 + $0x44] sm:$0xf]
    %v3174 = vld [vmem:[#allocation10 + $0x50] sm:$0xf]
    %v3175 = vld [vmem:[#allocation10 + $0x5c] sm:$0xf]
    %v3176 = vld [vmem:[#allocation10 + $0x68] sm:$0xf]
    %v3177 = vld [vmem:[#allocation10 + $0x74] sm:$0xf]
    %v3178 = vld [vmem:[#allocation10 + $0x80] sm:$0xf]
    %v3179 = vld [vmem:[#allocation10 + $0x8c] sm:$0xf]
    %v3180 = vld [vmem:[#allocation10 + $0x98] sm:$0xf]
    %v3181 = vld [vmem:[#allocation10 + $0xa4] sm:$0xf]
    %v3182 = vld [vmem:[#allocation10 + $0xb0] sm:$0xf]
    %v3183 = vld [vmem:[#allocation10 + $0xbc] sm:$0xf]
    %v3184 = vadd.f32 %v3042, %v3152
    %v3185 = vadd.f32 %v3043, %v3165
    %v3186 = vxor.u32 %v3184, 2147483648
    %v3187 = vxor.u32 %v3185, 2147483648
    %v3188 = vmul.f32 %v3186, 1.442695
    %v3189 = vpow.pop %v3188
    %v3190 = vmul.f32 %v3187, 1.442695
    %v3191 = vpow.pop %v3190
    %v3192 = vadd.f32 %v3189, 1.0
    %v3193 = vadd.f32 %v3191, 1.0
    %v3194 = vrcp.pop %v3192
    %v3195 = vmul.f32 %v3192, %v3194
    %v3196 = vsub.f32 1.0, %v3195
    %v3197 = vmul.f32 %v3194, %v3196
    %v3198 = vadd.f32 %v3194, %v3197
    %vm3199 = vweird.f32 %v3192
    %vm3200 = vweird.f32 %v3194
    %vm3201 = vmor %vm3199, %vm3200
    %v3202 = vsel %vm3201, %v3194, %v3198
    %v3203 = vand.u32 2147483647, %v3192
    %vm3204 = vcmp.eq.f32.partialorder %v3203, 8.507059e+37
    %v3205 = vand.u32 %v3192, 2147483648
    %v3206 = vor.u32 1.1754944e-38, %v3205
    %v3207 = vsel %vm3204, %v3206, %v3202
    %v3208 = vmul.f32 1.0, %v3207
    %v3209 = vrcp.pop %v3193
    %v3210 = vmul.f32 %v3193, %v3209
    %v3211 = vsub.f32 1.0, %v3210
    %v3212 = vmul.f32 %v3209, %v3211
    %v3213 = vadd.f32 %v3209, %v3212
    %vm3214 = vweird.f32 %v3193
    %vm3215 = vweird.f32 %v3209
    %vm3216 = vmor %vm3214, %vm3215
    %v3217 = vsel %vm3216, %v3209, %v3213
    %v3218 = vand.u32 2147483647, %v3193
    %vm3219 = vcmp.eq.f32.partialorder %v3218, 8.507059e+37
    %v3220 = vand.u32 %v3193, 2147483648
    %v3221 = vor.u32 1.1754944e-38, %v3220
    %v3222 = vsel %vm3219, %v3221, %v3217
    %v3223 = vmul.f32 1.0, %v3222
    %v3240 = vunpack.c.l.b16 %v3168
    %v3241 = vunpack.c.l.b16 %v3169
    %v3242 = vunpack.c.l.b16 %v3170
    %v3243 = vunpack.c.l.b16 %v3171
    %v3244 = vunpack.c.l.b16 %v3172
    %v3245 = vunpack.c.l.b16 %v3173
    %v3246 = vunpack.c.l.b16 %v3174
    %v3247 = vunpack.c.l.b16 %v3175
    %v3248 = vunpack.c.l.b16 %v3176
    %v3249 = vunpack.c.l.b16 %v3177
    %v3250 = vunpack.c.l.b16 %v3178
    %v3251 = vunpack.c.l.b16 %v3179
    %v3252 = vunpack.c.l.b16 %v3180
    %v3253 = vunpack.c.l.b16 %v3181
    %v3254 = vunpack.c.l.b16 %v3182
    %v3255 = vunpack.c.l.b16 %v3183
    %v3256 = vpack.c.b16 %v3241, %v3240
    %v3257 = vpack.c.b16 %v3243, %v3242
    %v3258 = vpack.c.b16 %v3245, %v3244
    %v3259 = vpack.c.b16 %v3247, %v3246
    %v3260 = vpack.c.b16 %v3249, %v3248
    %v3261 = vpack.c.b16 %v3251, %v3250
    %v3262 = vpack.c.b16 %v3253, %v3252
    %v3263 = vpack.c.b16 %v3255, %v3254
    %3272 = vmatpush.bf16.msra.mxu0 %v3263
    %3273 = vmatpush.bf16.msra.mxu0 %v3262
    %3274 = vmatpush.bf16.msra.mxu0 %v3261
    %3275 = vmatpush.bf16.msra.mxu0 %v3260
    %3276 = vmatpush.bf16.msra.mxu0 %v3259
    %3277 = vmatpush.bf16.msra.mxu0 %v3258
    %3278 = vmatpush.bf16.msra.mxu0 %v3257
    %3279 = vmatpush.bf16.msra.mxu0 %v3256
    %3280 = vmatmul.bf16.gmra.mxu0 %v3045
    %v3281 = vpop.f32.mrf.mxu0
    %v3282 = vadd.f32 %v520, %v3281
    %v3283 = vpop.f32.mrf.mxu0
    %3284 = vdwg.mxu0
    %v3285 = vmul.f32 %v3208, %v3282
    %v3286 = vadd.f32 %v3044, %v3285
    %v3287 = vtanh.pop %v3286
    %v3288 = vsub.f32 1.0, %v3223
    %v3289 = vmul.f32 %v3288, %v3287
    %v3290 = vmul.f32 %v3223, %v3039
    %v3291 = vadd.f32 %v3289, %v3290
    %s3292 = scalar_lea.vmem [#allocation12], 80
    %3293 = vst [vmem:[%s3292] sm:$0xff] %v3291
    %v3294 = vld [vmem:[#allocation3 + $0x108] sm:$0xff]
    %v3295 = vld [vmem:[#allocation3 + $0x110] sm:$0xff]
    %v3296 = vld [vmem:[#allocation3 + $0x118] sm:$0xff]
    %v3297 = vpack.c.bf16 %v3291, %v3291
    %v3298 = vld [vmem:[#allocation10] sm:$0xff]
    %v3299 = vld [vmem:[#allocation10 + $0xc] sm:$0xff]
    %v3300 = vld [vmem:[#allocation10 + $0x18] sm:$0xff]
    %v3301 = vld [vmem:[#allocation10 + $0x24] sm:$0xff]
    %v3302 = vld [vmem:[#allocation10 + $0x30] sm:$0xff]
    %v3303 = vld [vmem:[#allocation10 + $0x3c] sm:$0xff]
    %v3304 = vld [vmem:[#allocation10 + $0x48] sm:$0xff]
    %v3305 = vld [vmem:[#allocation10 + $0x54] sm:$0xff]
    %v3306 = vld [vmem:[#allocation10 + $0x60] sm:$0xff]
    %v3307 = vld [vmem:[#allocation10 + $0x6c] sm:$0xff]
    %v3308 = vld [vmem:[#allocation10 + $0x78] sm:$0xff]
    %v3309 = vld [vmem:[#allocation10 + $0x84] sm:$0xff]
    %v3310 = vld [vmem:[#allocation10 + $0x90] sm:$0xff]
    %v3311 = vld [vmem:[#allocation10 + $0x9c] sm:$0xff]
    %v3312 = vld [vmem:[#allocation10 + $0xa8] sm:$0xff]
    %v3313 = vld [vmem:[#allocation10 + $0xb4] sm:$0xff]
    %v3330 = vunpack.c.l.b16 %v3298
    %v3331 = vunpack.c.h.b16 %v3298
    %v3332 = vunpack.c.l.b16 %v3299
    %v3333 = vunpack.c.h.b16 %v3299
    %v3334 = vunpack.c.l.b16 %v3300
    %v3335 = vunpack.c.h.b16 %v3300
    %v3336 = vunpack.c.l.b16 %v3301
    %v3337 = vunpack.c.h.b16 %v3301
    %v3338 = vunpack.c.l.b16 %v3302
    %v3339 = vunpack.c.h.b16 %v3302
    %v3340 = vunpack.c.l.b16 %v3303
    %v3341 = vunpack.c.h.b16 %v3303
    %v3342 = vunpack.c.l.b16 %v3304
    %v3343 = vunpack.c.h.b16 %v3304
    %v3344 = vunpack.c.l.b16 %v3305
    %v3345 = vunpack.c.h.b16 %v3305
    %v3346 = vunpack.c.l.b16 %v3306
    %v3347 = vunpack.c.h.b16 %v3306
    %v3348 = vunpack.c.l.b16 %v3307
    %v3349 = vunpack.c.h.b16 %v3307
    %v3350 = vunpack.c.l.b16 %v3308
    %v3351 = vunpack.c.h.b16 %v3308
    %v3352 = vunpack.c.l.b16 %v3309
    %v3353 = vunpack.c.h.b16 %v3309
    %v3354 = vunpack.c.l.b16 %v3310
    %v3355 = vunpack.c.h.b16 %v3310
    %v3356 = vunpack.c.l.b16 %v3311
    %v3357 = vunpack.c.h.b16 %v3311
    %v3358 = vunpack.c.l.b16 %v3312
    %v3359 = vunpack.c.h.b16 %v3312
    %v3360 = vunpack.c.l.b16 %v3313
    %v3361 = vunpack.c.h.b16 %v3313
    %v3362 = vpack.c.b16 %v3332, %v3330
    %v3363 = vpack.c.b16 %v3333, %v3331
    %v3364 = vpack.c.b16 %v3336, %v3334
    %v3365 = vpack.c.b16 %v3337, %v3335
    %v3366 = vpack.c.b16 %v3340, %v3338
    %v3367 = vpack.c.b16 %v3341, %v3339
    %v3368 = vpack.c.b16 %v3344, %v3342
    %v3369 = vpack.c.b16 %v3345, %v3343
    %v3370 = vpack.c.b16 %v3348, %v3346
    %v3371 = vpack.c.b16 %v3349, %v3347
    %v3372 = vpack.c.b16 %v3352, %v3350
    %v3373 = vpack.c.b16 %v3353, %v3351
    %v3374 = vpack.c.b16 %v3356, %v3354
    %v3375 = vpack.c.b16 %v3357, %v3355
    %v3376 = vpack.c.b16 %v3360, %v3358
    %v3377 = vpack.c.b16 %v3361, %v3359
    %3394 = vmatpush.bf16.msra.mxu0 %v3376
    %3395 = vmatpush.bf16.msra.mxu0 %v3374
    %3396 = vmatpush.bf16.msra.mxu0 %v3372
    %3397 = vmatpush.bf16.msra.mxu0 %v3370
    %3398 = vmatpush.bf16.msra.mxu0 %v3368
    %3399 = vmatpush.bf16.msra.mxu0 %v3366
    %3400 = vmatpush.bf16.msra.mxu0 %v3364
    %3401 = vmatpush.bf16.msra.mxu0 %v3362
    %3402 = vmatmul.bf16.gmra.mxu0 %v3297
    %v3403 = vpop.f32.mrf.mxu0
    %v3404 = vadd.f32 0.0, %v3403
    %v3405 = vpop.f32.mrf.mxu0
    %3406 = vdwg.mxu0
    %3407 = vmatpush.bf16.msra.mxu0 %v3377
    %3408 = vmatpush.bf16.msra.mxu0 %v3375
    %3409 = vmatpush.bf16.msra.mxu0 %v3373
    %3410 = vmatpush.bf16.msra.mxu0 %v3371
    %3411 = vmatpush.bf16.msra.mxu0 %v3369
    %3412 = vmatpush.bf16.msra.mxu0 %v3367
    %3413 = vmatpush.bf16.msra.mxu0 %v3365
    %3414 = vmatpush.bf16.msra.mxu0 %v3363
    %3415 = vmatmul.bf16.gmra.mxu0 %v3297
    %v3416 = vpop.f32.mrf.mxu0
    %v3417 = vadd.f32 0.0, %v3416
    %v3418 = vpop.f32.mrf.mxu0
    %3419 = vdwg.mxu0
    %v3420 = vld [vmem:[#allocation10 + $0x8] sm:$0xf]
    %v3421 = vld [vmem:[#allocation10 + $0x14] sm:$0xf]
    %v3422 = vld [vmem:[#allocation10 + $0x20] sm:$0xf]
    %v3423 = vld [vmem:[#allocation10 + $0x2c] sm:$0xf]
    %v3424 = vld [vmem:[#allocation10 + $0x38] sm:$0xf]
    %v3425 = vld [vmem:[#allocation10 + $0x44] sm:$0xf]
    %v3426 = vld [vmem:[#allocation10 + $0x50] sm:$0xf]
    %v3427 = vld [vmem:[#allocation10 + $0x5c] sm:$0xf]
    %v3428 = vld [vmem:[#allocation10 + $0x68] sm:$0xf]
    %v3429 = vld [vmem:[#allocation10 + $0x74] sm:$0xf]
    %v3430 = vld [vmem:[#allocation10 + $0x80] sm:$0xf]
    %v3431 = vld [vmem:[#allocation10 + $0x8c] sm:$0xf]
    %v3432 = vld [vmem:[#allocation10 + $0x98] sm:$0xf]
    %v3433 = vld [vmem:[#allocation10 + $0xa4] sm:$0xf]
    %v3434 = vld [vmem:[#allocation10 + $0xb0] sm:$0xf]
    %v3435 = vld [vmem:[#allocation10 + $0xbc] sm:$0xf]
    %v3436 = vadd.f32 %v3294, %v3404
    %v3437 = vadd.f32 %v3295, %v3417
    %v3438 = vxor.u32 %v3436, 2147483648
    %v3439 = vxor.u32 %v3437, 2147483648
    %v3440 = vmul.f32 %v3438, 1.442695
    %v3441 = vpow.pop %v3440
    %v3442 = vmul.f32 %v3439, 1.442695
    %v3443 = vpow.pop %v3442
    %v3444 = vadd.f32 %v3441, 1.0
    %v3445 = vadd.f32 %v3443, 1.0
    %v3446 = vrcp.pop %v3444
    %v3447 = vmul.f32 %v3444, %v3446
    %v3448 = vsub.f32 1.0, %v3447
    %v3449 = vmul.f32 %v3446, %v3448
    %v3450 = vadd.f32 %v3446, %v3449
    %vm3451 = vweird.f32 %v3444
    %vm3452 = vweird.f32 %v3446
    %vm3453 = vmor %vm3451, %vm3452
    %v3454 = vsel %vm3453, %v3446, %v3450
    %v3455 = vand.u32 2147483647, %v3444
    %vm3456 = vcmp.eq.f32.partialorder %v3455, 8.507059e+37
    %v3457 = vand.u32 %v3444, 2147483648
    %v3458 = vor.u32 1.1754944e-38, %v3457
    %v3459 = vsel %vm3456, %v3458, %v3454
    %v3460 = vmul.f32 1.0, %v3459
    %v3461 = vrcp.pop %v3445
    %v3462 = vmul.f32 %v3445, %v3461
    %v3463 = vsub.f32 1.0, %v3462
    %v3464 = vmul.f32 %v3461, %v3463
    %v3465 = vadd.f32 %v3461, %v3464
    %vm3466 = vweird.f32 %v3445
    %vm3467 = vweird.f32 %v3461
    %vm3468 = vmor %vm3466, %vm3467
    %v3469 = vsel %vm3468, %v3461, %v3465
    %v3470 = vand.u32 2147483647, %v3445
    %vm3471 = vcmp.eq.f32.partialorder %v3470, 8.507059e+37
    %v3472 = vand.u32 %v3445, 2147483648
    %v3473 = vor.u32 1.1754944e-38, %v3472
    %v3474 = vsel %vm3471, %v3473, %v3469
    %v3475 = vmul.f32 1.0, %v3474
    %v3492 = vunpack.c.l.b16 %v3420
    %v3493 = vunpack.c.l.b16 %v3421
    %v3494 = vunpack.c.l.b16 %v3422
    %v3495 = vunpack.c.l.b16 %v3423
    %v3496 = vunpack.c.l.b16 %v3424
    %v3497 = vunpack.c.l.b16 %v3425
    %v3498 = vunpack.c.l.b16 %v3426
    %v3499 = vunpack.c.l.b16 %v3427
    %v3500 = vunpack.c.l.b16 %v3428
    %v3501 = vunpack.c.l.b16 %v3429
    %v3502 = vunpack.c.l.b16 %v3430
    %v3503 = vunpack.c.l.b16 %v3431
    %v3504 = vunpack.c.l.b16 %v3432
    %v3505 = vunpack.c.l.b16 %v3433
    %v3506 = vunpack.c.l.b16 %v3434
    %v3507 = vunpack.c.l.b16 %v3435
    %v3508 = vpack.c.b16 %v3493, %v3492
    %v3509 = vpack.c.b16 %v3495, %v3494
    %v3510 = vpack.c.b16 %v3497, %v3496
    %v3511 = vpack.c.b16 %v3499, %v3498
    %v3512 = vpack.c.b16 %v3501, %v3500
    %v3513 = vpack.c.b16 %v3503, %v3502
    %v3514 = vpack.c.b16 %v3505, %v3504
    %v3515 = vpack.c.b16 %v3507, %v3506
    %3524 = vmatpush.bf16.msra.mxu0 %v3515
    %3525 = vmatpush.bf16.msra.mxu0 %v3514
    %3526 = vmatpush.bf16.msra.mxu0 %v3513
    %3527 = vmatpush.bf16.msra.mxu0 %v3512
    %3528 = vmatpush.bf16.msra.mxu0 %v3511
    %3529 = vmatpush.bf16.msra.mxu0 %v3510
    %3530 = vmatpush.bf16.msra.mxu0 %v3509
    %3531 = vmatpush.bf16.msra.mxu0 %v3508
    %3532 = vmatmul.bf16.gmra.mxu0 %v3297
    %v3533 = vpop.f32.mrf.mxu0
    %v3534 = vadd.f32 %v520, %v3533
    %v3535 = vpop.f32.mrf.mxu0
    %3536 = vdwg.mxu0
    %v3537 = vmul.f32 %v3460, %v3534
    %v3538 = vadd.f32 %v3296, %v3537
    %v3539 = vtanh.pop %v3538
    %v3540 = vsub.f32 1.0, %v3475
    %v3541 = vmul.f32 %v3540, %v3539
    %v3542 = vmul.f32 %v3475, %v3291
    %v3543 = vadd.f32 %v3541, %v3542
    %s3544 = scalar_lea.vmem [#allocation12], 88
    %3545 = vst [vmem:[%s3544] sm:$0xff] %v3543
    %v3546 = vld [vmem:[#allocation3 + $0x120] sm:$0xff]
    %v3547 = vld [vmem:[#allocation3 + $0x128] sm:$0xff]
    %v3548 = vld [vmem:[#allocation3 + $0x130] sm:$0xff]
    %v3549 = vpack.c.bf16 %v3543, %v3543
    %v3550 = vld [vmem:[#allocation10] sm:$0xff]
    %v3551 = vld [vmem:[#allocation10 + $0xc] sm:$0xff]
    %v3552 = vld [vmem:[#allocation10 + $0x18] sm:$0xff]
    %v3553 = vld [vmem:[#allocation10 + $0x24] sm:$0xff]
    %v3554 = vld [vmem:[#allocation10 + $0x30] sm:$0xff]
    %v3555 = vld [vmem:[#allocation10 + $0x3c] sm:$0xff]
    %v3556 = vld [vmem:[#allocation10 + $0x48] sm:$0xff]
    %v3557 = vld [vmem:[#allocation10 + $0x54] sm:$0xff]
    %v3558 = vld [vmem:[#allocation10 + $0x60] sm:$0xff]
    %v3559 = vld [vmem:[#allocation10 + $0x6c] sm:$0xff]
    %v3560 = vld [vmem:[#allocation10 + $0x78] sm:$0xff]
    %v3561 = vld [vmem:[#allocation10 + $0x84] sm:$0xff]
    %v3562 = vld [vmem:[#allocation10 + $0x90] sm:$0xff]
    %v3563 = vld [vmem:[#allocation10 + $0x9c] sm:$0xff]
    %v3564 = vld [vmem:[#allocation10 + $0xa8] sm:$0xff]
    %v3565 = vld [vmem:[#allocation10 + $0xb4] sm:$0xff]
    %v3582 = vunpack.c.l.b16 %v3550
    %v3583 = vunpack.c.h.b16 %v3550
    %v3584 = vunpack.c.l.b16 %v3551
    %v3585 = vunpack.c.h.b16 %v3551
    %v3586 = vunpack.c.l.b16 %v3552
    %v3587 = vunpack.c.h.b16 %v3552
    %v3588 = vunpack.c.l.b16 %v3553
    %v3589 = vunpack.c.h.b16 %v3553
    %v3590 = vunpack.c.l.b16 %v3554
    %v3591 = vunpack.c.h.b16 %v3554
    %v3592 = vunpack.c.l.b16 %v3555
    %v3593 = vunpack.c.h.b16 %v3555
    %v3594 = vunpack.c.l.b16 %v3556
    %v3595 = vunpack.c.h.b16 %v3556
    %v3596 = vunpack.c.l.b16 %v3557
    %v3597 = vunpack.c.h.b16 %v3557
    %v3598 = vunpack.c.l.b16 %v3558
    %v3599 = vunpack.c.h.b16 %v3558
    %v3600 = vunpack.c.l.b16 %v3559
    %v3601 = vunpack.c.h.b16 %v3559
    %v3602 = vunpack.c.l.b16 %v3560
    %v3603 = vunpack.c.h.b16 %v3560
    %v3604 = vunpack.c.l.b16 %v3561
    %v3605 = vunpack.c.h.b16 %v3561
    %v3606 = vunpack.c.l.b16 %v3562
    %v3607 = vunpack.c.h.b16 %v3562
    %v3608 = vunpack.c.l.b16 %v3563
    %v3609 = vunpack.c.h.b16 %v3563
    %v3610 = vunpack.c.l.b16 %v3564
    %v3611 = vunpack.c.h.b16 %v3564
    %v3612 = vunpack.c.l.b16 %v3565
    %v3613 = vunpack.c.h.b16 %v3565
    %v3614 = vpack.c.b16 %v3584, %v3582
    %v3615 = vpack.c.b16 %v3585, %v3583
    %v3616 = vpack.c.b16 %v3588, %v3586
    %v3617 = vpack.c.b16 %v3589, %v3587
    %v3618 = vpack.c.b16 %v3592, %v3590
    %v3619 = vpack.c.b16 %v3593, %v3591
    %v3620 = vpack.c.b16 %v3596, %v3594
    %v3621 = vpack.c.b16 %v3597, %v3595
    %v3622 = vpack.c.b16 %v3600, %v3598
    %v3623 = vpack.c.b16 %v3601, %v3599
    %v3624 = vpack.c.b16 %v3604, %v3602
    %v3625 = vpack.c.b16 %v3605, %v3603
    %v3626 = vpack.c.b16 %v3608, %v3606
    %v3627 = vpack.c.b16 %v3609, %v3607
    %v3628 = vpack.c.b16 %v3612, %v3610
    %v3629 = vpack.c.b16 %v3613, %v3611
    %3646 = vmatpush.bf16.msra.mxu0 %v3628
    %3647 = vmatpush.bf16.msra.mxu0 %v3626
    %3648 = vmatpush.bf16.msra.mxu0 %v3624
    %3649 = vmatpush.bf16.msra.mxu0 %v3622
    %3650 = vmatpush.bf16.msra.mxu0 %v3620
    %3651 = vmatpush.bf16.msra.mxu0 %v3618
    %3652 = vmatpush.bf16.msra.mxu0 %v3616
    %3653 = vmatpush.bf16.msra.mxu0 %v3614
    %3654 = vmatmul.bf16.gmra.mxu0 %v3549
    %v3655 = vpop.f32.mrf.mxu0
    %v3656 = vadd.f32 0.0, %v3655
    %v3657 = vpop.f32.mrf.mxu0
    %3658 = vdwg.mxu0
    %3659 = vmatpush.bf16.msra.mxu0 %v3629
    %3660 = vmatpush.bf16.msra.mxu0 %v3627
    %3661 = vmatpush.bf16.msra.mxu0 %v3625
    %3662 = vmatpush.bf16.msra.mxu0 %v3623
    %3663 = vmatpush.bf16.msra.mxu0 %v3621
    %3664 = vmatpush.bf16.msra.mxu0 %v3619
    %3665 = vmatpush.bf16.msra.mxu0 %v3617
    %3666 = vmatpush.bf16.msra.mxu0 %v3615
    %3667 = vmatmul.bf16.gmra.mxu0 %v3549
    %v3668 = vpop.f32.mrf.mxu0
    %v3669 = vadd.f32 0.0, %v3668
    %v3670 = vpop.f32.mrf.mxu0
    %3671 = vdwg.mxu0
    %v3672 = vld [vmem:[#allocation10 + $0x8] sm:$0xf]
    %v3673 = vld [vmem:[#allocation10 + $0x14] sm:$0xf]
    %v3674 = vld [vmem:[#allocation10 + $0x20] sm:$0xf]
    %v3675 = vld [vmem:[#allocation10 + $0x2c] sm:$0xf]
    %v3676 = vld [vmem:[#allocation10 + $0x38] sm:$0xf]
    %v3677 = vld [vmem:[#allocation10 + $0x44] sm:$0xf]
    %v3678 = vld [vmem:[#allocation10 + $0x50] sm:$0xf]
    %v3679 = vld [vmem:[#allocation10 + $0x5c] sm:$0xf]
    %v3680 = vld [vmem:[#allocation10 + $0x68] sm:$0xf]
    %v3681 = vld [vmem:[#allocation10 + $0x74] sm:$0xf]
    %v3682 = vld [vmem:[#allocation10 + $0x80] sm:$0xf]
    %v3683 = vld [vmem:[#allocation10 + $0x8c] sm:$0xf]
    %v3684 = vld [vmem:[#allocation10 + $0x98] sm:$0xf]
    %v3685 = vld [vmem:[#allocation10 + $0xa4] sm:$0xf]
    %v3686 = vld [vmem:[#allocation10 + $0xb0] sm:$0xf]
    %v3687 = vld [vmem:[#allocation10 + $0xbc] sm:$0xf]
    %v3688 = vadd.f32 %v3546, %v3656
    %v3689 = vadd.f32 %v3547, %v3669
    %v3690 = vxor.u32 %v3688, 2147483648
    %v3691 = vxor.u32 %v3689, 2147483648
    %v3692 = vmul.f32 %v3690, 1.442695
    %v3693 = vpow.pop %v3692
    %v3694 = vmul.f32 %v3691, 1.442695
    %v3695 = vpow.pop %v3694
    %v3696 = vadd.f32 %v3693, 1.0
    %v3697 = vadd.f32 %v3695, 1.0
    %v3698 = vrcp.pop %v3696
    %v3699 = vmul.f32 %v3696, %v3698
    %v3700 = vsub.f32 1.0, %v3699
    %v3701 = vmul.f32 %v3698, %v3700
    %v3702 = vadd.f32 %v3698, %v3701
    %vm3703 = vweird.f32 %v3696
    %vm3704 = vweird.f32 %v3698
    %vm3705 = vmor %vm3703, %vm3704
    %v3706 = vsel %vm3705, %v3698, %v3702
    %v3707 = vand.u32 2147483647, %v3696
    %vm3708 = vcmp.eq.f32.partialorder %v3707, 8.507059e+37
    %v3709 = vand.u32 %v3696, 2147483648
    %v3710 = vor.u32 1.1754944e-38, %v3709
    %v3711 = vsel %vm3708, %v3710, %v3706
    %v3712 = vmul.f32 1.0, %v3711
    %v3713 = vrcp.pop %v3697
    %v3714 = vmul.f32 %v3697, %v3713
    %v3715 = vsub.f32 1.0, %v3714
    %v3716 = vmul.f32 %v3713, %v3715
    %v3717 = vadd.f32 %v3713, %v3716
    %vm3718 = vweird.f32 %v3697
    %vm3719 = vweird.f32 %v3713
    %vm3720 = vmor %vm3718, %vm3719
    %v3721 = vsel %vm3720, %v3713, %v3717
    %v3722 = vand.u32 2147483647, %v3697
    %vm3723 = vcmp.eq.f32.partialorder %v3722, 8.507059e+37
    %v3724 = vand.u32 %v3697, 2147483648
    %v3725 = vor.u32 1.1754944e-38, %v3724
    %v3726 = vsel %vm3723, %v3725, %v3721
    %v3727 = vmul.f32 1.0, %v3726
    %v3744 = vunpack.c.l.b16 %v3672
    %v3745 = vunpack.c.l.b16 %v3673
    %v3746 = vunpack.c.l.b16 %v3674
    %v3747 = vunpack.c.l.b16 %v3675
    %v3748 = vunpack.c.l.b16 %v3676
    %v3749 = vunpack.c.l.b16 %v3677
    %v3750 = vunpack.c.l.b16 %v3678
    %v3751 = vunpack.c.l.b16 %v3679
    %v3752 = vunpack.c.l.b16 %v3680
    %v3753 = vunpack.c.l.b16 %v3681
    %v3754 = vunpack.c.l.b16 %v3682
    %v3755 = vunpack.c.l.b16 %v3683
    %v3756 = vunpack.c.l.b16 %v3684
    %v3757 = vunpack.c.l.b16 %v3685
    %v3758 = vunpack.c.l.b16 %v3686
    %v3759 = vunpack.c.l.b16 %v3687
    %v3760 = vpack.c.b16 %v3745, %v3744
    %v3761 = vpack.c.b16 %v3747, %v3746
    %v3762 = vpack.c.b16 %v3749, %v3748
    %v3763 = vpack.c.b16 %v3751, %v3750
    %v3764 = vpack.c.b16 %v3753, %v3752
    %v3765 = vpack.c.b16 %v3755, %v3754
    %v3766 = vpack.c.b16 %v3757, %v3756
    %v3767 = vpack.c.b16 %v3759, %v3758
    %3776 = vmatpush.bf16.msra.mxu0 %v3767
    %3777 = vmatpush.bf16.msra.mxu0 %v3766
    %3778 = vmatpush.bf16.msra.mxu0 %v3765
    %3779 = vmatpush.bf16.msra.mxu0 %v3764
    %3780 = vmatpush.bf16.msra.mxu0 %v3763
    %3781 = vmatpush.bf16.msra.mxu0 %v3762
    %3782 = vmatpush.bf16.msra.mxu0 %v3761
    %3783 = vmatpush.bf16.msra.mxu0 %v3760
    %3784 = vmatmul.bf16.gmra.mxu0 %v3549
    %v3785 = vpop.f32.mrf.mxu0
    %v3786 = vadd.f32 %v520, %v3785
    %v3787 = vpop.f32.mrf.mxu0
    %3788 = vdwg.mxu0
    %v3789 = vmul.f32 %v3712, %v3786
    %v3790 = vadd.f32 %v3548, %v3789
    %v3791 = vtanh.pop %v3790
    %v3792 = vsub.f32 1.0, %v3727
    %v3793 = vmul.f32 %v3792, %v3791
    %v3794 = vmul.f32 %v3727, %v3543
    %v3795 = vadd.f32 %v3793, %v3794
    %s3796 = scalar_lea.vmem [#allocation12], 96
    %3797 = vst [vmem:[%s3796] sm:$0xff] %v3795
    %v3798 = vld [vmem:[#allocation3 + $0x138] sm:$0xff]
    %v3799 = vld [vmem:[#allocation3 + $0x140] sm:$0xff]
    %v3800 = vld [vmem:[#allocation3 + $0x148] sm:$0xff]
    %v3801 = vpack.c.bf16 %v3795, %v3795
    %v3802 = vld [vmem:[#allocation10] sm:$0xff]
    %v3803 = vld [vmem:[#allocation10 + $0xc] sm:$0xff]
    %v3804 = vld [vmem:[#allocation10 + $0x18] sm:$0xff]
    %v3805 = vld [vmem:[#allocation10 + $0x24] sm:$0xff]
    %v3806 = vld [vmem:[#allocation10 + $0x30] sm:$0xff]
    %v3807 = vld [vmem:[#allocation10 + $0x3c] sm:$0xff]
    %v3808 = vld [vmem:[#allocation10 + $0x48] sm:$0xff]
    %v3809 = vld [vmem:[#allocation10 + $0x54] sm:$0xff]
    %v3810 = vld [vmem:[#allocation10 + $0x60] sm:$0xff]
    %v3811 = vld [vmem:[#allocation10 + $0x6c] sm:$0xff]
    %v3812 = vld [vmem:[#allocation10 + $0x78] sm:$0xff]
    %v3813 = vld [vmem:[#allocation10 + $0x84] sm:$0xff]
    %v3814 = vld [vmem:[#allocation10 + $0x90] sm:$0xff]
    %v3815 = vld [vmem:[#allocation10 + $0x9c] sm:$0xff]
    %v3816 = vld [vmem:[#allocation10 + $0xa8] sm:$0xff]
    %v3817 = vld [vmem:[#allocation10 + $0xb4] sm:$0xff]
    %v3834 = vunpack.c.l.b16 %v3802
    %v3835 = vunpack.c.h.b16 %v3802
    %v3836 = vunpack.c.l.b16 %v3803
    %v3837 = vunpack.c.h.b16 %v3803
    %v3838 = vunpack.c.l.b16 %v3804
    %v3839 = vunpack.c.h.b16 %v3804
    %v3840 = vunpack.c.l.b16 %v3805
    %v3841 = vunpack.c.h.b16 %v3805
    %v3842 = vunpack.c.l.b16 %v3806
    %v3843 = vunpack.c.h.b16 %v3806
    %v3844 = vunpack.c.l.b16 %v3807
    %v3845 = vunpack.c.h.b16 %v3807
    %v3846 = vunpack.c.l.b16 %v3808
    %v3847 = vunpack.c.h.b16 %v3808
    %v3848 = vunpack.c.l.b16 %v3809
    %v3849 = vunpack.c.h.b16 %v3809
    %v3850 = vunpack.c.l.b16 %v3810
    %v3851 = vunpack.c.h.b16 %v3810
    %v3852 = vunpack.c.l.b16 %v3811
    %v3853 = vunpack.c.h.b16 %v3811
    %v3854 = vunpack.c.l.b16 %v3812
    %v3855 = vunpack.c.h.b16 %v3812
    %v3856 = vunpack.c.l.b16 %v3813
    %v3857 = vunpack.c.h.b16 %v3813
    %v3858 = vunpack.c.l.b16 %v3814
    %v3859 = vunpack.c.h.b16 %v3814
    %v3860 = vunpack.c.l.b16 %v3815
    %v3861 = vunpack.c.h.b16 %v3815
    %v3862 = vunpack.c.l.b16 %v3816
    %v3863 = vunpack.c.h.b16 %v3816
    %v3864 = vunpack.c.l.b16 %v3817
    %v3865 = vunpack.c.h.b16 %v3817
    %v3866 = vpack.c.b16 %v3836, %v3834
    %v3867 = vpack.c.b16 %v3837, %v3835
    %v3868 = vpack.c.b16 %v3840, %v3838
    %v3869 = vpack.c.b16 %v3841, %v3839
    %v3870 = vpack.c.b16 %v3844, %v3842
    %v3871 = vpack.c.b16 %v3845, %v3843
    %v3872 = vpack.c.b16 %v3848, %v3846
    %v3873 = vpack.c.b16 %v3849, %v3847
    %v3874 = vpack.c.b16 %v3852, %v3850
    %v3875 = vpack.c.b16 %v3853, %v3851
    %v3876 = vpack.c.b16 %v3856, %v3854
    %v3877 = vpack.c.b16 %v3857, %v3855
    %v3878 = vpack.c.b16 %v3860, %v3858
    %v3879 = vpack.c.b16 %v3861, %v3859
    %v3880 = vpack.c.b16 %v3864, %v3862
    %v3881 = vpack.c.b16 %v3865, %v3863
    %3898 = vmatpush.bf16.msra.mxu0 %v3880
    %3899 = vmatpush.bf16.msra.mxu0 %v3878
    %3900 = vmatpush.bf16.msra.mxu0 %v3876
    %3901 = vmatpush.bf16.msra.mxu0 %v3874
    %3902 = vmatpush.bf16.msra.mxu0 %v3872
    %3903 = vmatpush.bf16.msra.mxu0 %v3870
    %3904 = vmatpush.bf16.msra.mxu0 %v3868
    %3905 = vmatpush.bf16.msra.mxu0 %v3866
    %3906 = vmatmul.bf16.gmra.mxu0 %v3801
    %v3907 = vpop.f32.mrf.mxu0
    %v3908 = vadd.f32 0.0, %v3907
    %v3909 = vpop.f32.mrf.mxu0
    %3910 = vdwg.mxu0
    %3911 = vmatpush.bf16.msra.mxu0 %v3881
    %3912 = vmatpush.bf16.msra.mxu0 %v3879
    %3913 = vmatpush.bf16.msra.mxu0 %v3877
    %3914 = vmatpush.bf16.msra.mxu0 %v3875
    %3915 = vmatpush.bf16.msra.mxu0 %v3873
    %3916 = vmatpush.bf16.msra.mxu0 %v3871
    %3917 = vmatpush.bf16.msra.mxu0 %v3869
    %3918 = vmatpush.bf16.msra.mxu0 %v3867
    %3919 = vmatmul.bf16.gmra.mxu0 %v3801
    %v3920 = vpop.f32.mrf.mxu0
    %v3921 = vadd.f32 0.0, %v3920
    %v3922 = vpop.f32.mrf.mxu0
    %3923 = vdwg.mxu0
    %v3924 = vld [vmem:[#allocation10 + $0x8] sm:$0xf]
    %v3925 = vld [vmem:[#allocation10 + $0x14] sm:$0xf]
    %v3926 = vld [vmem:[#allocation10 + $0x20] sm:$0xf]
    %v3927 = vld [vmem:[#allocation10 + $0x2c] sm:$0xf]
    %v3928 = vld [vmem:[#allocation10 + $0x38] sm:$0xf]
    %v3929 = vld [vmem:[#allocation10 + $0x44] sm:$0xf]
    %v3930 = vld [vmem:[#allocation10 + $0x50] sm:$0xf]
    %v3931 = vld [vmem:[#allocation10 + $0x5c] sm:$0xf]
    %v3932 = vld [vmem:[#allocation10 + $0x68] sm:$0xf]
    %v3933 = vld [vmem:[#allocation10 + $0x74] sm:$0xf]
    %v3934 = vld [vmem:[#allocation10 + $0x80] sm:$0xf]
    %v3935 = vld [vmem:[#allocation10 + $0x8c] sm:$0xf]
    %v3936 = vld [vmem:[#allocation10 + $0x98] sm:$0xf]
    %v3937 = vld [vmem:[#allocation10 + $0xa4] sm:$0xf]
    %v3938 = vld [vmem:[#allocation10 + $0xb0] sm:$0xf]
    %v3939 = vld [vmem:[#allocation10 + $0xbc] sm:$0xf]
    %v3940 = vadd.f32 %v3798, %v3908
    %v3941 = vadd.f32 %v3799, %v3921
    %v3942 = vxor.u32 %v3940, 2147483648
    %v3943 = vxor.u32 %v3941, 2147483648
    %v3944 = vmul.f32 %v3942, 1.442695
    %v3945 = vpow.pop %v3944
    %v3946 = vmul.f32 %v3943, 1.442695
    %v3947 = vpow.pop %v3946
    %v3948 = vadd.f32 %v3945, 1.0
    %v3949 = vadd.f32 %v3947, 1.0
    %v3950 = vrcp.pop %v3948
    %v3951 = vmul.f32 %v3948, %v3950
    %v3952 = vsub.f32 1.0, %v3951
    %v3953 = vmul.f32 %v3950, %v3952
    %v3954 = vadd.f32 %v3950, %v3953
    %vm3955 = vweird.f32 %v3948
    %vm3956 = vweird.f32 %v3950
    %vm3957 = vmor %vm3955, %vm3956
    %v3958 = vsel %vm3957, %v3950, %v3954
    %v3959 = vand.u32 2147483647, %v3948
    %vm3960 = vcmp.eq.f32.partialorder %v3959, 8.507059e+37
    %v3961 = vand.u32 %v3948, 2147483648
    %v3962 = vor.u32 1.1754944e-38, %v3961
    %v3963 = vsel %vm3960, %v3962, %v3958
    %v3964 = vmul.f32 1.0, %v3963
    %v3965 = vrcp.pop %v3949
    %v3966 = vmul.f32 %v3949, %v3965
    %v3967 = vsub.f32 1.0, %v3966
    %v3968 = vmul.f32 %v3965, %v3967
    %v3969 = vadd.f32 %v3965, %v3968
    %vm3970 = vweird.f32 %v3949
    %vm3971 = vweird.f32 %v3965
    %vm3972 = vmor %vm3970, %vm3971
    %v3973 = vsel %vm3972, %v3965, %v3969
    %v3974 = vand.u32 2147483647, %v3949
    %vm3975 = vcmp.eq.f32.partialorder %v3974, 8.507059e+37
    %v3976 = vand.u32 %v3949, 2147483648
    %v3977 = vor.u32 1.1754944e-38, %v3976
    %v3978 = vsel %vm3975, %v3977, %v3973
    %v3979 = vmul.f32 1.0, %v3978
    %v3996 = vunpack.c.l.b16 %v3924
    %v3997 = vunpack.c.l.b16 %v3925
    %v3998 = vunpack.c.l.b16 %v3926
    %v3999 = vunpack.c.l.b16 %v3927
    %v4000 = vunpack.c.l.b16 %v3928
    %v4001 = vunpack.c.l.b16 %v3929
    %v4002 = vunpack.c.l.b16 %v3930
    %v4003 = vunpack.c.l.b16 %v3931
    %v4004 = vunpack.c.l.b16 %v3932
    %v4005 = vunpack.c.l.b16 %v3933
    %v4006 = vunpack.c.l.b16 %v3934
    %v4007 = vunpack.c.l.b16 %v3935
    %v4008 = vunpack.c.l.b16 %v3936
    %v4009 = vunpack.c.l.b16 %v3937
    %v4010 = vunpack.c.l.b16 %v3938
    %v4011 = vunpack.c.l.b16 %v3939
    %v4012 = vpack.c.b16 %v3997, %v3996
    %v4013 = vpack.c.b16 %v3999, %v3998
    %v4014 = vpack.c.b16 %v4001, %v4000
    %v4015 = vpack.c.b16 %v4003, %v4002
    %v4016 = vpack.c.b16 %v4005, %v4004
    %v4017 = vpack.c.b16 %v4007, %v4006
    %v4018 = vpack.c.b16 %v4009, %v4008
    %v4019 = vpack.c.b16 %v4011, %v4010
    %4028 = vmatpush.bf16.msra.mxu0 %v4019
    %4029 = vmatpush.bf16.msra.mxu0 %v4018
    %4030 = vmatpush.bf16.msra.mxu0 %v4017
    %4031 = vmatpush.bf16.msra.mxu0 %v4016
    %4032 = vmatpush.bf16.msra.mxu0 %v4015
    %4033 = vmatpush.bf16.msra.mxu0 %v4014
    %4034 = vmatpush.bf16.msra.mxu0 %v4013
    %4035 = vmatpush.bf16.msra.mxu0 %v4012
    %4036 = vmatmul.bf16.gmra.mxu0 %v3801
    %v4037 = vpop.f32.mrf.mxu0
    %v4038 = vadd.f32 %v520, %v4037
    %v4039 = vpop.f32.mrf.mxu0
    %4040 = vdwg.mxu0
    %v4041 = vmul.f32 %v3964, %v4038
    %v4042 = vadd.f32 %v3800, %v4041
    %v4043 = vtanh.pop %v4042
    %v4044 = vsub.f32 1.0, %v3979
    %v4045 = vmul.f32 %v4044, %v4043
    %v4046 = vmul.f32 %v3979, %v3795
    %v4047 = vadd.f32 %v4045, %v4046
    %s4048 = scalar_lea.vmem [#allocation12], 104
    %4049 = vst [vmem:[%s4048] sm:$0xff] %v4047
    %v4050 = vld [vmem:[#allocation3 + $0x150] sm:$0xff]
    %v4051 = vld [vmem:[#allocation3 + $0x158] sm:$0xff]
    %v4052 = vld [vmem:[#allocation3 + $0x160] sm:$0xff]
    %v4053 = vpack.c.bf16 %v4047, %v4047
    %v4054 = vld [vmem:[#allocation10] sm:$0xff]
    %v4055 = vld [vmem:[#allocation10 + $0xc] sm:$0xff]
    %v4056 = vld [vmem:[#allocation10 + $0x18] sm:$0xff]
    %v4057 = vld [vmem:[#allocation10 + $0x24] sm:$0xff]
    %v4058 = vld [vmem:[#allocation10 + $0x30] sm:$0xff]
    %v4059 = vld [vmem:[#allocation10 + $0x3c] sm:$0xff]
    %v4060 = vld [vmem:[#allocation10 + $0x48] sm:$0xff]
    %v4061 = vld [vmem:[#allocation10 + $0x54] sm:$0xff]
    %v4062 = vld [vmem:[#allocation10 + $0x60] sm:$0xff]
    %v4063 = vld [vmem:[#allocation10 + $0x6c] sm:$0xff]
    %v4064 = vld [vmem:[#allocation10 + $0x78] sm:$0xff]
    %v4065 = vld [vmem:[#allocation10 + $0x84] sm:$0xff]
    %v4066 = vld [vmem:[#allocation10 + $0x90] sm:$0xff]
    %v4067 = vld [vmem:[#allocation10 + $0x9c] sm:$0xff]
    %v4068 = vld [vmem:[#allocation10 + $0xa8] sm:$0xff]
    %v4069 = vld [vmem:[#allocation10 + $0xb4] sm:$0xff]
    %v4086 = vunpack.c.l.b16 %v4054
    %v4087 = vunpack.c.h.b16 %v4054
    %v4088 = vunpack.c.l.b16 %v4055
    %v4089 = vunpack.c.h.b16 %v4055
    %v4090 = vunpack.c.l.b16 %v4056
    %v4091 = vunpack.c.h.b16 %v4056
    %v4092 = vunpack.c.l.b16 %v4057
    %v4093 = vunpack.c.h.b16 %v4057
    %v4094 = vunpack.c.l.b16 %v4058
    %v4095 = vunpack.c.h.b16 %v4058
    %v4096 = vunpack.c.l.b16 %v4059
    %v4097 = vunpack.c.h.b16 %v4059
    %v4098 = vunpack.c.l.b16 %v4060
    %v4099 = vunpack.c.h.b16 %v4060
    %v4100 = vunpack.c.l.b16 %v4061
    %v4101 = vunpack.c.h.b16 %v4061
    %v4102 = vunpack.c.l.b16 %v4062
    %v4103 = vunpack.c.h.b16 %v4062
    %v4104 = vunpack.c.l.b16 %v4063
    %v4105 = vunpack.c.h.b16 %v4063
    %v4106 = vunpack.c.l.b16 %v4064
    %v4107 = vunpack.c.h.b16 %v4064
    %v4108 = vunpack.c.l.b16 %v4065
    %v4109 = vunpack.c.h.b16 %v4065
    %v4110 = vunpack.c.l.b16 %v4066
    %v4111 = vunpack.c.h.b16 %v4066
    %v4112 = vunpack.c.l.b16 %v4067
    %v4113 = vunpack.c.h.b16 %v4067
    %v4114 = vunpack.c.l.b16 %v4068
    %v4115 = vunpack.c.h.b16 %v4068
    %v4116 = vunpack.c.l.b16 %v4069
    %v4117 = vunpack.c.h.b16 %v4069
    %v4118 = vpack.c.b16 %v4088, %v4086
    %v4119 = vpack.c.b16 %v4089, %v4087
    %v4120 = vpack.c.b16 %v4092, %v4090
    %v4121 = vpack.c.b16 %v4093, %v4091
    %v4122 = vpack.c.b16 %v4096, %v4094
    %v4123 = vpack.c.b16 %v4097, %v4095
    %v4124 = vpack.c.b16 %v4100, %v4098
    %v4125 = vpack.c.b16 %v4101, %v4099
    %v4126 = vpack.c.b16 %v4104, %v4102
    %v4127 = vpack.c.b16 %v4105, %v4103
    %v4128 = vpack.c.b16 %v4108, %v4106
    %v4129 = vpack.c.b16 %v4109, %v4107
    %v4130 = vpack.c.b16 %v4112, %v4110
    %v4131 = vpack.c.b16 %v4113, %v4111
    %v4132 = vpack.c.b16 %v4116, %v4114
    %v4133 = vpack.c.b16 %v4117, %v4115
    %4150 = vmatpush.bf16.msra.mxu0 %v4132
    %4151 = vmatpush.bf16.msra.mxu0 %v4130
    %4152 = vmatpush.bf16.msra.mxu0 %v4128
    %4153 = vmatpush.bf16.msra.mxu0 %v4126
    %4154 = vmatpush.bf16.msra.mxu0 %v4124
    %4155 = vmatpush.bf16.msra.mxu0 %v4122
    %4156 = vmatpush.bf16.msra.mxu0 %v4120
    %4157 = vmatpush.bf16.msra.mxu0 %v4118
    %4158 = vmatmul.bf16.gmra.mxu0 %v4053
    %v4159 = vpop.f32.mrf.mxu0
    %v4160 = vadd.f32 0.0, %v4159
    %v4161 = vpop.f32.mrf.mxu0
    %4162 = vdwg.mxu0
    %4163 = vmatpush.bf16.msra.mxu0 %v4133
    %4164 = vmatpush.bf16.msra.mxu0 %v4131
    %4165 = vmatpush.bf16.msra.mxu0 %v4129
    %4166 = vmatpush.bf16.msra.mxu0 %v4127
    %4167 = vmatpush.bf16.msra.mxu0 %v4125
    %4168 = vmatpush.bf16.msra.mxu0 %v4123
    %4169 = vmatpush.bf16.msra.mxu0 %v4121
    %4170 = vmatpush.bf16.msra.mxu0 %v4119
    %4171 = vmatmul.bf16.gmra.mxu0 %v4053
    %v4172 = vpop.f32.mrf.mxu0
    %v4173 = vadd.f32 0.0, %v4172
    %v4174 = vpop.f32.mrf.mxu0
    %4175 = vdwg.mxu0
    %v4176 = vld [vmem:[#allocation10 + $0x8] sm:$0xf]
    %v4177 = vld [vmem:[#allocation10 + $0x14] sm:$0xf]
    %v4178 = vld [vmem:[#allocation10 + $0x20] sm:$0xf]
    %v4179 = vld [vmem:[#allocation10 + $0x2c] sm:$0xf]
    %v4180 = vld [vmem:[#allocation10 + $0x38] sm:$0xf]
    %v4181 = vld [vmem:[#allocation10 + $0x44] sm:$0xf]
    %v4182 = vld [vmem:[#allocation10 + $0x50] sm:$0xf]
    %v4183 = vld [vmem:[#allocation10 + $0x5c] sm:$0xf]
    %v4184 = vld [vmem:[#allocation10 + $0x68] sm:$0xf]
    %v4185 = vld [vmem:[#allocation10 + $0x74] sm:$0xf]
    %v4186 = vld [vmem:[#allocation10 + $0x80] sm:$0xf]
    %v4187 = vld [vmem:[#allocation10 + $0x8c] sm:$0xf]
    %v4188 = vld [vmem:[#allocation10 + $0x98] sm:$0xf]
    %v4189 = vld [vmem:[#allocation10 + $0xa4] sm:$0xf]
    %v4190 = vld [vmem:[#allocation10 + $0xb0] sm:$0xf]
    %v4191 = vld [vmem:[#allocation10 + $0xbc] sm:$0xf]
    %v4192 = vadd.f32 %v4050, %v4160
    %v4193 = vadd.f32 %v4051, %v4173
    %v4194 = vxor.u32 %v4192, 2147483648
    %v4195 = vxor.u32 %v4193, 2147483648
    %v4196 = vmul.f32 %v4194, 1.442695
    %v4197 = vpow.pop %v4196
    %v4198 = vmul.f32 %v4195, 1.442695
    %v4199 = vpow.pop %v4198
    %v4200 = vadd.f32 %v4197, 1.0
    %v4201 = vadd.f32 %v4199, 1.0
    %v4202 = vrcp.pop %v4200
    %v4203 = vmul.f32 %v4200, %v4202
    %v4204 = vsub.f32 1.0, %v4203
    %v4205 = vmul.f32 %v4202, %v4204
    %v4206 = vadd.f32 %v4202, %v4205
    %vm4207 = vweird.f32 %v4200
    %vm4208 = vweird.f32 %v4202
    %vm4209 = vmor %vm4207, %vm4208
    %v4210 = vsel %vm4209, %v4202, %v4206
    %v4211 = vand.u32 2147483647, %v4200
    %vm4212 = vcmp.eq.f32.partialorder %v4211, 8.507059e+37
    %v4213 = vand.u32 %v4200, 2147483648
    %v4214 = vor.u32 1.1754944e-38, %v4213
    %v4215 = vsel %vm4212, %v4214, %v4210
    %v4216 = vmul.f32 1.0, %v4215
    %v4217 = vrcp.pop %v4201
    %v4218 = vmul.f32 %v4201, %v4217
    %v4219 = vsub.f32 1.0, %v4218
    %v4220 = vmul.f32 %v4217, %v4219
    %v4221 = vadd.f32 %v4217, %v4220
    %vm4222 = vweird.f32 %v4201
    %vm4223 = vweird.f32 %v4217
    %vm4224 = vmor %vm4222, %vm4223
    %v4225 = vsel %vm4224, %v4217, %v4221
    %v4226 = vand.u32 2147483647, %v4201
    %vm4227 = vcmp.eq.f32.partialorder %v4226, 8.507059e+37
    %v4228 = vand.u32 %v4201, 2147483648
    %v4229 = vor.u32 1.1754944e-38, %v4228
    %v4230 = vsel %vm4227, %v4229, %v4225
    %v4231 = vmul.f32 1.0, %v4230
    %v4248 = vunpack.c.l.b16 %v4176
    %v4249 = vunpack.c.l.b16 %v4177
    %v4250 = vunpack.c.l.b16 %v4178
    %v4251 = vunpack.c.l.b16 %v4179
    %v4252 = vunpack.c.l.b16 %v4180
    %v4253 = vunpack.c.l.b16 %v4181
    %v4254 = vunpack.c.l.b16 %v4182
    %v4255 = vunpack.c.l.b16 %v4183
    %v4256 = vunpack.c.l.b16 %v4184
    %v4257 = vunpack.c.l.b16 %v4185
    %v4258 = vunpack.c.l.b16 %v4186
    %v4259 = vunpack.c.l.b16 %v4187
    %v4260 = vunpack.c.l.b16 %v4188
    %v4261 = vunpack.c.l.b16 %v4189
    %v4262 = vunpack.c.l.b16 %v4190
    %v4263 = vunpack.c.l.b16 %v4191
    %v4264 = vpack.c.b16 %v4249, %v4248
    %v4265 = vpack.c.b16 %v4251, %v4250
    %v4266 = vpack.c.b16 %v4253, %v4252
    %v4267 = vpack.c.b16 %v4255, %v4254
    %v4268 = vpack.c.b16 %v4257, %v4256
    %v4269 = vpack.c.b16 %v4259, %v4258
    %v4270 = vpack.c.b16 %v4261, %v4260
    %v4271 = vpack.c.b16 %v4263, %v4262
    %4280 = vmatpush.bf16.msra.mxu0 %v4271
    %4281 = vmatpush.bf16.msra.mxu0 %v4270
    %4282 = vmatpush.bf16.msra.mxu0 %v4269
    %4283 = vmatpush.bf16.msra.mxu0 %v4268
    %4284 = vmatpush.bf16.msra.mxu0 %v4267
    %4285 = vmatpush.bf16.msra.mxu0 %v4266
    %4286 = vmatpush.bf16.msra.mxu0 %v4265
    %4287 = vmatpush.bf16.msra.mxu0 %v4264
    %4288 = vmatmul.bf16.gmra.mxu0 %v4053
    %v4289 = vpop.f32.mrf.mxu0
    %v4290 = vadd.f32 %v520, %v4289
    %v4291 = vpop.f32.mrf.mxu0
    %4292 = vdwg.mxu0
    %v4293 = vmul.f32 %v4216, %v4290
    %v4294 = vadd.f32 %v4052, %v4293
    %v4295 = vtanh.pop %v4294
    %v4296 = vsub.f32 1.0, %v4231
    %v4297 = vmul.f32 %v4296, %v4295
    %v4298 = vmul.f32 %v4231, %v4047
    %v4299 = vadd.f32 %v4297, %v4298
    %s4300 = scalar_lea.vmem [#allocation12], 112
    %4301 = vst [vmem:[%s4300] sm:$0xff] %v4299
    %v4302 = vld [vmem:[#allocation3 + $0x168] sm:$0xff]
    %v4303 = vld [vmem:[#allocation3 + $0x170] sm:$0xff]
    %v4304 = vld [vmem:[#allocation3 + $0x178] sm:$0xff]
    %v4305 = vpack.c.bf16 %v4299, %v4299
    %v4306 = vld [vmem:[#allocation10] sm:$0xff]
    %v4307 = vld [vmem:[#allocation10 + $0xc] sm:$0xff]
    %v4308 = vld [vmem:[#allocation10 + $0x18] sm:$0xff]
    %v4309 = vld [vmem:[#allocation10 + $0x24] sm:$0xff]
    %v4310 = vld [vmem:[#allocation10 + $0x30] sm:$0xff]
    %v4311 = vld [vmem:[#allocation10 + $0x3c] sm:$0xff]
    %v4312 = vld [vmem:[#allocation10 + $0x48] sm:$0xff]
    %v4313 = vld [vmem:[#allocation10 + $0x54] sm:$0xff]
    %v4314 = vld [vmem:[#allocation10 + $0x60] sm:$0xff]
    %v4315 = vld [vmem:[#allocation10 + $0x6c] sm:$0xff]
    %v4316 = vld [vmem:[#allocation10 + $0x78] sm:$0xff]
    %v4317 = vld [vmem:[#allocation10 + $0x84] sm:$0xff]
    %v4318 = vld [vmem:[#allocation10 + $0x90] sm:$0xff]
    %v4319 = vld [vmem:[#allocation10 + $0x9c] sm:$0xff]
    %v4320 = vld [vmem:[#allocation10 + $0xa8] sm:$0xff]
    %v4321 = vld [vmem:[#allocation10 + $0xb4] sm:$0xff]
    %v4338 = vunpack.c.l.b16 %v4306
    %v4339 = vunpack.c.h.b16 %v4306
    %v4340 = vunpack.c.l.b16 %v4307
    %v4341 = vunpack.c.h.b16 %v4307
    %v4342 = vunpack.c.l.b16 %v4308
    %v4343 = vunpack.c.h.b16 %v4308
    %v4344 = vunpack.c.l.b16 %v4309
    %v4345 = vunpack.c.h.b16 %v4309
    %v4346 = vunpack.c.l.b16 %v4310
    %v4347 = vunpack.c.h.b16 %v4310
    %v4348 = vunpack.c.l.b16 %v4311
    %v4349 = vunpack.c.h.b16 %v4311
    %v4350 = vunpack.c.l.b16 %v4312
    %v4351 = vunpack.c.h.b16 %v4312
    %v4352 = vunpack.c.l.b16 %v4313
    %v4353 = vunpack.c.h.b16 %v4313
    %v4354 = vunpack.c.l.b16 %v4314
    %v4355 = vunpack.c.h.b16 %v4314
    %v4356 = vunpack.c.l.b16 %v4315
    %v4357 = vunpack.c.h.b16 %v4315
    %v4358 = vunpack.c.l.b16 %v4316
    %v4359 = vunpack.c.h.b16 %v4316
    %v4360 = vunpack.c.l.b16 %v4317
    %v4361 = vunpack.c.h.b16 %v4317
    %v4362 = vunpack.c.l.b16 %v4318
    %v4363 = vunpack.c.h.b16 %v4318
    %v4364 = vunpack.c.l.b16 %v4319
    %v4365 = vunpack.c.h.b16 %v4319
    %v4366 = vunpack.c.l.b16 %v4320
    %v4367 = vunpack.c.h.b16 %v4320
    %v4368 = vunpack.c.l.b16 %v4321
    %v4369 = vunpack.c.h.b16 %v4321
    %v4370 = vpack.c.b16 %v4340, %v4338
    %v4371 = vpack.c.b16 %v4341, %v4339
    %v4372 = vpack.c.b16 %v4344, %v4342
    %v4373 = vpack.c.b16 %v4345, %v4343
    %v4374 = vpack.c.b16 %v4348, %v4346
    %v4375 = vpack.c.b16 %v4349, %v4347
    %v4376 = vpack.c.b16 %v4352, %v4350
    %v4377 = vpack.c.b16 %v4353, %v4351
    %v4378 = vpack.c.b16 %v4356, %v4354
    %v4379 = vpack.c.b16 %v4357, %v4355
    %v4380 = vpack.c.b16 %v4360, %v4358
    %v4381 = vpack.c.b16 %v4361, %v4359
    %v4382 = vpack.c.b16 %v4364, %v4362
    %v4383 = vpack.c.b16 %v4365, %v4363
    %v4384 = vpack.c.b16 %v4368, %v4366
    %v4385 = vpack.c.b16 %v4369, %v4367
    %4402 = vmatpush.bf16.msra.mxu0 %v4384
    %4403 = vmatpush.bf16.msra.mxu0 %v4382
    %4404 = vmatpush.bf16.msra.mxu0 %v4380
    %4405 = vmatpush.bf16.msra.mxu0 %v4378
    %4406 = vmatpush.bf16.msra.mxu0 %v4376
    %4407 = vmatpush.bf16.msra.mxu0 %v4374
    %4408 = vmatpush.bf16.msra.mxu0 %v4372
    %4409 = vmatpush.bf16.msra.mxu0 %v4370
    %4410 = vmatmul.bf16.gmra.mxu0 %v4305
    %v4411 = vpop.f32.mrf.mxu0
    %v4412 = vadd.f32 0.0, %v4411
    %v4413 = vpop.f32.mrf.mxu0
    %4414 = vdwg.mxu0
    %4415 = vmatpush.bf16.msra.mxu0 %v4385
    %4416 = vmatpush.bf16.msra.mxu0 %v4383
    %4417 = vmatpush.bf16.msra.mxu0 %v4381
    %4418 = vmatpush.bf16.msra.mxu0 %v4379
    %4419 = vmatpush.bf16.msra.mxu0 %v4377
    %4420 = vmatpush.bf16.msra.mxu0 %v4375
    %4421 = vmatpush.bf16.msra.mxu0 %v4373
    %4422 = vmatpush.bf16.msra.mxu0 %v4371
    %4423 = vmatmul.bf16.gmra.mxu0 %v4305
    %v4424 = vpop.f32.mrf.mxu0
    %v4425 = vadd.f32 0.0, %v4424
    %v4426 = vpop.f32.mrf.mxu0
    %4427 = vdwg.mxu0
    %v4428 = vld [vmem:[#allocation10 + $0x8] sm:$0xf]
    %v4429 = vld [vmem:[#allocation10 + $0x14] sm:$0xf]
    %v4430 = vld [vmem:[#allocation10 + $0x20] sm:$0xf]
    %v4431 = vld [vmem:[#allocation10 + $0x2c] sm:$0xf]
    %v4432 = vld [vmem:[#allocation10 + $0x38] sm:$0xf]
    %v4433 = vld [vmem:[#allocation10 + $0x44] sm:$0xf]
    %v4434 = vld [vmem:[#allocation10 + $0x50] sm:$0xf]
    %v4435 = vld [vmem:[#allocation10 + $0x5c] sm:$0xf]
    %v4436 = vld [vmem:[#allocation10 + $0x68] sm:$0xf]
    %v4437 = vld [vmem:[#allocation10 + $0x74] sm:$0xf]
    %v4438 = vld [vmem:[#allocation10 + $0x80] sm:$0xf]
    %v4439 = vld [vmem:[#allocation10 + $0x8c] sm:$0xf]
    %v4440 = vld [vmem:[#allocation10 + $0x98] sm:$0xf]
    %v4441 = vld [vmem:[#allocation10 + $0xa4] sm:$0xf]
    %v4442 = vld [vmem:[#allocation10 + $0xb0] sm:$0xf]
    %v4443 = vld [vmem:[#allocation10 + $0xbc] sm:$0xf]
    %v4444 = vadd.f32 %v4302, %v4412
    %v4445 = vadd.f32 %v4303, %v4425
    %v4446 = vxor.u32 %v4444, 2147483648
    %v4447 = vxor.u32 %v4445, 2147483648
    %v4448 = vmul.f32 %v4446, 1.442695
    %v4449 = vpow.pop %v4448
    %v4450 = vmul.f32 %v4447, 1.442695
    %v4451 = vpow.pop %v4450
    %v4452 = vadd.f32 %v4449, 1.0
    %v4453 = vadd.f32 %v4451, 1.0
    %v4454 = vrcp.pop %v4452
    %v4455 = vmul.f32 %v4452, %v4454
    %v4456 = vsub.f32 1.0, %v4455
    %v4457 = vmul.f32 %v4454, %v4456
    %v4458 = vadd.f32 %v4454, %v4457
    %vm4459 = vweird.f32 %v4452
    %vm4460 = vweird.f32 %v4454
    %vm4461 = vmor %vm4459, %vm4460
    %v4462 = vsel %vm4461, %v4454, %v4458
    %v4463 = vand.u32 2147483647, %v4452
    %vm4464 = vcmp.eq.f32.partialorder %v4463, 8.507059e+37
    %v4465 = vand.u32 %v4452, 2147483648
    %v4466 = vor.u32 1.1754944e-38, %v4465
    %v4467 = vsel %vm4464, %v4466, %v4462
    %v4468 = vmul.f32 1.0, %v4467
    %v4469 = vrcp.pop %v4453
    %v4470 = vmul.f32 %v4453, %v4469
    %v4471 = vsub.f32 1.0, %v4470
    %v4472 = vmul.f32 %v4469, %v4471
    %v4473 = vadd.f32 %v4469, %v4472
    %vm4474 = vweird.f32 %v4453
    %vm4475 = vweird.f32 %v4469
    %vm4476 = vmor %vm4474, %vm4475
    %v4477 = vsel %vm4476, %v4469, %v4473
    %v4478 = vand.u32 2147483647, %v4453
    %vm4479 = vcmp.eq.f32.partialorder %v4478, 8.507059e+37
    %v4480 = vand.u32 %v4453, 2147483648
    %v4481 = vor.u32 1.1754944e-38, %v4480
    %v4482 = vsel %vm4479, %v4481, %v4477
    %v4483 = vmul.f32 1.0, %v4482
    %v4500 = vunpack.c.l.b16 %v4428
    %v4501 = vunpack.c.l.b16 %v4429
    %v4502 = vunpack.c.l.b16 %v4430
    %v4503 = vunpack.c.l.b16 %v4431
    %v4504 = vunpack.c.l.b16 %v4432
    %v4505 = vunpack.c.l.b16 %v4433
    %v4506 = vunpack.c.l.b16 %v4434
    %v4507 = vunpack.c.l.b16 %v4435
    %v4508 = vunpack.c.l.b16 %v4436
    %v4509 = vunpack.c.l.b16 %v4437
    %v4510 = vunpack.c.l.b16 %v4438
    %v4511 = vunpack.c.l.b16 %v4439
    %v4512 = vunpack.c.l.b16 %v4440
    %v4513 = vunpack.c.l.b16 %v4441
    %v4514 = vunpack.c.l.b16 %v4442
    %v4515 = vunpack.c.l.b16 %v4443
    %v4516 = vpack.c.b16 %v4501, %v4500
    %v4517 = vpack.c.b16 %v4503, %v4502
    %v4518 = vpack.c.b16 %v4505, %v4504
    %v4519 = vpack.c.b16 %v4507, %v4506
    %v4520 = vpack.c.b16 %v4509, %v4508
    %v4521 = vpack.c.b16 %v4511, %v4510
    %v4522 = vpack.c.b16 %v4513, %v4512
    %v4523 = vpack.c.b16 %v4515, %v4514
    %4532 = vmatpush.bf16.msra.mxu0 %v4523
    %4533 = vmatpush.bf16.msra.mxu0 %v4522
    %4534 = vmatpush.bf16.msra.mxu0 %v4521
    %4535 = vmatpush.bf16.msra.mxu0 %v4520
    %4536 = vmatpush.bf16.msra.mxu0 %v4519
    %4537 = vmatpush.bf16.msra.mxu0 %v4518
    %4538 = vmatpush.bf16.msra.mxu0 %v4517
    %4539 = vmatpush.bf16.msra.mxu0 %v4516
    %4540 = vmatmul.bf16.gmra.mxu0 %v4305
    %v4541 = vpop.f32.mrf.mxu0
    %v4542 = vadd.f32 %v520, %v4541
    %v4543 = vpop.f32.mrf.mxu0
    %4544 = vdwg.mxu0
    %v4545 = vmul.f32 %v4468, %v4542
    %v4546 = vadd.f32 %v4304, %v4545
    %v4547 = vtanh.pop %v4546
    %v4548 = vsub.f32 1.0, %v4483
    %v4549 = vmul.f32 %v4548, %v4547
    %v4550 = vmul.f32 %v4483, %v4299
    %v4551 = vadd.f32 %v4549, %v4550
    %s4552 = scalar_lea.vmem [#allocation12], 120
    %4553 = vst [vmem:[%s4552] sm:$0xff] %v4551
    %4554 = vst [vmem:[#allocation2] sm:$0xff] %v4551
    // Predicated region
    $region46: #{tpu_custom_call.1} parent=1 // pred_check
      _
    $region47: #{tpu_custom_call.1} parent=1 // pred_check_branch
      %4556 = sbr.rel (0) target = $region49
    $region48: #{tpu_custom_call.1} parent=1 // pred_region
      %4558 = vsyncadd [#allocation6], 0
      %s4559 = sshll.u32 [#allocation12], 4
      %s4560 = int_to_ptr.vmem [resolvable:$true] %s4559
      %s4561 = sshll.u32 %s6, 4
      %s4562 = int_to_ptr.hbm [resolvable:$true] %s4561
      %4567 = dma.vmem_to_hbm [thread:$0]  %s4560, 2048, %s4562, [#allocation6], 128, 128, 8
    $region49: #{tpu_custom_call.1} parent=1 // pred_fallthru
      _
    // Predicated region
    $region50: #{tpu_custom_call.1} parent=1 // pred_check
      _
    $region51: #{tpu_custom_call.1} parent=1 // pred_check_branch
      %4569 = sbr.rel (0) target = $region53
    $region52: #{tpu_custom_call.1} parent=1 // pred_region
      %4571 = dma.done [#allocation6], 2048
    $region53: #{tpu_custom_call.1} parent=1 // pred_fallthru
      _
    %4572 = vsyncpa [#allocation5], 1
    %4573 = vsyncpa [#allocation8], 1
    %4574 = vsyncpa [#allocation11], 1
    %4575 = vsyncpa [#allocation6], 1

</llo_original>
